<compile_context>
chip_gen: v6e
topology: v6e:2x2x1
jax: 0.10.0
libtpu: 0.0.40
codegen_flags: <defaults>
</compile_context>

<pallas_src>
import jax
import jax.numpy as jnp
from jax import lax
from jax.experimental import pallas as pl
from jax.experimental.pallas import tpu as pltpu

EPS = 1e-5          # PyTorch BatchNorm1d default eps
_LANE = 128
_SUBLANE = 8


def _round_up(x, m):
    return (x + m - 1) // m * m


# ---------------------------------------------------------------------------
# Capability probe: single-buffered constant operands (pipeline_mode=Buffered(1))
# ---------------------------------------------------------------------------
_BUFFERED1_OK = None


def _single_buffered_weights_supported():
    """Probe once whether pipeline_mode=pl.Buffered(1) lowers on this backend."""
    global _BUFFERED1_OK
    if _BUFFERED1_OK is not None:
        return _BUFFERED1_OK

    def _k(x_ref, w_ref, o_ref):
        o_ref[...] = x_ref[...] + w_ref[...]

    try:
        with jax.ensure_compile_time_eval():
            x = jnp.zeros((16, 128), jnp.float32)
            w = jnp.ones((8, 128), jnp.float32)
            out = pl.pallas_call(
                _k,
                out_shape=jax.ShapeDtypeStruct((16, 128), jnp.float32),
                grid=(2,),
                in_specs=[pl.BlockSpec((8, 128), lambda i: (i, 0)),
                          pl.BlockSpec((8, 128), lambda i: (0, 0),
                                       pipeline_mode=pl.Buffered(1))],
                out_specs=pl.BlockSpec((8, 128), lambda i: (i, 0)),
            )(x, w)
            jax.block_until_ready(out)
        _BUFFERED1_OK = True
    except Exception:
        _BUFFERED1_OK = False
    return _BUFFERED1_OK


def _vmem_capacity_bytes():
    try:
        return int(pltpu.get_tpu_info().vmem_capacity_bytes)
    except Exception:
        return 64 * 1024 * 1024   # conservative (v7x per-TensorCore)


# ---------------------------------------------------------------------------
# Fused kernels
# ---------------------------------------------------------------------------
def _siamese_pair_kernel(xt_ref, xr_ref, enc_w, enc_b,
                         w1a, w1b, b1, w2, b2, w3, b3, w4, b4, s4, t4,
                         o_ref):
    f32, bf16 = jnp.float32, jnp.bfloat16
    bm = xt_ref.shape[0]

    # One stacked encoder matmul over both branches (enc_w streamed once).
    # TODO(synk): replace the Linear+ReLU stand-in with the real injected encoder.
    x2 = jnp.concatenate([xt_ref[...], xr_ref[...]], axis=0)          # (2*bm, in_dim)
    enc = jnp.dot(x2, enc_w[...], preferred_element_type=f32) + enc_b[...]
    enc = jnp.maximum(enc, 0.0)                                       # (2*bm, F_pad) f32
    tgt = enc[:bm].astype(bf16)
    rec = enc[bm:].astype(bf16)

    # fc1 on cat([tgt, rec], dim=1), concat-free:
    #   cat([t, r], 1) @ W1 == t @ W1[:F] + r @ W1[F:]
    h = (jnp.dot(tgt, w1a[...], preferred_element_type=f32)
         + jnp.dot(rec, w1b[...], preferred_element_type=f32) + b1[...])
    h = jnp.maximum(h, 0.0).astype(bf16)      # bn1 scale/shift folded into fc2

    h = jnp.dot(h, w2[...], preferred_element_type=f32) + b2[...]
    h = jnp.maximum(h, 0.0).astype(bf16)      # bn2 folded into fc3
    h = jnp.dot(h, w3[...], preferred_element_type=f32) + b3[...]
    h = jnp.maximum(h, 0.0).astype(bf16)      # bn3 folded into fc4
    h = jnp.dot(h, w4[...], preferred_element_type=f32) + b4[...]
    o_ref[...] = jnp.maximum(h, 0.0) * s4[...] + t4[...]   # bn4 kept explicit


def _siamese_single_kernel(xt_ref, enc_w, enc_b,
                           w1a, b1, w2, b2, w3, b3, w4, b4, s4, t4,
                           o_ref):
    f32, bf16 = jnp.float32, jnp.bfloat16

    # TODO(synk): replace the Linear+ReLU stand-in with the real injected encoder.
    enc = jnp.dot(xt_ref[...], enc_w[...], preferred_element_type=f32) + enc_b[...]
    tgt = jnp.maximum(enc, 0.0).astype(bf16)

    # recon features are exact zeros => W1[F:] contributes nothing; skip it.
    h = jnp.dot(tgt, w1a[...], preferred_element_type=f32) + b1[...]
    h = jnp.maximum(h, 0.0).astype(bf16)
    h = jnp.dot(h, w2[...], preferred_element_type=f32) + b2[...]
    h = jnp.maximum(h, 0.0).astype(bf16)
    h = jnp.dot(h, w3[...], preferred_element_type=f32) + b3[...]
    h = jnp.maximum(h, 0.0).astype(bf16)
    h = jnp.dot(h, w4[...], preferred_element_type=f32) + b4[...]
    o_ref[...] = jnp.maximum(h, 0.0) * s4[...] + t4[...]


# ---------------------------------------------------------------------------
# pallas_call wrapper
# ---------------------------------------------------------------------------
def siamese_forward(target_input, initial_recon_input, kernel_params):
    """Fused forward: encoder(target) [+ encoder(recon)] + concat-free 4-layer head."""
    (enc_w, enc_b, w1a, w1b, b1, w2, b2, w3, b3, w4, b4, s4, t4) = kernel_params

    B = target_input.shape[0]
    xt = target_input.reshape(B, -1).astype(jnp.bfloat16)
    in_dim = xt.shape[1]
    f_pad = enc_w.shape[1]
    out_dim = w4.shape[1]
    has_recon = initial_recon_input is not None
    n_inputs = 2 if has_recon else 1

    if has_recon:
        weights = (enc_w, enc_b, w1a, w1b, b1, w2, b2, w3, b3, w4, b4, s4, t4)
        kernel = _siamese_pair_kernel
    else:
        weights = (enc_w, enc_b, w1a, b1, w2, b2, w3, b3, w4, b4, s4, t4)
        kernel = _siamese_single_kernel

    single_buffer = _single_buffered_weights_supported()
    w_buf = 1 if single_buffer else 2
    weight_bytes_raw = sum(int(a.size) * a.dtype.itemsize for a in weights)
    weight_vmem = weight_bytes_raw * w_buf

    # ---- batch tile: VMEM-budget aware, capped at 128 rows so v7x's two ----
    # ---- TensorCores both get grid steps for mid-sized batches.        ----
    per_row = (n_inputs * in_dim * 2 * 2              # bf16 input tiles, 2 buffers
               + out_dim * 4 * 2                      # f32 output tile,  2 buffers
               + n_inputs * f_pad * (4 + 2)           # encoder features f32 + bf16
               + 1024 * (4 + 2) + 512 * (4 + 2) * 2 + 256 * 4)   # head staging
    vmem_cap = _vmem_capacity_bytes()
    budget = int(0.75 * vmem_cap)

    bm = min(_round_up(B, _SUBLANE), 128)
    while bm > _SUBLANE and weight_vmem + bm * per_row > budget:
        bm -= _SUBLANE
    vmem_limit = int(min(vmem_cap, 128 * 2**20,
                         max(2 * (weight_vmem + bm * per_row), 32 * 2**20)))

    # Pad batch only to a sublane multiple; a short edge tile handles remainders.
    Bp = _round_up(B, _SUBLANE)
    if Bp != B:
        xt = jnp.pad(xt, ((0, Bp - B), (0, 0)))
    grid = (pl.cdiv(Bp, bm),)

    def batched(i):
        return (i, 0)

    def replicated(i):
        return (0, 0)

    if single_buffer:
        def w_spec(w):
            return pl.BlockSpec(w.shape, replicated, pipeline_mode=pl.Buffered(1))
    else:
        def w_spec(w):
            return pl.BlockSpec(w.shape, replicated)

    in_specs = [pl.BlockSpec((bm, in_dim), batched)]
    operands = [xt]
    if has_recon:
        xr = initial_recon_input.reshape(B, -1).astype(jnp.bfloat16)
        if Bp != B:
            xr = jnp.pad(xr, ((0, Bp - B), (0, 0)))
        in_specs.append(pl.BlockSpec((bm, in_dim), batched))
        operands.append(xr)
    in_specs += [w_spec(w) for w in weights]
    operands += list(weights)

    head_flops_per_row = (2 * n_inputs * f_pad * 1024 + 2 * 1024 * 512
                          + 2 * 512 * 512 + 2 * 512 * 256)
    flops = Bp * (n_inputs * 2 * in_dim * f_pad + head_flops_per_row)
    # Weights have a constant index_map so they are DMA'd once, not per step.
    bytes_accessed = (n_inputs * Bp * in_dim * 2 + weight_bytes_raw
                      + Bp * out_dim * 4)

    out = pl.pallas_call(
        kernel,
        out_shape=jax.ShapeDtypeStruct((Bp, out_dim), jnp.float32),
        grid=grid,
        in_specs=in_specs,
        out_specs=pl.BlockSpec((bm, out_dim), batched),
        compiler_params=pltpu.CompilerParams(
            dimension_semantics=("parallel",),
            vmem_limit_bytes=vmem_limit),
        cost_estimate=pl.CostEstimate(flops=flops, transcendentals=0,
                                      bytes_accessed=bytes_accessed),
    )(*operands)
    return out[:B]


# ---------------------------------------------------------------------------
# Parameter construction (deterministic, PyTorch-style init, all f32 "raw")
# ---------------------------------------------------------------------------
def init_raw_params(key, in_dim, encoder_feature_size):
    ks = jax.random.split(key, 9)

    def linear(k, din, dout):
        kw, kb = jax.random.split(k)
        lim = 1.0 / jnp.sqrt(jnp.float32(din))
        w = jax.random.uniform(kw, (din, dout), jnp.float32, -lim, lim)
        b = jax.random.uniform(kb, (dout,), jnp.float32, -lim, lim)
        return w, b

    def bn(k, dim):
        kg, kb, km, kv = jax.random.split(k, 4)
        gamma = 1.0 + 0.1 * jax.random.normal(kg, (dim,), jnp.float32)
        beta = 0.1 * jax.random.normal(kb, (dim,), jnp.float32)
        mean = 0.1 * jax.random.normal(km, (dim,), jnp.float32)
        var = 1.0 + 0.1 * jax.random.uniform(kv, (dim,), jnp.float32)
        return gamma, beta, mean, var

    F = encoder_feature_size
    enc = linear(ks[0], in_dim, F)
    fcs = [linear(ks[1], 2 * F, 1024), linear(ks[2], 1024, 512),
           linear(ks[3], 512, 512), linear(ks[4], 512, 256)]
    bns = [bn(ks[5], 1024), bn(ks[6], 512), bn(ks[7], 512), bn(ks[8], 256)]
    return dict(enc=enc, fcs=fcs, bns=bns, F=F)


def prepare_kernel_params(raw):
    """Fold eval-mode BN (in f32), pad encoder features to a 128-lane multiple,
    split fc1 for the concat-free formulation, cast matmul weights to bf16."""
    enc_w, enc_b = raw["enc"]
    F = raw["F"]
    f_pad = _round_up(F, _LANE)

    def bn_fold(p):
        gamma, beta, mean, var = p
        scale = gamma * lax.rsqrt(var + EPS)
        shift = beta - mean * scale
        return scale, shift

    (s1, t1), (s2, t2), (s3, t3), (s4, t4) = [bn_fold(b) for b in raw["bns"]]
    (w1, b1), (w2, b2), (w3, b3), (w4, b4) = raw["fcs"]

    enc_w_p = jnp.pad(enc_w, ((0, 0), (0, f_pad - F))).astype(jnp.bfloat16)
    enc_b_p = jnp.pad(enc_b, (0, f_pad - F)).reshape(1, f_pad).astype(jnp.float32)

    # fc1 split over the concat halves; K padded F -> f_pad with zero rows.
    w1a = jnp.pad(w1[:F], ((0, f_pad - F), (0, 0)))
    w1b = jnp.pad(w1[F:], ((0, f_pad - F), (0, 0)))

    # Fold bn_i (post-ReLU affine) into fc_{i+1}:  (s*x + t) @ W = x @ (s[:,None]*W) + t@W
    w2f = s1[:, None] * w2
    b2f = b2 + t1 @ w2
    w3f = s2[:, None] * w3
    b3f = b3 + t2 @ w3
    w4f = s3[:, None] * w4
    b4f = b4 + t3 @ w4

    bf16 = jnp.bfloat16
    row = lambda v: v.reshape(1, -1).astype(jnp.float32)
    return (enc_w_p, enc_b_p,
            w1a.astype(bf16), w1b.astype(bf16), row(b1),
            w2f.astype(bf16), row(b2f),
            w3f.astype(bf16), row(b3f),
            w4f.astype(bf16), row(b4f),
            row(s4), row(t4))


# ---------------------------------------------------------------------------
# Pure-JAX reference implementing the ORIGINAL (unfolded) module math.
# ---------------------------------------------------------------------------
def _reference(target, recon, raw):
    enc_w, enc_b = raw["enc"]
    B = target.shape[0]
    bf16, f32 = jnp.bfloat16, jnp.float32

    def enc(x):
        x = x.reshape(B, -1).astype(bf16)
        return jnp.maximum(
            jnp.dot(x, enc_w.astype(bf16), preferred_element_type=f32) + enc_b, 0.0)

    tf = enc(target)
    rf = enc(recon) if recon is not None else jnp.zeros_like(tf)
    h = jnp.concatenate([tf, rf], axis=1)
    for (w, b), (gamma, beta, mean, var) in zip(raw["fcs"], raw["bns"]):
        h = jnp.dot(h.astype(bf16), w.astype(bf16), preferred_element_type=f32) + b
        h = jnp.maximum(h, 0.0)
        h = (h - mean) * gamma * lax.rsqrt(var + EPS) + beta     # eval-mode BN
    return h


# ---------------------------------------------------------------------------
if __name__ == "__main__":
    key = jax.random.PRNGKey(0)
    B, C, H, W = 2, 4, 16, 16
    encoder_feature_size = 64

    k_t, k_r, k_p = jax.random.split(key, 3)
    target_input = jax.random.normal(k_t, (B, C, H, W), jnp.float32)
    initial_recon_input = jax.random.normal(k_r, (B, C, H, W), jnp.float32)

    raw = init_raw_params(k_p, C * H * W, encoder_feature_size)
    kparams = prepare_kernel_params(raw)

    out = jax.jit(siamese_forward)(target_input, initial_recon_input, kparams)
    out_none = jax.jit(lambda t, p: siamese_forward(t, None, p))(target_input, kparams)
    jax.block_until_ready((out, out_none))

    assert out.shape == (B, 256) and out_none.shape == (B, 256)
    assert out.dtype == jnp.float32

    ref = _reference(target_input, initial_recon_input, raw)
    ref_none = _reference(target_input, None, raw)
    assert jnp.allclose(out, ref, rtol=5e-2, atol=5e-2), \
        float(jnp.max(jnp.abs(out - ref)))
    assert jnp.allclose(out_none, ref_none, rtol=5e-2, atol=5e-2), \
        float(jnp.max(jnp.abs(out_none - ref_none)))

    print("KERNEL_OK")
</pallas_src>

<mosaic_0001>
module attributes {stable_mosaic.version = 11 : i64} {
  func.func @_siamese_pair_kernel(%arg0: i32, %arg1: memref<8x1024xbf16, #tpu.memory_space<vmem>>, %arg2: memref<8x1024xbf16, #tpu.memory_space<vmem>>, %arg3: memref<1024x128xbf16, #tpu.memory_space<vmem>>, %arg4: memref<1x128xf32, #tpu.memory_space<vmem>>, %arg5: memref<128x1024xbf16, #tpu.memory_space<vmem>>, %arg6: memref<128x1024xbf16, #tpu.memory_space<vmem>>, %arg7: memref<1x1024xf32, #tpu.memory_space<vmem>>, %arg8: memref<1024x512xbf16, #tpu.memory_space<vmem>>, %arg9: memref<1x512xf32, #tpu.memory_space<vmem>>, %arg10: memref<512x512xbf16, #tpu.memory_space<vmem>>, %arg11: memref<1x512xf32, #tpu.memory_space<vmem>>, %arg12: memref<512x256xbf16, #tpu.memory_space<vmem>>, %arg13: memref<1x256xf32, #tpu.memory_space<vmem>>, %arg14: memref<1x256xf32, #tpu.memory_space<vmem>>, %arg15: memref<1x256xf32, #tpu.memory_space<vmem>>, %arg16: memref<8x256xf32, #tpu.memory_space<vmem>>) attributes {dimension_semantics = [#tpu.dimension_semantics<parallel>], iteration_bounds = array<i64: 1>, scalar_prefetch = 0 : i64, scratch_operands = 0 : i64, tpu.core_type = #tpu.core_type<tc>, window_params = [{transform_indices = @transform_0, window_bounds = array<i64: 8, 1024>}, {transform_indices = @transform_1, window_bounds = array<i64: 8, 1024>}, {pipeline_mode = #tpu.pipeline_mode<synchronous>, transform_indices = @transform_2, window_bounds = array<i64: 1024, 128>}, {pipeline_mode = #tpu.pipeline_mode<synchronous>, transform_indices = @transform_3, window_bounds = array<i64: 1, 128>}, {pipeline_mode = #tpu.pipeline_mode<synchronous>, transform_indices = @transform_4, window_bounds = array<i64: 128, 1024>}, {pipeline_mode = #tpu.pipeline_mode<synchronous>, transform_indices = @transform_5, window_bounds = array<i64: 128, 1024>}, {pipeline_mode = #tpu.pipeline_mode<synchronous>, transform_indices = @transform_6, window_bounds = array<i64: 1, 1024>}, {pipeline_mode = #tpu.pipeline_mode<synchronous>, transform_indices = @transform_7, window_bounds = array<i64: 1024, 512>}, {pipeline_mode = #tpu.pipeline_mode<synchronous>, transform_indices = @transform_8, window_bounds = array<i64: 1, 512>}, {pipeline_mode = #tpu.pipeline_mode<synchronous>, transform_indices = @transform_9, window_bounds = array<i64: 512, 512>}, {pipeline_mode = #tpu.pipeline_mode<synchronous>, transform_indices = @transform_10, window_bounds = array<i64: 1, 512>}, {pipeline_mode = #tpu.pipeline_mode<synchronous>, transform_indices = @transform_11, window_bounds = array<i64: 512, 256>}, {pipeline_mode = #tpu.pipeline_mode<synchronous>, transform_indices = @transform_12, window_bounds = array<i64: 1, 256>}, {pipeline_mode = #tpu.pipeline_mode<synchronous>, transform_indices = @transform_13, window_bounds = array<i64: 1, 256>}, {pipeline_mode = #tpu.pipeline_mode<synchronous>, transform_indices = @transform_14, window_bounds = array<i64: 1, 256>}, {transform_indices = @transform_15, window_bounds = array<i64: 8, 256>}]} {
    %c0 = arith.constant 0 : index
    %c0_0 = arith.constant 0 : index
    %0 = vector.load %arg1[%c0, %c0_0] : memref<8x1024xbf16, #tpu.memory_space<vmem>>, vector<8x1024xbf16>
    %c0_1 = arith.constant 0 : index
    %c0_2 = arith.constant 0 : index
    %1 = vector.load %arg2[%c0_1, %c0_2] : memref<8x1024xbf16, #tpu.memory_space<vmem>>, vector<8x1024xbf16>
    %2 = tpu.concatenate %0, %1 in 0 : vector<8x1024xbf16>, vector<8x1024xbf16> -> vector<16x1024xbf16>
    %c0_3 = arith.constant 0 : index
    %c0_4 = arith.constant 0 : index
    %3 = vector.load %arg3[%c0_3, %c0_4] : memref<1024x128xbf16, #tpu.memory_space<vmem>>, vector<1024x128xbf16>
    %cst = arith.constant dense<0.000000e+00> : vector<16x128xf32>
    %4 = tpu.matmul %2, %3, %cst {dimension_numbers = #tpu.dot_dimension_numbers<[1], [0], [0], [1], [0, 0, 1, 1], [], []>} : vector<16x1024xbf16>, vector<1024x128xbf16>, vector<16x128xf32> -> vector<16x128xf32>
    %c0_5 = arith.constant 0 : index
    %c0_6 = arith.constant 0 : index
    %5 = vector.load %arg4[%c0_5, %c0_6] : memref<1x128xf32, #tpu.memory_space<vmem>>, vector<1x128xf32>
    %6 = vector.broadcast %5 : vector<1x128xf32> to vector<16x128xf32>
    %7 = arith.addf %4, %6 : vector<16x128xf32>
    %cst_7 = arith.constant 0.000000e+00 : f32
    %8 = vector.broadcast %cst_7 : f32 to vector<16x128xf32>
    %9 = arith.maximumf %7, %8 : vector<16x128xf32>
    %10 = vector.extract_strided_slice %9 {offsets = [0, 0], sizes = [8, 128], strides = [1, 1]} : vector<16x128xf32> to vector<8x128xf32>
    %11 = arith.truncf %10 : vector<8x128xf32> to vector<8x128xbf16>
    %12 = vector.extract_strided_slice %9 {offsets = [8, 0], sizes = [8, 128], strides = [1, 1]} : vector<16x128xf32> to vector<8x128xf32>
    %13 = arith.truncf %12 : vector<8x128xf32> to vector<8x128xbf16>
    %c0_8 = arith.constant 0 : index
    %c0_9 = arith.constant 0 : index
    %14 = vector.load %arg5[%c0_8, %c0_9] : memref<128x1024xbf16, #tpu.memory_space<vmem>>, vector<128x1024xbf16>
    %cst_10 = arith.constant dense<0.000000e+00> : vector<8x1024xf32>
    %15 = tpu.matmul %11, %14, %cst_10 {dimension_numbers = #tpu.dot_dimension_numbers<[1], [0], [0], [1], [0, 0, 1, 1], [], []>} : vector<8x128xbf16>, vector<128x1024xbf16>, vector<8x1024xf32> -> vector<8x1024xf32>
    %c0_11 = arith.constant 0 : index
    %c0_12 = arith.constant 0 : index
    %16 = vector.load %arg6[%c0_11, %c0_12] : memref<128x1024xbf16, #tpu.memory_space<vmem>>, vector<128x1024xbf16>
    %cst_13 = arith.constant dense<0.000000e+00> : vector<8x1024xf32>
    %17 = tpu.matmul %13, %16, %cst_13 {dimension_numbers = #tpu.dot_dimension_numbers<[1], [0], [0], [1], [0, 0, 1, 1], [], []>} : vector<8x128xbf16>, vector<128x1024xbf16>, vector<8x1024xf32> -> vector<8x1024xf32>
    %18 = arith.addf %15, %17 : vector<8x1024xf32>
    %c0_14 = arith.constant 0 : index
    %c0_15 = arith.constant 0 : index
    %19 = vector.load %arg7[%c0_14, %c0_15] : memref<1x1024xf32, #tpu.memory_space<vmem>>, vector<1x1024xf32>
    %20 = vector.broadcast %19 : vector<1x1024xf32> to vector<8x1024xf32>
    %21 = arith.addf %18, %20 : vector<8x1024xf32>
    %cst_16 = arith.constant 0.000000e+00 : f32
    %22 = vector.broadcast %cst_16 : f32 to vector<8x1024xf32>
    %23 = arith.maximumf %21, %22 : vector<8x1024xf32>
    %24 = arith.truncf %23 : vector<8x1024xf32> to vector<8x1024xbf16>
    %c0_17 = arith.constant 0 : index
    %c0_18 = arith.constant 0 : index
    %25 = vector.load %arg8[%c0_17, %c0_18] : memref<1024x512xbf16, #tpu.memory_space<vmem>>, vector<1024x512xbf16>
    %cst_19 = arith.constant dense<0.000000e+00> : vector<8x512xf32>
    %26 = tpu.matmul %24, %25, %cst_19 {dimension_numbers = #tpu.dot_dimension_numbers<[1], [0], [0], [1], [0, 0, 1, 1], [], []>} : vector<8x1024xbf16>, vector<1024x512xbf16>, vector<8x512xf32> -> vector<8x512xf32>
    %c0_20 = arith.constant 0 : index
    %c0_21 = arith.constant 0 : index
    %27 = vector.load %arg9[%c0_20, %c0_21] : memref<1x512xf32, #tpu.memory_space<vmem>>, vector<1x512xf32>
    %28 = vector.broadcast %27 : vector<1x512xf32> to vector<8x512xf32>
    %29 = arith.addf %26, %28 : vector<8x512xf32>
    %cst_22 = arith.constant 0.000000e+00 : f32
    %30 = vector.broadcast %cst_22 : f32 to vector<8x512xf32>
    %31 = arith.maximumf %29, %30 : vector<8x512xf32>
    %32 = arith.truncf %31 : vector<8x512xf32> to vector<8x512xbf16>
    %c0_23 = arith.constant 0 : index
    %c0_24 = arith.constant 0 : index
    %33 = vector.load %arg10[%c0_23, %c0_24] : memref<512x512xbf16, #tpu.memory_space<vmem>>, vector<512x512xbf16>
    %cst_25 = arith.constant dense<0.000000e+00> : vector<8x512xf32>
    %34 = tpu.matmul %32, %33, %cst_25 {dimension_numbers = #tpu.dot_dimension_numbers<[1], [0], [0], [1], [0, 0, 1, 1], [], []>} : vector<8x512xbf16>, vector<512x512xbf16>, vector<8x512xf32> -> vector<8x512xf32>
    %c0_26 = arith.constant 0 : index
    %c0_27 = arith.constant 0 : index
    %35 = vector.load %arg11[%c0_26, %c0_27] : memref<1x512xf32, #tpu.memory_space<vmem>>, vector<1x512xf32>
    %36 = vector.broadcast %35 : vector<1x512xf32> to vector<8x512xf32>
    %37 = arith.addf %34, %36 : vector<8x512xf32>
    %cst_28 = arith.constant 0.000000e+00 : f32
    %38 = vector.broadcast %cst_28 : f32 to vector<8x512xf32>
    %39 = arith.maximumf %37, %38 : vector<8x512xf32>
    %40 = arith.truncf %39 : vector<8x512xf32> to vector<8x512xbf16>
    %c0_29 = arith.constant 0 : index
    %c0_30 = arith.constant 0 : index
    %41 = vector.load %arg12[%c0_29, %c0_30] : memref<512x256xbf16, #tpu.memory_space<vmem>>, vector<512x256xbf16>
    %cst_31 = arith.constant dense<0.000000e+00> : vector<8x256xf32>
    %42 = tpu.matmul %40, %41, %cst_31 {dimension_numbers = #tpu.dot_dimension_numbers<[1], [0], [0], [1], [0, 0, 1, 1], [], []>} : vector<8x512xbf16>, vector<512x256xbf16>, vector<8x256xf32> -> vector<8x256xf32>
    %c0_32 = arith.constant 0 : index
    %c0_33 = arith.constant 0 : index
    %43 = vector.load %arg13[%c0_32, %c0_33] : memref<1x256xf32, #tpu.memory_space<vmem>>, vector<1x256xf32>
    %44 = vector.broadcast %43 : vector<1x256xf32> to vector<8x256xf32>
    %45 = arith.addf %42, %44 : vector<8x256xf32>
    %cst_34 = arith.constant 0.000000e+00 : f32
    %46 = vector.broadcast %cst_34 : f32 to vector<8x256xf32>
    %47 = arith.maximumf %45, %46 : vector<8x256xf32>
    %c0_35 = arith.constant 0 : index
    %c0_36 = arith.constant 0 : index
    %48 = vector.load %arg14[%c0_35, %c0_36] : memref<1x256xf32, #tpu.memory_space<vmem>>, vector<1x256xf32>
    %49 = vector.broadcast %48 : vector<1x256xf32> to vector<8x256xf32>
    %50 = arith.mulf %47, %49 : vector<8x256xf32>
    %c0_37 = arith.constant 0 : index
    %c0_38 = arith.constant 0 : index
    %51 = vector.load %arg15[%c0_37, %c0_38] : memref<1x256xf32, #tpu.memory_space<vmem>>, vector<1x256xf32>
    %52 = vector.broadcast %51 : vector<1x256xf32> to vector<8x256xf32>
    %53 = arith.addf %50, %52 : vector<8x256xf32>
    %c0_39 = arith.constant 0 : index
    %c0_40 = arith.constant 0 : index
    %54 = vector.load %arg16[%c0_39, %c0_40] : memref<8x256xf32, #tpu.memory_space<vmem>>, vector<8x256xf32>
    tpu.vector_store %arg16[%c0_39, %c0_40], %53 {strides = array<i32>} : memref<8x256xf32, #tpu.memory_space<vmem>>, vector<8x256xf32>,
    return
  }
  func.func @transform_0(%arg0: i32) -> (i32, i32) {
    %c0_i32 = arith.constant 0 : i32
    %c0_i32_0 = arith.constant 0 : i32
    return %arg0, %c0_i32 : i32, i32
  }
  func.func @transform_1(%arg0: i32) -> (i32, i32) {
    %c0_i32 = arith.constant 0 : i32
    %c0_i32_0 = arith.constant 0 : i32
    return %arg0, %c0_i32 : i32, i32
  }
  func.func @transform_2(%arg0: i32) -> (i32, i32) {
    %c0_i32 = arith.constant 0 : i32
    %c0_i32_0 = arith.constant 0 : i32
    %c0_i32_1 = arith.constant 0 : i32
    return %c0_i32, %c0_i32_0 : i32, i32
  }
  func.func @transform_3(%arg0: i32) -> (i32, i32) {
    %c0_i32 = arith.constant 0 : i32
    %c0_i32_0 = arith.constant 0 : i32
    %c0_i32_1 = arith.constant 0 : i32
    return %c0_i32, %c0_i32_0 : i32, i32
  }
  func.func @transform_4(%arg0: i32) -> (i32, i32) {
    %c0_i32 = arith.constant 0 : i32
    %c0_i32_0 = arith.constant 0 : i32
    %c0_i32_1 = arith.constant 0 : i32
    return %c0_i32, %c0_i32_0 : i32, i32
  }
  func.func @transform_5(%arg0: i32) -> (i32, i32) {
    %c0_i32 = arith.constant 0 : i32
    %c0_i32_0 = arith.constant 0 : i32
    %c0_i32_1 = arith.constant 0 : i32
    return %c0_i32, %c0_i32_0 : i32, i32
  }
  func.func @transform_6(%arg0: i32) -> (i32, i32) {
    %c0_i32 = arith.constant 0 : i32
    %c0_i32_0 = arith.constant 0 : i32
    %c0_i32_1 = arith.constant 0 : i32
    return %c0_i32, %c0_i32_0 : i32, i32
  }
  func.func @transform_7(%arg0: i32) -> (i32, i32) {
    %c0_i32 = arith.constant 0 : i32
    %c0_i32_0 = arith.constant 0 : i32
    %c0_i32_1 = arith.constant 0 : i32
    return %c0_i32, %c0_i32_0 : i32, i32
  }
  func.func @transform_8(%arg0: i32) -> (i32, i32) {
    %c0_i32 = arith.constant 0 : i32
    %c0_i32_0 = arith.constant 0 : i32
    %c0_i32_1 = arith.constant 0 : i32
    return %c0_i32, %c0_i32_0 : i32, i32
  }
  func.func @transform_9(%arg0: i32) -> (i32, i32) {
    %c0_i32 = arith.constant 0 : i32
    %c0_i32_0 = arith.constant 0 : i32
    %c0_i32_1 = arith.constant 0 : i32
    return %c0_i32, %c0_i32_0 : i32, i32
  }
  func.func @transform_10(%arg0: i32) -> (i32, i32) {
    %c0_i32 = arith.constant 0 : i32
    %c0_i32_0 = arith.constant 0 : i32
    %c0_i32_1 = arith.constant 0 : i32
    return %c0_i32, %c0_i32_0 : i32, i32
  }
  func.func @transform_11(%arg0: i32) -> (i32, i32) {
    %c0_i32 = arith.constant 0 : i32
    %c0_i32_0 = arith.constant 0 : i32
    %c0_i32_1 = arith.constant 0 : i32
    return %c0_i32, %c0_i32_0 : i32, i32
  }
  func.func @transform_12(%arg0: i32) -> (i32, i32) {
    %c0_i32 = arith.constant 0 : i32
    %c0_i32_0 = arith.constant 0 : i32
    %c0_i32_1 = arith.constant 0 : i32
    return %c0_i32, %c0_i32_0 : i32, i32
  }
  func.func @transform_13(%arg0: i32) -> (i32, i32) {
    %c0_i32 = arith.constant 0 : i32
    %c0_i32_0 = arith.constant 0 : i32
    %c0_i32_1 = arith.constant 0 : i32
    return %c0_i32, %c0_i32_0 : i32, i32
  }
  func.func @transform_14(%arg0: i32) -> (i32, i32) {
    %c0_i32 = arith.constant 0 : i32
    %c0_i32_0 = arith.constant 0 : i32
    %c0_i32_1 = arith.constant 0 : i32
    return %c0_i32, %c0_i32_0 : i32, i32
  }
  func.func @transform_15(%arg0: i32) -> (i32, i32) {
    %c0_i32 = arith.constant 0 : i32
    %c0_i32_0 = arith.constant 0 : i32
    return %arg0, %c0_i32 : i32, i32
  }
}

</mosaic_0001>

<llo_original>
// kernel: siamese_forward.1
$region0: #{siamese_forward.1}
  #allocation0 [shape = 'u32[]', space=smem, size = 0x4, offset = 0x4, fixed_abs, tag = 'smem constant byte address 0x4 - core index']
  #allocation1 [shape = 'u32[144,128]{1,0:T(1,128)}', space=vmem, size = 0x12000, scoped, tag = 'internal scratch']
  %s0 = inlined_call_operand.vmem [shape: bf16[8,1024], index: 0, kind: input, shape index: {}]
  %s1 = inlined_call_operand.vmem [shape: bf16[8,1024], index: 1, kind: input, shape index: {}]
  %s2 = inlined_call_operand.vmem [shape: bf16[1024,128], index: 2, kind: input, shape index: {}]
  %s3 = inlined_call_operand.vmem [shape: f32[1,128], index: 3, kind: input, shape index: {}]
  %s4 = inlined_call_operand.hbm [shape: bf16[128,1024], index: 4, kind: input, shape index: {}]
  %s5 = inlined_call_operand.hbm [shape: bf16[128,1024], index: 5, kind: input, shape index: {}]
  %s6 = inlined_call_operand.vmem [shape: f32[1,1024], index: 6, kind: input, shape index: {}]
  %s7 = inlined_call_operand.hbm [shape: bf16[1024,512], index: 7, kind: input, shape index: {}]
  %s8 = inlined_call_operand.vmem [shape: f32[1,512], index: 8, kind: input, shape index: {}]
  %s9 = inlined_call_operand.hbm [shape: bf16[512,512], index: 9, kind: input, shape index: {}]
  %s10 = inlined_call_operand.vmem [shape: f32[1,512], index: 10, kind: input, shape index: {}]
  %s11 = inlined_call_operand.hbm [shape: bf16[512,256], index: 11, kind: input, shape index: {}]
  %s12 = inlined_call_operand.vmem [shape: f32[1,256], index: 12, kind: input, shape index: {}]
  %s13 = inlined_call_operand.vmem [shape: f32[1,256], index: 13, kind: input, shape index: {}]
  %s14 = inlined_call_operand.vmem [shape: f32[1,256], index: 14, kind: input, shape index: {}]
  %s15 = inlined_call_operand.vmem [shape: f32[8,256], index: 15, kind: output, shape index: {}]
  %s16 = sld [smem:[#allocation0]]
  $region90: #{siamese_forward.1} parent=0
    _
  %s18 = ssub.s32 1, %s16
  %s19 = scalar_select 0, %s18, %s16
  $region1: #{siamese_forward.1} parent=0
    #allocation2 [shape = 'u8[262144]{0}', space=vmem, size = 0x40000, scoped, tag = 'input window, operand 4, single buffered']
    #allocation3 [shape = 's32[1]{0}', space=sflag, size = 0x4, scoped, tag = 'scoped memory for siamese_forward.1']
    #allocation4 [shape = 'u8[262144]{0}', space=vmem, size = 0x40000, scoped, tag = 'input window, operand 5, single buffered']
    #allocation5 [shape = 's32[1]{0}', space=sflag, size = 0x4, scoped, tag = 'scoped memory for siamese_forward.1']
    #allocation6 [shape = 'u8[1048576]{0}', space=vmem, size = 0x100000, scoped, tag = 'input window, operand 7, single buffered']
    #allocation7 [shape = 'u8[524288]{0}', space=vmem, size = 0x80000, scoped, tag = 'input window, operand 9, single buffered']
    #allocation8 [shape = 's32[1]{0}', space=sflag, size = 0x4, scoped, tag = 'scoped memory for siamese_forward.1']
    #allocation9 [shape = 'u8[262144]{0}', space=vmem, size = 0x40000, scoped, tag = 'input window, operand 11, single buffered']
    %20 = vsyncpa [#allocation3], 0
    %21 = vsyncpa [#allocation5], 0
    %22 = vsyncpa [#allocation8], 0
    // Predicated region
    $region2: #{siamese_forward.1} parent=1 // pred_check
      _
    $region3: #{siamese_forward.1} parent=1 // pred_check_branch
      %24 = sbr.rel (0) target = $region5
    $region4: #{siamese_forward.1} parent=1 // pred_region
      _
    $region5: #{siamese_forward.1} parent=1 // pred_fallthru
      _
    // Predicated region
    $region6: #{siamese_forward.1} parent=1 // pred_check
      _
    $region7: #{siamese_forward.1} parent=1 // pred_check_branch
      %26 = sbr.rel (0) target = $region9
    $region8: #{siamese_forward.1} parent=1 // pred_region
      _
    $region9: #{siamese_forward.1} parent=1 // pred_fallthru
      _
    // Predicated region
    $region10: #{siamese_forward.1} parent=1 // pred_check
      _
    $region11: #{siamese_forward.1} parent=1 // pred_check_branch
      %28 = sbr.rel (0) target = $region13
    $region12: #{siamese_forward.1} parent=1 // pred_region
      _
    $region13: #{siamese_forward.1} parent=1 // pred_fallthru
      _
    // Predicated region
    $region14: #{siamese_forward.1} parent=1 // pred_check
      _
    $region15: #{siamese_forward.1} parent=1 // pred_check_branch
      %30 = sbr.rel (0) target = $region17
    $region16: #{siamese_forward.1} parent=1 // pred_region
      _
    $region17: #{siamese_forward.1} parent=1 // pred_fallthru
      _
    // Predicated region
    $region18: #{siamese_forward.1} parent=1 // pred_check
      _
    $region19: #{siamese_forward.1} parent=1 // pred_check_branch
      %32 = sbr.rel (0) target = $region21
    $region20: #{siamese_forward.1} parent=1 // pred_region
      %s34 = ssub.s32 8192, 8192
      %35 = vsyncadd [#allocation3], %s34
      %s36 = sshll.u32 [#allocation2], 4
      %s37 = int_to_ptr.vmem [resolvable:$true] %s36
      %42 = dma.hbm_to_vmem [thread:$0]  %s4, 8192, %s37, [#allocation3], 512, 512, 32
    $region21: #{siamese_forward.1} parent=1 // pred_fallthru
      _
    // Predicated region
    $region22: #{siamese_forward.1} parent=1 // pred_check
      _
    $region23: #{siamese_forward.1} parent=1 // pred_check_branch
      %44 = sbr.rel (0) target = $region25
    $region24: #{siamese_forward.1} parent=1 // pred_region
      %s46 = ssub.s32 8192, 8192
      %47 = vsyncadd [#allocation5], %s46
      %s48 = sshll.u32 [#allocation4], 4
      %s49 = int_to_ptr.vmem [resolvable:$true] %s48
      %54 = dma.hbm_to_vmem [thread:$0]  %s5, 8192, %s49, [#allocation5], 512, 512, 32
    $region25: #{siamese_forward.1} parent=1 // pred_fallthru
      _
    // Predicated region
    $region26: #{siamese_forward.1} parent=1 // pred_check
      _
    $region27: #{siamese_forward.1} parent=1 // pred_check_branch
      %56 = sbr.rel (0) target = $region29
    $region28: #{siamese_forward.1} parent=1 // pred_region
      _
    $region29: #{siamese_forward.1} parent=1 // pred_fallthru
      _
    // Predicated region
    $region30: #{siamese_forward.1} parent=1 // pred_check
      _
    $region31: #{siamese_forward.1} parent=1 // pred_check_branch
      %58 = sbr.rel (0) target = $region33
    $region32: #{siamese_forward.1} parent=1 // pred_region
      %s60 = ssub.s32 32768, 32768
      %61 = vsyncadd [#allocation5], %s60
      %s62 = sshll.u32 [#allocation6], 4
      %s63 = int_to_ptr.vmem [resolvable:$true] %s62
      %68 = dma.hbm_to_vmem [thread:$0]  %s7, 32768, %s63, [#allocation5], 256, 256, 16
    $region33: #{siamese_forward.1} parent=1 // pred_fallthru
      _
    // Predicated region
    $region34: #{siamese_forward.1} parent=1 // pred_check
      _
    $region35: #{siamese_forward.1} parent=1 // pred_check_branch
      %70 = sbr.rel (0) target = $region37
    $region36: #{siamese_forward.1} parent=1 // pred_region
      _
    $region37: #{siamese_forward.1} parent=1 // pred_fallthru
      _
    // Predicated region
    $region38: #{siamese_forward.1} parent=1 // pred_check
      _
    $region39: #{siamese_forward.1} parent=1 // pred_check_branch
      %72 = sbr.rel (0) target = $region41
    $region40: #{siamese_forward.1} parent=1 // pred_region
      %s74 = ssub.s32 16384, 16384
      %75 = vsyncadd [#allocation8], %s74
      %s76 = sshll.u32 [#allocation7], 4
      %s77 = int_to_ptr.vmem [resolvable:$true] %s76
      %82 = dma.hbm_to_vmem [thread:$0]  %s9, 16384, %s77, [#allocation8], 256, 256, 16
    $region41: #{siamese_forward.1} parent=1 // pred_fallthru
      _
    // Predicated region
    $region42: #{siamese_forward.1} parent=1 // pred_check
      _
    $region43: #{siamese_forward.1} parent=1 // pred_check_branch
      %84 = sbr.rel (0) target = $region45
    $region44: #{siamese_forward.1} parent=1 // pred_region
      _
    $region45: #{siamese_forward.1} parent=1 // pred_fallthru
      _
    // Predicated region
    $region46: #{siamese_forward.1} parent=1 // pred_check
      _
    $region47: #{siamese_forward.1} parent=1 // pred_check_branch
      %86 = sbr.rel (0) target = $region49
    $region48: #{siamese_forward.1} parent=1 // pred_region
      %s88 = ssub.s32 8192, 8192
      %89 = vsyncadd [#allocation8], %s88
      %s90 = sshll.u32 [#allocation9], 4
      %s91 = int_to_ptr.vmem [resolvable:$true] %s90
      %96 = dma.hbm_to_vmem [thread:$0]  %s11, 8192, %s91, [#allocation8], 128, 128, 8
    $region49: #{siamese_forward.1} parent=1 // pred_fallthru
      _
    // Predicated region
    $region50: #{siamese_forward.1} parent=1 // pred_check
      _
    $region51: #{siamese_forward.1} parent=1 // pred_check_branch
      %98 = sbr.rel (0) target = $region53
    $region52: #{siamese_forward.1} parent=1 // pred_region
      _
    $region53: #{siamese_forward.1} parent=1 // pred_fallthru
      _
    // Predicated region
    $region54: #{siamese_forward.1} parent=1 // pred_check
      _
    $region55: #{siamese_forward.1} parent=1 // pred_check_branch
      %100 = sbr.rel (0) target = $region57
    $region56: #{siamese_forward.1} parent=1 // pred_region
      _
    $region57: #{siamese_forward.1} parent=1 // pred_fallthru
      _
    // Predicated region
    $region58: #{siamese_forward.1} parent=1 // pred_check
      _
    $region59: #{siamese_forward.1} parent=1 // pred_check_branch
      %102 = sbr.rel (0) target = $region61
    $region60: #{siamese_forward.1} parent=1 // pred_region
      _
    $region61: #{siamese_forward.1} parent=1 // pred_fallthru
      _
    // Predicated region
    $region62: #{siamese_forward.1} parent=1 // pred_check
      _
    $region63: #{siamese_forward.1} parent=1 // pred_check_branch
      %104 = sbr.rel (0) target = $region65
    $region64: #{siamese_forward.1} parent=1 // pred_region
      %105 = dma.done [#allocation3], 8192
    $region65: #{siamese_forward.1} parent=1 // pred_fallthru
      _
    // Predicated region
    $region66: #{siamese_forward.1} parent=1 // pred_check
      _
    $region67: #{siamese_forward.1} parent=1 // pred_check_branch
      %107 = sbr.rel (0) target = $region69
    $region68: #{siamese_forward.1} parent=1 // pred_region
      %108 = dma.done [#allocation5], 8192
    $region69: #{siamese_forward.1} parent=1 // pred_fallthru
      _
    // Predicated region
    $region70: #{siamese_forward.1} parent=1 // pred_check
      _
    $region71: #{siamese_forward.1} parent=1 // pred_check_branch
      %110 = sbr.rel (0) target = $region73
    $region72: #{siamese_forward.1} parent=1 // pred_region
      %111 = dma.done [#allocation5], 32768
    $region73: #{siamese_forward.1} parent=1 // pred_fallthru
      _
    // Predicated region
    $region74: #{siamese_forward.1} parent=1 // pred_check
      _
    $region75: #{siamese_forward.1} parent=1 // pred_check_branch
      %113 = sbr.rel (0) target = $region77
    $region76: #{siamese_forward.1} parent=1 // pred_region
      %114 = dma.done [#allocation8], 16384
    $region77: #{siamese_forward.1} parent=1 // pred_fallthru
      _
    // Predicated region
    $region78: #{siamese_forward.1} parent=1 // pred_check
      _
    $region79: #{siamese_forward.1} parent=1 // pred_check_branch
      %116 = sbr.rel (0) target = $region81
    $region80: #{siamese_forward.1} parent=1 // pred_region
      %117 = dma.done [#allocation8], 8192
    $region81: #{siamese_forward.1} parent=1 // pred_fallthru
      _
    %v119 = vld [vmem:[%s0] sm:$0xff]
    %v120 = vld [vmem:[%s0 + $0x8] sm:$0xff]
    %v121 = vld [vmem:[%s0 + $0x10] sm:$0xff]
    %v122 = vld [vmem:[%s0 + $0x18] sm:$0xff]
    %v123 = vld [vmem:[%s1] sm:$0xff]
    %v124 = vld [vmem:[%s1 + $0x8] sm:$0xff]
    %v125 = vld [vmem:[%s1 + $0x10] sm:$0xff]
    %v126 = vld [vmem:[%s1 + $0x18] sm:$0xff]
    %v131 = vunpack.c.l.b16 %v119
    %v132 = vunpack.c.h.b16 %v119
    %v133 = vunpack.c.l.b16 %v120
    %v134 = vunpack.c.h.b16 %v120
    %v135 = vunpack.c.l.b16 %v121
    %v136 = vunpack.c.h.b16 %v121
    %v137 = vunpack.c.l.b16 %v122
    %v138 = vunpack.c.h.b16 %v122
    %v139 = vpack.c.b16 %v131, %v131
    %v140 = vpack.c.b16 %v132, %v132
    %v141 = vpack.c.b16 %v133, %v133
    %v142 = vpack.c.b16 %v134, %v134
    %v143 = vpack.c.b16 %v135, %v135
    %v144 = vpack.c.b16 %v136, %v136
    %v145 = vpack.c.b16 %v137, %v137
    %v146 = vpack.c.b16 %v138, %v138
    %v151 = vunpack.c.l.b16 %v123
    %v152 = vunpack.c.h.b16 %v123
    %v153 = vunpack.c.l.b16 %v124
    %v154 = vunpack.c.h.b16 %v124
    %v155 = vunpack.c.l.b16 %v125
    %v156 = vunpack.c.h.b16 %v125
    %v157 = vunpack.c.l.b16 %v126
    %v158 = vunpack.c.h.b16 %v126
    %v159 = vpack.c.b16 %v151, %v151
    %v160 = vpack.c.b16 %v152, %v152
    %v161 = vpack.c.b16 %v153, %v153
    %v162 = vpack.c.b16 %v154, %v154
    %v163 = vpack.c.b16 %v155, %v155
    %v164 = vpack.c.b16 %v156, %v156
    %v165 = vpack.c.b16 %v157, %v157
    %v166 = vpack.c.b16 %v158, %v158
    %vm167 = vcmask 1043456
    %v170 = vsel %vm167, %v139, %v159
    %v174 = vsel %vm167, %v140, %v160
    %v178 = vsel %vm167, %v141, %v161
    %v182 = vsel %vm167, %v142, %v162
    %v186 = vsel %vm167, %v143, %v163
    %v190 = vsel %vm167, %v144, %v164
    %v194 = vsel %vm167, %v145, %v165
    %v198 = vsel %vm167, %v146, %v166
    %v200 = vld [vmem:[%s2] sm:$0xf]
    %v201 = vld [vmem:[%s2 + $0x4] sm:$0xf]
    %v202 = vld [vmem:[%s2 + $0x8] sm:$0xf]
    %v203 = vld [vmem:[%s2 + $0xc] sm:$0xf]
    %v204 = vld [vmem:[%s2 + $0x10] sm:$0xf]
    %v205 = vld [vmem:[%s2 + $0x14] sm:$0xf]
    %v206 = vld [vmem:[%s2 + $0x18] sm:$0xf]
    %v207 = vld [vmem:[%s2 + $0x1c] sm:$0xf]
    %v208 = vld [vmem:[%s2 + $0x20] sm:$0xf]
    %v209 = vld [vmem:[%s2 + $0x24] sm:$0xf]
    %v210 = vld [vmem:[%s2 + $0x28] sm:$0xf]
    %v211 = vld [vmem:[%s2 + $0x2c] sm:$0xf]
    %v212 = vld [vmem:[%s2 + $0x30] sm:$0xf]
    %v213 = vld [vmem:[%s2 + $0x34] sm:$0xf]
    %v214 = vld [vmem:[%s2 + $0x38] sm:$0xf]
    %v215 = vld [vmem:[%s2 + $0x3c] sm:$0xf]
    %v216 = vld [vmem:[%s2 + $0x40] sm:$0xf]
    %v217 = vld [vmem:[%s2 + $0x44] sm:$0xf]
    %v218 = vld [vmem:[%s2 + $0x48] sm:$0xf]
    %v219 = vld [vmem:[%s2 + $0x4c] sm:$0xf]
    %v220 = vld [vmem:[%s2 + $0x50] sm:$0xf]
    %v221 = vld [vmem:[%s2 + $0x54] sm:$0xf]
    %v222 = vld [vmem:[%s2 + $0x58] sm:$0xf]
    %v223 = vld [vmem:[%s2 + $0x5c] sm:$0xf]
    %v224 = vld [vmem:[%s2 + $0x60] sm:$0xf]
    %v225 = vld [vmem:[%s2 + $0x64] sm:$0xf]
    %v226 = vld [vmem:[%s2 + $0x68] sm:$0xf]
    %v227 = vld [vmem:[%s2 + $0x6c] sm:$0xf]
    %v228 = vld [vmem:[%s2 + $0x70] sm:$0xf]
    %v229 = vld [vmem:[%s2 + $0x74] sm:$0xf]
    %v230 = vld [vmem:[%s2 + $0x78] sm:$0xf]
    %v231 = vld [vmem:[%s2 + $0x7c] sm:$0xf]
    %v232 = vld [vmem:[%s2 + $0x80] sm:$0xf]
    %v233 = vld [vmem:[%s2 + $0x84] sm:$0xf]
    %v234 = vld [vmem:[%s2 + $0x88] sm:$0xf]
    %v235 = vld [vmem:[%s2 + $0x8c] sm:$0xf]
    %v236 = vld [vmem:[%s2 + $0x90] sm:$0xf]
    %v237 = vld [vmem:[%s2 + $0x94] sm:$0xf]
    %v238 = vld [vmem:[%s2 + $0x98] sm:$0xf]
    %v239 = vld [vmem:[%s2 + $0x9c] sm:$0xf]
    %v240 = vld [vmem:[%s2 + $0xa0] sm:$0xf]
    %v241 = vld [vmem:[%s2 + $0xa4] sm:$0xf]
    %v242 = vld [vmem:[%s2 + $0xa8] sm:$0xf]
    %v243 = vld [vmem:[%s2 + $0xac] sm:$0xf]
    %v244 = vld [vmem:[%s2 + $0xb0] sm:$0xf]
    %v245 = vld [vmem:[%s2 + $0xb4] sm:$0xf]
    %v246 = vld [vmem:[%s2 + $0xb8] sm:$0xf]
    %v247 = vld [vmem:[%s2 + $0xbc] sm:$0xf]
    %v248 = vld [vmem:[%s2 + $0xc0] sm:$0xf]
    %v249 = vld [vmem:[%s2 + $0xc4] sm:$0xf]
    %v250 = vld [vmem:[%s2 + $0xc8] sm:$0xf]
    %v251 = vld [vmem:[%s2 + $0xcc] sm:$0xf]
    %v252 = vld [vmem:[%s2 + $0xd0] sm:$0xf]
    %v253 = vld [vmem:[%s2 + $0xd4] sm:$0xf]
    %v254 = vld [vmem:[%s2 + $0xd8] sm:$0xf]
    %v255 = vld [vmem:[%s2 + $0xdc] sm:$0xf]
    %v256 = vld [vmem:[%s2 + $0xe0] sm:$0xf]
    %v257 = vld [vmem:[%s2 + $0xe4] sm:$0xf]
    %v258 = vld [vmem:[%s2 + $0xe8] sm:$0xf]
    %v259 = vld [vmem:[%s2 + $0xec] sm:$0xf]
    %v260 = vld [vmem:[%s2 + $0xf0] sm:$0xf]
    %v261 = vld [vmem:[%s2 + $0xf4] sm:$0xf]
    %v262 = vld [vmem:[%s2 + $0xf8] sm:$0xf]
    %v263 = vld [vmem:[%s2 + $0xfc] sm:$0xf]
    %v264 = vld [vmem:[%s2 + $0x100] sm:$0xf]
    %v265 = vld [vmem:[%s2 + $0x104] sm:$0xf]
    %v266 = vld [vmem:[%s2 + $0x108] sm:$0xf]
    %v267 = vld [vmem:[%s2 + $0x10c] sm:$0xf]
    %v268 = vld [vmem:[%s2 + $0x110] sm:$0xf]
    %v269 = vld [vmem:[%s2 + $0x114] sm:$0xf]
    %v270 = vld [vmem:[%s2 + $0x118] sm:$0xf]
    %v271 = vld [vmem:[%s2 + $0x11c] sm:$0xf]
    %v272 = vld [vmem:[%s2 + $0x120] sm:$0xf]
    %v273 = vld [vmem:[%s2 + $0x124] sm:$0xf]
    %v274 = vld [vmem:[%s2 + $0x128] sm:$0xf]
    %v275 = vld [vmem:[%s2 + $0x12c] sm:$0xf]
    %v276 = vld [vmem:[%s2 + $0x130] sm:$0xf]
    %v277 = vld [vmem:[%s2 + $0x134] sm:$0xf]
    %v278 = vld [vmem:[%s2 + $0x138] sm:$0xf]
    %v279 = vld [vmem:[%s2 + $0x13c] sm:$0xf]
    %v280 = vld [vmem:[%s2 + $0x140] sm:$0xf]
    %v281 = vld [vmem:[%s2 + $0x144] sm:$0xf]
    %v282 = vld [vmem:[%s2 + $0x148] sm:$0xf]
    %v283 = vld [vmem:[%s2 + $0x14c] sm:$0xf]
    %v284 = vld [vmem:[%s2 + $0x150] sm:$0xf]
    %v285 = vld [vmem:[%s2 + $0x154] sm:$0xf]
    %v286 = vld [vmem:[%s2 + $0x158] sm:$0xf]
    %v287 = vld [vmem:[%s2 + $0x15c] sm:$0xf]
    %v288 = vld [vmem:[%s2 + $0x160] sm:$0xf]
    %v289 = vld [vmem:[%s2 + $0x164] sm:$0xf]
    %v290 = vld [vmem:[%s2 + $0x168] sm:$0xf]
    %v291 = vld [vmem:[%s2 + $0x16c] sm:$0xf]
    %v292 = vld [vmem:[%s2 + $0x170] sm:$0xf]
    %v293 = vld [vmem:[%s2 + $0x174] sm:$0xf]
    %v294 = vld [vmem:[%s2 + $0x178] sm:$0xf]
    %v295 = vld [vmem:[%s2 + $0x17c] sm:$0xf]
    %v296 = vld [vmem:[%s2 + $0x180] sm:$0xf]
    %v297 = vld [vmem:[%s2 + $0x184] sm:$0xf]
    %v298 = vld [vmem:[%s2 + $0x188] sm:$0xf]
    %v299 = vld [vmem:[%s2 + $0x18c] sm:$0xf]
    %v300 = vld [vmem:[%s2 + $0x190] sm:$0xf]
    %v301 = vld [vmem:[%s2 + $0x194] sm:$0xf]
    %v302 = vld [vmem:[%s2 + $0x198] sm:$0xf]
    %v303 = vld [vmem:[%s2 + $0x19c] sm:$0xf]
    %v304 = vld [vmem:[%s2 + $0x1a0] sm:$0xf]
    %v305 = vld [vmem:[%s2 + $0x1a4] sm:$0xf]
    %v306 = vld [vmem:[%s2 + $0x1a8] sm:$0xf]
    %v307 = vld [vmem:[%s2 + $0x1ac] sm:$0xf]
    %v308 = vld [vmem:[%s2 + $0x1b0] sm:$0xf]
    %v309 = vld [vmem:[%s2 + $0x1b4] sm:$0xf]
    %v310 = vld [vmem:[%s2 + $0x1b8] sm:$0xf]
    %v311 = vld [vmem:[%s2 + $0x1bc] sm:$0xf]
    %v312 = vld [vmem:[%s2 + $0x1c0] sm:$0xf]
    %v313 = vld [vmem:[%s2 + $0x1c4] sm:$0xf]
    %v314 = vld [vmem:[%s2 + $0x1c8] sm:$0xf]
    %v315 = vld [vmem:[%s2 + $0x1cc] sm:$0xf]
    %v316 = vld [vmem:[%s2 + $0x1d0] sm:$0xf]
    %v317 = vld [vmem:[%s2 + $0x1d4] sm:$0xf]
    %v318 = vld [vmem:[%s2 + $0x1d8] sm:$0xf]
    %v319 = vld [vmem:[%s2 + $0x1dc] sm:$0xf]
    %v320 = vld [vmem:[%s2 + $0x1e0] sm:$0xf]
    %v321 = vld [vmem:[%s2 + $0x1e4] sm:$0xf]
    %v322 = vld [vmem:[%s2 + $0x1e8] sm:$0xf]
    %v323 = vld [vmem:[%s2 + $0x1ec] sm:$0xf]
    %v324 = vld [vmem:[%s2 + $0x1f0] sm:$0xf]
    %v325 = vld [vmem:[%s2 + $0x1f4] sm:$0xf]
    %v326 = vld [vmem:[%s2 + $0x1f8] sm:$0xf]
    %v327 = vld [vmem:[%s2 + $0x1fc] sm:$0xf]
    %v328 = vld [vmem:[%s3] sm:$0x1]
    %v330 = vlaneseq
    %v331 = vshrl.u32 %v330, 7
    %v332 = vsub.s32 0, %v331
    %v333 = vrot.slane %v328, %v332
    %v463 = vunpack.c.l.b16 %v200
    %v464 = vunpack.c.l.b16 %v201
    %v465 = vunpack.c.l.b16 %v202
    %v466 = vunpack.c.l.b16 %v203
    %v467 = vunpack.c.l.b16 %v204
    %v468 = vunpack.c.l.b16 %v205
    %v469 = vunpack.c.l.b16 %v206
    %v470 = vunpack.c.l.b16 %v207
    %v471 = vunpack.c.l.b16 %v208
    %v472 = vunpack.c.l.b16 %v209
    %v473 = vunpack.c.l.b16 %v210
    %v474 = vunpack.c.l.b16 %v211
    %v475 = vunpack.c.l.b16 %v212
    %v476 = vunpack.c.l.b16 %v213
    %v477 = vunpack.c.l.b16 %v214
    %v478 = vunpack.c.l.b16 %v215
    %v479 = vunpack.c.l.b16 %v216
    %v480 = vunpack.c.l.b16 %v217
    %v481 = vunpack.c.l.b16 %v218
    %v482 = vunpack.c.l.b16 %v219
    %v483 = vunpack.c.l.b16 %v220
    %v484 = vunpack.c.l.b16 %v221
    %v485 = vunpack.c.l.b16 %v222
    %v486 = vunpack.c.l.b16 %v223
    %v487 = vunpack.c.l.b16 %v224
    %v488 = vunpack.c.l.b16 %v225
    %v489 = vunpack.c.l.b16 %v226
    %v490 = vunpack.c.l.b16 %v227
    %v491 = vunpack.c.l.b16 %v228
    %v492 = vunpack.c.l.b16 %v229
    %v493 = vunpack.c.l.b16 %v230
    %v494 = vunpack.c.l.b16 %v231
    %v495 = vunpack.c.l.b16 %v232
    %v496 = vunpack.c.l.b16 %v233
    %v497 = vunpack.c.l.b16 %v234
    %v498 = vunpack.c.l.b16 %v235
    %v499 = vunpack.c.l.b16 %v236
    %v500 = vunpack.c.l.b16 %v237
    %v501 = vunpack.c.l.b16 %v238
    %v502 = vunpack.c.l.b16 %v239
    %v503 = vunpack.c.l.b16 %v240
    %v504 = vunpack.c.l.b16 %v241
    %v505 = vunpack.c.l.b16 %v242
    %v506 = vunpack.c.l.b16 %v243
    %v507 = vunpack.c.l.b16 %v244
    %v508 = vunpack.c.l.b16 %v245
    %v509 = vunpack.c.l.b16 %v246
    %v510 = vunpack.c.l.b16 %v247
    %v511 = vunpack.c.l.b16 %v248
    %v512 = vunpack.c.l.b16 %v249
    %v513 = vunpack.c.l.b16 %v250
    %v514 = vunpack.c.l.b16 %v251
    %v515 = vunpack.c.l.b16 %v252
    %v516 = vunpack.c.l.b16 %v253
    %v517 = vunpack.c.l.b16 %v254
    %v518 = vunpack.c.l.b16 %v255
    %v519 = vunpack.c.l.b16 %v256
    %v520 = vunpack.c.l.b16 %v257
    %v521 = vunpack.c.l.b16 %v258
    %v522 = vunpack.c.l.b16 %v259
    %v523 = vunpack.c.l.b16 %v260
    %v524 = vunpack.c.l.b16 %v261
    %v525 = vunpack.c.l.b16 %v262
    %v526 = vunpack.c.l.b16 %v263
    %v527 = vunpack.c.l.b16 %v264
    %v528 = vunpack.c.l.b16 %v265
    %v529 = vunpack.c.l.b16 %v266
    %v530 = vunpack.c.l.b16 %v267
    %v531 = vunpack.c.l.b16 %v268
    %v532 = vunpack.c.l.b16 %v269
    %v533 = vunpack.c.l.b16 %v270
    %v534 = vunpack.c.l.b16 %v271
    %v535 = vunpack.c.l.b16 %v272
    %v536 = vunpack.c.l.b16 %v273
    %v537 = vunpack.c.l.b16 %v274
    %v538 = vunpack.c.l.b16 %v275
    %v539 = vunpack.c.l.b16 %v276
    %v540 = vunpack.c.l.b16 %v277
    %v541 = vunpack.c.l.b16 %v278
    %v542 = vunpack.c.l.b16 %v279
    %v543 = vunpack.c.l.b16 %v280
    %v544 = vunpack.c.l.b16 %v281
    %v545 = vunpack.c.l.b16 %v282
    %v546 = vunpack.c.l.b16 %v283
    %v547 = vunpack.c.l.b16 %v284
    %v548 = vunpack.c.l.b16 %v285
    %v549 = vunpack.c.l.b16 %v286
    %v550 = vunpack.c.l.b16 %v287
    %v551 = vunpack.c.l.b16 %v288
    %v552 = vunpack.c.l.b16 %v289
    %v553 = vunpack.c.l.b16 %v290
    %v554 = vunpack.c.l.b16 %v291
    %v555 = vunpack.c.l.b16 %v292
    %v556 = vunpack.c.l.b16 %v293
    %v557 = vunpack.c.l.b16 %v294
    %v558 = vunpack.c.l.b16 %v295
    %v559 = vunpack.c.l.b16 %v296
    %v560 = vunpack.c.l.b16 %v297
    %v561 = vunpack.c.l.b16 %v298
    %v562 = vunpack.c.l.b16 %v299
    %v563 = vunpack.c.l.b16 %v300
    %v564 = vunpack.c.l.b16 %v301
    %v565 = vunpack.c.l.b16 %v302
    %v566 = vunpack.c.l.b16 %v303
    %v567 = vunpack.c.l.b16 %v304
    %v568 = vunpack.c.l.b16 %v305
    %v569 = vunpack.c.l.b16 %v306
    %v570 = vunpack.c.l.b16 %v307
    %v571 = vunpack.c.l.b16 %v308
    %v572 = vunpack.c.l.b16 %v309
    %v573 = vunpack.c.l.b16 %v310
    %v574 = vunpack.c.l.b16 %v311
    %v575 = vunpack.c.l.b16 %v312
    %v576 = vunpack.c.l.b16 %v313
    %v577 = vunpack.c.l.b16 %v314
    %v578 = vunpack.c.l.b16 %v315
    %v579 = vunpack.c.l.b16 %v316
    %v580 = vunpack.c.l.b16 %v317
    %v581 = vunpack.c.l.b16 %v318
    %v582 = vunpack.c.l.b16 %v319
    %v583 = vunpack.c.l.b16 %v320
    %v584 = vunpack.c.l.b16 %v321
    %v585 = vunpack.c.l.b16 %v322
    %v586 = vunpack.c.l.b16 %v323
    %v587 = vunpack.c.l.b16 %v324
    %v588 = vunpack.c.l.b16 %v325
    %v589 = vunpack.c.l.b16 %v326
    %v590 = vunpack.c.l.b16 %v327
    %v591 = vpack.c.b16 %v464, %v463
    %v592 = vpack.c.b16 %v466, %v465
    %v593 = vpack.c.b16 %v468, %v467
    %v594 = vpack.c.b16 %v470, %v469
    %v595 = vpack.c.b16 %v472, %v471
    %v596 = vpack.c.b16 %v474, %v473
    %v597 = vpack.c.b16 %v476, %v475
    %v598 = vpack.c.b16 %v478, %v477
    %v599 = vpack.c.b16 %v480, %v479
    %v600 = vpack.c.b16 %v482, %v481
    %v601 = vpack.c.b16 %v484, %v483
    %v602 = vpack.c.b16 %v486, %v485
    %v603 = vpack.c.b16 %v488, %v487
    %v604 = vpack.c.b16 %v490, %v489
    %v605 = vpack.c.b16 %v492, %v491
    %v606 = vpack.c.b16 %v494, %v493
    %v607 = vpack.c.b16 %v496, %v495
    %v608 = vpack.c.b16 %v498, %v497
    %v609 = vpack.c.b16 %v500, %v499
    %v610 = vpack.c.b16 %v502, %v501
    %v611 = vpack.c.b16 %v504, %v503
    %v612 = vpack.c.b16 %v506, %v505
    %v613 = vpack.c.b16 %v508, %v507
    %v614 = vpack.c.b16 %v510, %v509
    %v615 = vpack.c.b16 %v512, %v511
    %v616 = vpack.c.b16 %v514, %v513
    %v617 = vpack.c.b16 %v516, %v515
    %v618 = vpack.c.b16 %v518, %v517
    %v619 = vpack.c.b16 %v520, %v519
    %v620 = vpack.c.b16 %v522, %v521
    %v621 = vpack.c.b16 %v524, %v523
    %v622 = vpack.c.b16 %v526, %v525
    %v623 = vpack.c.b16 %v528, %v527
    %v624 = vpack.c.b16 %v530, %v529
    %v625 = vpack.c.b16 %v532, %v531
    %v626 = vpack.c.b16 %v534, %v533
    %v627 = vpack.c.b16 %v536, %v535
    %v628 = vpack.c.b16 %v538, %v537
    %v629 = vpack.c.b16 %v540, %v539
    %v630 = vpack.c.b16 %v542, %v541
    %v631 = vpack.c.b16 %v544, %v543
    %v632 = vpack.c.b16 %v546, %v545
    %v633 = vpack.c.b16 %v548, %v547
    %v634 = vpack.c.b16 %v550, %v549
    %v635 = vpack.c.b16 %v552, %v551
    %v636 = vpack.c.b16 %v554, %v553
    %v637 = vpack.c.b16 %v556, %v555
    %v638 = vpack.c.b16 %v558, %v557
    %v639 = vpack.c.b16 %v560, %v559
    %v640 = vpack.c.b16 %v562, %v561
    %v641 = vpack.c.b16 %v564, %v563
    %v642 = vpack.c.b16 %v566, %v565
    %v643 = vpack.c.b16 %v568, %v567
    %v644 = vpack.c.b16 %v570, %v569
    %v645 = vpack.c.b16 %v572, %v571
    %v646 = vpack.c.b16 %v574, %v573
    %v647 = vpack.c.b16 %v576, %v575
    %v648 = vpack.c.b16 %v578, %v577
    %v649 = vpack.c.b16 %v580, %v579
    %v650 = vpack.c.b16 %v582, %v581
    %v651 = vpack.c.b16 %v584, %v583
    %v652 = vpack.c.b16 %v586, %v585
    %v653 = vpack.c.b16 %v588, %v587
    %v654 = vpack.c.b16 %v590, %v589
    %719 = vmatprep.subr.bf16.mxu0 0
    %720 = vmatpush1.bf16.msra.mxu0 %v598
    %721 = vmatprep.subr.bf16.mxu0 0
    %722 = vmatpush1.bf16.msra.mxu0 %v597
    %723 = vmatprep.subr.bf16.mxu0 0
    %724 = vmatpush1.bf16.msra.mxu0 %v596
    %725 = vmatprep.subr.bf16.mxu0 0
    %726 = vmatpush1.bf16.msra.mxu0 %v595
    %727 = vmatprep.subr.bf16.mxu0 0
    %728 = vmatpush1.bf16.msra.mxu0 %v594
    %729 = vmatprep.subr.bf16.mxu0 0
    %730 = vmatpush1.bf16.msra.mxu0 %v593
    %731 = vmatprep.subr.bf16.mxu0 0
    %732 = vmatpush1.bf16.msra.mxu0 %v592
    %733 = vmatprep.subr.bf16.mxu0 0
    %734 = vmatpush1.bf16.msra.mxu0 %v591
    %735 = vmatprep.subr.bf16.mxu0 0
    %736 = vmatpush2.bf16.msra.mxu0 %v606
    %737 = vmatprep.subr.bf16.mxu0 0
    %738 = vmatpush2.bf16.msra.mxu0 %v605
    %739 = vmatprep.subr.bf16.mxu0 0
    %740 = vmatpush2.bf16.msra.mxu0 %v604
    %741 = vmatprep.subr.bf16.mxu0 0
    %742 = vmatpush2.bf16.msra.mxu0 %v603
    %743 = vmatprep.subr.bf16.mxu0 0
    %744 = vmatpush2.bf16.msra.mxu0 %v602
    %745 = vmatprep.subr.bf16.mxu0 0
    %746 = vmatpush2.bf16.msra.mxu0 %v601
    %747 = vmatprep.subr.bf16.mxu0 0
    %748 = vmatpush2.bf16.msra.mxu0 %v600
    %749 = vmatprep.subr.bf16.mxu0 0
    %750 = vmatpush2.bf16.msra.mxu0 %v599
    %751 = vmatprep.mubr.bf16.mxu0 %v174
    %752 = vmatmul.mubr.bf16.gmra.mxu0 %v170
    %v753 = vpop.f32.mrf.mxu0
    %v754 = vadd.f32 %v333, %v753
    %v755 = vpop.f32.mrf.mxu0
    %v756 = vpop.f32.mrf.mxu0
    %v757 = vadd.f32 %v333, %v756
    %v758 = vpop.f32.mrf.mxu0
    %759 = vdwg.mxu0
    %760 = vmatprep.subr.bf16.mxu0 0
    %761 = vmatpush1.bf16.msra.mxu0 %v614
    %762 = vmatprep.subr.bf16.mxu0 0
    %763 = vmatpush1.bf16.msra.mxu0 %v613
    %764 = vmatprep.subr.bf16.mxu0 0
    %765 = vmatpush1.bf16.msra.mxu0 %v612
    %766 = vmatprep.subr.bf16.mxu0 0
    %767 = vmatpush1.bf16.msra.mxu0 %v611
    %768 = vmatprep.subr.bf16.mxu0 0
    %769 = vmatpush1.bf16.msra.mxu0 %v610
    %770 = vmatprep.subr.bf16.mxu0 0
    %771 = vmatpush1.bf16.msra.mxu0 %v609
    %772 = vmatprep.subr.bf16.mxu0 0
    %773 = vmatpush1.bf16.msra.mxu0 %v608
    %774 = vmatprep.subr.bf16.mxu0 0
    %775 = vmatpush1.bf16.msra.mxu0 %v607
    %776 = vmatprep.subr.bf16.mxu0 0
    %777 = vmatpush2.bf16.msra.mxu0 %v622
    %778 = vmatprep.subr.bf16.mxu0 0
    %779 = vmatpush2.bf16.msra.mxu0 %v621
    %780 = vmatprep.subr.bf16.mxu0 0
    %781 = vmatpush2.bf16.msra.mxu0 %v620
    %782 = vmatprep.subr.bf16.mxu0 0
    %783 = vmatpush2.bf16.msra.mxu0 %v619
    %784 = vmatprep.subr.bf16.mxu0 0
    %785 = vmatpush2.bf16.msra.mxu0 %v618
    %786 = vmatprep.subr.bf16.mxu0 0
    %787 = vmatpush2.bf16.msra.mxu0 %v617
    %788 = vmatprep.subr.bf16.mxu0 0
    %789 = vmatpush2.bf16.msra.mxu0 %v616
    %790 = vmatprep.subr.bf16.mxu0 0
    %791 = vmatpush2.bf16.msra.mxu0 %v615
    %792 = vmatprep.mubr.bf16.mxu0 %v182
    %793 = vmatmul.mubr.bf16.gmra.mxu0 %v178
    %v794 = vpop.f32.mrf.mxu0
    %v795 = vadd.f32 %v754, %v794
    %v796 = vpop.f32.mrf.mxu0
    %v797 = vpop.f32.mrf.mxu0
    %v798 = vadd.f32 %v757, %v797
    %v799 = vpop.f32.mrf.mxu0
    %800 = vdwg.mxu0
    %801 = vmatprep.subr.bf16.mxu0 0
    %802 = vmatpush1.bf16.msra.mxu0 %v630
    %803 = vmatprep.subr.bf16.mxu0 0
    %804 = vmatpush1.bf16.msra.mxu0 %v629
    %805 = vmatprep.subr.bf16.mxu0 0
    %806 = vmatpush1.bf16.msra.mxu0 %v628
    %807 = vmatprep.subr.bf16.mxu0 0
    %808 = vmatpush1.bf16.msra.mxu0 %v627
    %809 = vmatprep.subr.bf16.mxu0 0
    %810 = vmatpush1.bf16.msra.mxu0 %v626
    %811 = vmatprep.subr.bf16.mxu0 0
    %812 = vmatpush1.bf16.msra.mxu0 %v625
    %813 = vmatprep.subr.bf16.mxu0 0
    %814 = vmatpush1.bf16.msra.mxu0 %v624
    %815 = vmatprep.subr.bf16.mxu0 0
    %816 = vmatpush1.bf16.msra.mxu0 %v623
    %817 = vmatprep.subr.bf16.mxu0 0
    %818 = vmatpush2.bf16.msra.mxu0 %v638
    %819 = vmatprep.subr.bf16.mxu0 0
    %820 = vmatpush2.bf16.msra.mxu0 %v637
    %821 = vmatprep.subr.bf16.mxu0 0
    %822 = vmatpush2.bf16.msra.mxu0 %v636
    %823 = vmatprep.subr.bf16.mxu0 0
    %824 = vmatpush2.bf16.msra.mxu0 %v635
    %825 = vmatprep.subr.bf16.mxu0 0
    %826 = vmatpush2.bf16.msra.mxu0 %v634
    %827 = vmatprep.subr.bf16.mxu0 0
    %828 = vmatpush2.bf16.msra.mxu0 %v633
    %829 = vmatprep.subr.bf16.mxu0 0
    %830 = vmatpush2.bf16.msra.mxu0 %v632
    %831 = vmatprep.subr.bf16.mxu0 0
    %832 = vmatpush2.bf16.msra.mxu0 %v631
    %833 = vmatprep.mubr.bf16.mxu0 %v190
    %834 = vmatmul.mubr.bf16.gmra.mxu0 %v186
    %v835 = vpop.f32.mrf.mxu0
    %v836 = vadd.f32 %v795, %v835
    %v837 = vpop.f32.mrf.mxu0
    %v838 = vpop.f32.mrf.mxu0
    %v839 = vadd.f32 %v798, %v838
    %v840 = vpop.f32.mrf.mxu0
    %841 = vdwg.mxu0
    %842 = vmatprep.subr.bf16.mxu0 0
    %843 = vmatpush1.bf16.msra.mxu0 %v646
    %844 = vmatprep.subr.bf16.mxu0 0
    %845 = vmatpush1.bf16.msra.mxu0 %v645
    %846 = vmatprep.subr.bf16.mxu0 0
    %847 = vmatpush1.bf16.msra.mxu0 %v644
    %848 = vmatprep.subr.bf16.mxu0 0
    %849 = vmatpush1.bf16.msra.mxu0 %v643
    %850 = vmatprep.subr.bf16.mxu0 0
    %851 = vmatpush1.bf16.msra.mxu0 %v642
    %852 = vmatprep.subr.bf16.mxu0 0
    %853 = vmatpush1.bf16.msra.mxu0 %v641
    %854 = vmatprep.subr.bf16.mxu0 0
    %855 = vmatpush1.bf16.msra.mxu0 %v640
    %856 = vmatprep.subr.bf16.mxu0 0
    %857 = vmatpush1.bf16.msra.mxu0 %v639
    %858 = vmatprep.subr.bf16.mxu0 0
    %859 = vmatpush2.bf16.msra.mxu0 %v654
    %860 = vmatprep.subr.bf16.mxu0 0
    %861 = vmatpush2.bf16.msra.mxu0 %v653
    %862 = vmatprep.subr.bf16.mxu0 0
    %863 = vmatpush2.bf16.msra.mxu0 %v652
    %864 = vmatprep.subr.bf16.mxu0 0
    %865 = vmatpush2.bf16.msra.mxu0 %v651
    %866 = vmatprep.subr.bf16.mxu0 0
    %867 = vmatpush2.bf16.msra.mxu0 %v650
    %868 = vmatprep.subr.bf16.mxu0 0
    %869 = vmatpush2.bf16.msra.mxu0 %v649
    %870 = vmatprep.subr.bf16.mxu0 0
    %871 = vmatpush2.bf16.msra.mxu0 %v648
    %872 = vmatprep.subr.bf16.mxu0 0
    %873 = vmatpush2.bf16.msra.mxu0 %v647
    %874 = vmatprep.mubr.bf16.mxu0 %v198
    %875 = vmatmul.mubr.bf16.gmra.mxu0 %v194
    %v876 = vpop.f32.mrf.mxu0
    %v877 = vadd.f32 %v836, %v876
    %v878 = vpop.f32.mrf.mxu0
    %v879 = vpop.f32.mrf.mxu0
    %v880 = vadd.f32 %v839, %v879
    %v881 = vpop.f32.mrf.mxu0
    %882 = vdwg.mxu0
    %v883 = vmax.f32 %v877, 0.0
    %v884 = vmax.f32 %v880, 0.0
    %v885 = vpack.c.bf16 %v883, %v883
    %v886 = vpack.c.bf16 %v884, %v884
    %v887 = vld [vmem:[#allocation2] sm:$0xff]
    %v888 = vld [vmem:[#allocation2 + $0x8] sm:$0xff]
    %v889 = vld [vmem:[#allocation2 + $0x10] sm:$0xff]
    %v890 = vld [vmem:[#allocation2 + $0x18] sm:$0xff]
    %v891 = vld [vmem:[#allocation2 + $0x20] sm:$0xff]
    %v892 = vld [vmem:[#allocation2 + $0x28] sm:$0xff]
    %v893 = vld [vmem:[#allocation2 + $0x30] sm:$0xff]
    %v894 = vld [vmem:[#allocation2 + $0x38] sm:$0xff]
    %v895 = vld [vmem:[#allocation2 + $0x40] sm:$0xff]
    %v896 = vld [vmem:[#allocation2 + $0x48] sm:$0xff]
    %v897 = vld [vmem:[#allocation2 + $0x50] sm:$0xff]
    %v898 = vld [vmem:[#allocation2 + $0x58] sm:$0xff]
    %v899 = vld [vmem:[#allocation2 + $0x60] sm:$0xff]
    %v900 = vld [vmem:[#allocation2 + $0x68] sm:$0xff]
    %v901 = vld [vmem:[#allocation2 + $0x70] sm:$0xff]
    %v902 = vld [vmem:[#allocation2 + $0x78] sm:$0xff]
    %v903 = vld [vmem:[#allocation2 + $0x80] sm:$0xff]
    %v904 = vld [vmem:[#allocation2 + $0x88] sm:$0xff]
    %v905 = vld [vmem:[#allocation2 + $0x90] sm:$0xff]
    %v906 = vld [vmem:[#allocation2 + $0x98] sm:$0xff]
    %v907 = vld [vmem:[#allocation2 + $0xa0] sm:$0xff]
    %v908 = vld [vmem:[#allocation2 + $0xa8] sm:$0xff]
    %v909 = vld [vmem:[#allocation2 + $0xb0] sm:$0xff]
    %v910 = vld [vmem:[#allocation2 + $0xb8] sm:$0xff]
    %v911 = vld [vmem:[#allocation2 + $0xc0] sm:$0xff]
    %v912 = vld [vmem:[#allocation2 + $0xc8] sm:$0xff]
    %v913 = vld [vmem:[#allocation2 + $0xd0] sm:$0xff]
    %v914 = vld [vmem:[#allocation2 + $0xd8] sm:$0xff]
    %v915 = vld [vmem:[#allocation2 + $0xe0] sm:$0xff]
    %v916 = vld [vmem:[#allocation2 + $0xe8] sm:$0xff]
    %v917 = vld [vmem:[#allocation2 + $0xf0] sm:$0xff]
    %v918 = vld [vmem:[#allocation2 + $0xf8] sm:$0xff]
    %v919 = vld [vmem:[#allocation2 + $0x100] sm:$0xff]
    %v920 = vld [vmem:[#allocation2 + $0x108] sm:$0xff]
    %v921 = vld [vmem:[#allocation2 + $0x110] sm:$0xff]
    %v922 = vld [vmem:[#allocation2 + $0x118] sm:$0xff]
    %v923 = vld [vmem:[#allocation2 + $0x120] sm:$0xff]
    %v924 = vld [vmem:[#allocation2 + $0x128] sm:$0xff]
    %v925 = vld [vmem:[#allocation2 + $0x130] sm:$0xff]
    %v926 = vld [vmem:[#allocation2 + $0x138] sm:$0xff]
    %v927 = vld [vmem:[#allocation2 + $0x140] sm:$0xff]
    %v928 = vld [vmem:[#allocation2 + $0x148] sm:$0xff]
    %v929 = vld [vmem:[#allocation2 + $0x150] sm:$0xff]
    %v930 = vld [vmem:[#allocation2 + $0x158] sm:$0xff]
    %v931 = vld [vmem:[#allocation2 + $0x160] sm:$0xff]
    %v932 = vld [vmem:[#allocation2 + $0x168] sm:$0xff]
    %v933 = vld [vmem:[#allocation2 + $0x170] sm:$0xff]
    %v934 = vld [vmem:[#allocation2 + $0x178] sm:$0xff]
    %v935 = vld [vmem:[#allocation2 + $0x180] sm:$0xff]
    %v936 = vld [vmem:[#allocation2 + $0x188] sm:$0xff]
    %v937 = vld [vmem:[#allocation2 + $0x190] sm:$0xff]
    %v938 = vld [vmem:[#allocation2 + $0x198] sm:$0xff]
    %v939 = vld [vmem:[#allocation2 + $0x1a0] sm:$0xff]
    %v940 = vld [vmem:[#allocation2 + $0x1a8] sm:$0xff]
    %v941 = vld [vmem:[#allocation2 + $0x1b0] sm:$0xff]
    %v942 = vld [vmem:[#allocation2 + $0x1b8] sm:$0xff]
    %v943 = vld [vmem:[#allocation2 + $0x1c0] sm:$0xff]
    %v944 = vld [vmem:[#allocation2 + $0x1c8] sm:$0xff]
    %v945 = vld [vmem:[#allocation2 + $0x1d0] sm:$0xff]
    %v946 = vld [vmem:[#allocation2 + $0x1d8] sm:$0xff]
    %v947 = vld [vmem:[#allocation2 + $0x1e0] sm:$0xff]
    %v948 = vld [vmem:[#allocation2 + $0x1e8] sm:$0xff]
    %v949 = vld [vmem:[#allocation2 + $0x1f0] sm:$0xff]
    %v950 = vld [vmem:[#allocation2 + $0x1f8] sm:$0xff]
    %v951 = vld [vmem:[#allocation4] sm:$0xff]
    %v952 = vld [vmem:[#allocation4 + $0x8] sm:$0xff]
    %v953 = vld [vmem:[#allocation4 + $0x10] sm:$0xff]
    %v954 = vld [vmem:[#allocation4 + $0x18] sm:$0xff]
    %v955 = vld [vmem:[#allocation4 + $0x20] sm:$0xff]
    %v956 = vld [vmem:[#allocation4 + $0x28] sm:$0xff]
    %v957 = vld [vmem:[#allocation4 + $0x30] sm:$0xff]
    %v958 = vld [vmem:[#allocation4 + $0x38] sm:$0xff]
    %v959 = vld [vmem:[#allocation4 + $0x40] sm:$0xff]
    %v960 = vld [vmem:[#allocation4 + $0x48] sm:$0xff]
    %v961 = vld [vmem:[#allocation4 + $0x50] sm:$0xff]
    %v962 = vld [vmem:[#allocation4 + $0x58] sm:$0xff]
    %v963 = vld [vmem:[#allocation4 + $0x60] sm:$0xff]
    %v964 = vld [vmem:[#allocation4 + $0x68] sm:$0xff]
    %v965 = vld [vmem:[#allocation4 + $0x70] sm:$0xff]
    %v966 = vld [vmem:[#allocation4 + $0x78] sm:$0xff]
    %v967 = vld [vmem:[#allocation4 + $0x80] sm:$0xff]
    %v968 = vld [vmem:[#allocation4 + $0x88] sm:$0xff]
    %v969 = vld [vmem:[#allocation4 + $0x90] sm:$0xff]
    %v970 = vld [vmem:[#allocation4 + $0x98] sm:$0xff]
    %v971 = vld [vmem:[#allocation4 + $0xa0] sm:$0xff]
    %v972 = vld [vmem:[#allocation4 + $0xa8] sm:$0xff]
    %v973 = vld [vmem:[#allocation4 + $0xb0] sm:$0xff]
    %v974 = vld [vmem:[#allocation4 + $0xb8] sm:$0xff]
    %v975 = vld [vmem:[#allocation4 + $0xc0] sm:$0xff]
    %v976 = vld [vmem:[#allocation4 + $0xc8] sm:$0xff]
    %v977 = vld [vmem:[#allocation4 + $0xd0] sm:$0xff]
    %v978 = vld [vmem:[#allocation4 + $0xd8] sm:$0xff]
    %v979 = vld [vmem:[#allocation4 + $0xe0] sm:$0xff]
    %v980 = vld [vmem:[#allocation4 + $0xe8] sm:$0xff]
    %v981 = vld [vmem:[#allocation4 + $0xf0] sm:$0xff]
    %v982 = vld [vmem:[#allocation4 + $0xf8] sm:$0xff]
    %v983 = vld [vmem:[#allocation4 + $0x100] sm:$0xff]
    %v984 = vld [vmem:[#allocation4 + $0x108] sm:$0xff]
    %v985 = vld [vmem:[#allocation4 + $0x110] sm:$0xff]
    %v986 = vld [vmem:[#allocation4 + $0x118] sm:$0xff]
    %v987 = vld [vmem:[#allocation4 + $0x120] sm:$0xff]
    %v988 = vld [vmem:[#allocation4 + $0x128] sm:$0xff]
    %v989 = vld [vmem:[#allocation4 + $0x130] sm:$0xff]
    %v990 = vld [vmem:[#allocation4 + $0x138] sm:$0xff]
    %v991 = vld [vmem:[#allocation4 + $0x140] sm:$0xff]
    %v992 = vld [vmem:[#allocation4 + $0x148] sm:$0xff]
    %v993 = vld [vmem:[#allocation4 + $0x150] sm:$0xff]
    %v994 = vld [vmem:[#allocation4 + $0x158] sm:$0xff]
    %v995 = vld [vmem:[#allocation4 + $0x160] sm:$0xff]
    %v996 = vld [vmem:[#allocation4 + $0x168] sm:$0xff]
    %v997 = vld [vmem:[#allocation4 + $0x170] sm:$0xff]
    %v998 = vld [vmem:[#allocation4 + $0x178] sm:$0xff]
    %v999 = vld [vmem:[#allocation4 + $0x180] sm:$0xff]
    %v1000 = vld [vmem:[#allocation4 + $0x188] sm:$0xff]
    %v1001 = vld [vmem:[#allocation4 + $0x190] sm:$0xff]
    %v1002 = vld [vmem:[#allocation4 + $0x198] sm:$0xff]
    %v1003 = vld [vmem:[#allocation4 + $0x1a0] sm:$0xff]
    %v1004 = vld [vmem:[#allocation4 + $0x1a8] sm:$0xff]
    %v1005 = vld [vmem:[#allocation4 + $0x1b0] sm:$0xff]
    %v1006 = vld [vmem:[#allocation4 + $0x1b8] sm:$0xff]
    %v1007 = vld [vmem:[#allocation4 + $0x1c0] sm:$0xff]
    %v1008 = vld [vmem:[#allocation4 + $0x1c8] sm:$0xff]
    %v1009 = vld [vmem:[#allocation4 + $0x1d0] sm:$0xff]
    %v1010 = vld [vmem:[#allocation4 + $0x1d8] sm:$0xff]
    %v1011 = vld [vmem:[#allocation4 + $0x1e0] sm:$0xff]
    %v1012 = vld [vmem:[#allocation4 + $0x1e8] sm:$0xff]
    %v1013 = vld [vmem:[#allocation4 + $0x1f0] sm:$0xff]
    %v1014 = vld [vmem:[#allocation4 + $0x1f8] sm:$0xff]
    %v1079 = vunpack.c.l.b16 %v951
    %v1080 = vunpack.c.h.b16 %v951
    %v1081 = vunpack.c.l.b16 %v952
    %v1082 = vunpack.c.h.b16 %v952
    %v1083 = vunpack.c.l.b16 %v953
    %v1084 = vunpack.c.h.b16 %v953
    %v1085 = vunpack.c.l.b16 %v954
    %v1086 = vunpack.c.h.b16 %v954
    %v1087 = vunpack.c.l.b16 %v955
    %v1088 = vunpack.c.h.b16 %v955
    %v1089 = vunpack.c.l.b16 %v956
    %v1090 = vunpack.c.h.b16 %v956
    %v1091 = vunpack.c.l.b16 %v957
    %v1092 = vunpack.c.h.b16 %v957
    %v1093 = vunpack.c.l.b16 %v958
    %v1094 = vunpack.c.h.b16 %v958
    %v1095 = vunpack.c.l.b16 %v959
    %v1096 = vunpack.c.h.b16 %v959
    %v1097 = vunpack.c.l.b16 %v960
    %v1098 = vunpack.c.h.b16 %v960
    %v1099 = vunpack.c.l.b16 %v961
    %v1100 = vunpack.c.h.b16 %v961
    %v1101 = vunpack.c.l.b16 %v962
    %v1102 = vunpack.c.h.b16 %v962
    %v1103 = vunpack.c.l.b16 %v963
    %v1104 = vunpack.c.h.b16 %v963
    %v1105 = vunpack.c.l.b16 %v964
    %v1106 = vunpack.c.h.b16 %v964
    %v1107 = vunpack.c.l.b16 %v965
    %v1108 = vunpack.c.h.b16 %v965
    %v1109 = vunpack.c.l.b16 %v966
    %v1110 = vunpack.c.h.b16 %v966
    %v1111 = vunpack.c.l.b16 %v967
    %v1112 = vunpack.c.h.b16 %v967
    %v1113 = vunpack.c.l.b16 %v968
    %v1114 = vunpack.c.h.b16 %v968
    %v1115 = vunpack.c.l.b16 %v969
    %v1116 = vunpack.c.h.b16 %v969
    %v1117 = vunpack.c.l.b16 %v970
    %v1118 = vunpack.c.h.b16 %v970
    %v1119 = vunpack.c.l.b16 %v971
    %v1120 = vunpack.c.h.b16 %v971
    %v1121 = vunpack.c.l.b16 %v972
    %v1122 = vunpack.c.h.b16 %v972
    %v1123 = vunpack.c.l.b16 %v973
    %v1124 = vunpack.c.h.b16 %v973
    %v1125 = vunpack.c.l.b16 %v974
    %v1126 = vunpack.c.h.b16 %v974
    %v1127 = vunpack.c.l.b16 %v975
    %v1128 = vunpack.c.h.b16 %v975
    %v1129 = vunpack.c.l.b16 %v976
    %v1130 = vunpack.c.h.b16 %v976
    %v1131 = vunpack.c.l.b16 %v977
    %v1132 = vunpack.c.h.b16 %v977
    %v1133 = vunpack.c.l.b16 %v978
    %v1134 = vunpack.c.h.b16 %v978
    %v1135 = vunpack.c.l.b16 %v979
    %v1136 = vunpack.c.h.b16 %v979
    %v1137 = vunpack.c.l.b16 %v980
    %v1138 = vunpack.c.h.b16 %v980
    %v1139 = vunpack.c.l.b16 %v981
    %v1140 = vunpack.c.h.b16 %v981
    %v1141 = vunpack.c.l.b16 %v982
    %v1142 = vunpack.c.h.b16 %v982
    %v1143 = vunpack.c.l.b16 %v983
    %v1144 = vunpack.c.h.b16 %v983
    %v1145 = vunpack.c.l.b16 %v984
    %v1146 = vunpack.c.h.b16 %v984
    %v1147 = vunpack.c.l.b16 %v985
    %v1148 = vunpack.c.h.b16 %v985
    %v1149 = vunpack.c.l.b16 %v986
    %v1150 = vunpack.c.h.b16 %v986
    %v1151 = vunpack.c.l.b16 %v987
    %v1152 = vunpack.c.h.b16 %v987
    %v1153 = vunpack.c.l.b16 %v988
    %v1154 = vunpack.c.h.b16 %v988
    %v1155 = vunpack.c.l.b16 %v989
    %v1156 = vunpack.c.h.b16 %v989
    %v1157 = vunpack.c.l.b16 %v990
    %v1158 = vunpack.c.h.b16 %v990
    %v1159 = vunpack.c.l.b16 %v991
    %v1160 = vunpack.c.h.b16 %v991
    %v1161 = vunpack.c.l.b16 %v992
    %v1162 = vunpack.c.h.b16 %v992
    %v1163 = vunpack.c.l.b16 %v993
    %v1164 = vunpack.c.h.b16 %v993
    %v1165 = vunpack.c.l.b16 %v994
    %v1166 = vunpack.c.h.b16 %v994
    %v1167 = vunpack.c.l.b16 %v995
    %v1168 = vunpack.c.h.b16 %v995
    %v1169 = vunpack.c.l.b16 %v996
    %v1170 = vunpack.c.h.b16 %v996
    %v1171 = vunpack.c.l.b16 %v997
    %v1172 = vunpack.c.h.b16 %v997
    %v1173 = vunpack.c.l.b16 %v998
    %v1174 = vunpack.c.h.b16 %v998
    %v1175 = vunpack.c.l.b16 %v999
    %v1176 = vunpack.c.h.b16 %v999
    %v1177 = vunpack.c.l.b16 %v1000
    %v1178 = vunpack.c.h.b16 %v1000
    %v1179 = vunpack.c.l.b16 %v1001
    %v1180 = vunpack.c.h.b16 %v1001
    %v1181 = vunpack.c.l.b16 %v1002
    %v1182 = vunpack.c.h.b16 %v1002
    %v1183 = vunpack.c.l.b16 %v1003
    %v1184 = vunpack.c.h.b16 %v1003
    %v1185 = vunpack.c.l.b16 %v1004
    %v1186 = vunpack.c.h.b16 %v1004
    %v1187 = vunpack.c.l.b16 %v1005
    %v1188 = vunpack.c.h.b16 %v1005
    %v1189 = vunpack.c.l.b16 %v1006
    %v1190 = vunpack.c.h.b16 %v1006
    %v1191 = vunpack.c.l.b16 %v1007
    %v1192 = vunpack.c.h.b16 %v1007
    %v1193 = vunpack.c.l.b16 %v1008
    %v1194 = vunpack.c.h.b16 %v1008
    %v1195 = vunpack.c.l.b16 %v1009
    %v1196 = vunpack.c.h.b16 %v1009
    %v1197 = vunpack.c.l.b16 %v1010
    %v1198 = vunpack.c.h.b16 %v1010
    %v1199 = vunpack.c.l.b16 %v1011
    %v1200 = vunpack.c.h.b16 %v1011
    %v1201 = vunpack.c.l.b16 %v1012
    %v1202 = vunpack.c.h.b16 %v1012
    %v1203 = vunpack.c.l.b16 %v1013
    %v1204 = vunpack.c.h.b16 %v1013
    %v1205 = vunpack.c.l.b16 %v1014
    %v1206 = vunpack.c.h.b16 %v1014
    %v1207 = vpack.c.b16 %v1087, %v1079
    %v1208 = vpack.c.b16 %v1088, %v1080
    %v1209 = vpack.c.b16 %v1089, %v1081
    %v1210 = vpack.c.b16 %v1090, %v1082
    %v1211 = vpack.c.b16 %v1091, %v1083
    %v1212 = vpack.c.b16 %v1092, %v1084
    %v1213 = vpack.c.b16 %v1093, %v1085
    %v1214 = vpack.c.b16 %v1094, %v1086
    %v1215 = vpack.c.b16 %v1103, %v1095
    %v1216 = vpack.c.b16 %v1104, %v1096
    %v1217 = vpack.c.b16 %v1105, %v1097
    %v1218 = vpack.c.b16 %v1106, %v1098
    %v1219 = vpack.c.b16 %v1107, %v1099
    %v1220 = vpack.c.b16 %v1108, %v1100
    %v1221 = vpack.c.b16 %v1109, %v1101
    %v1222 = vpack.c.b16 %v1110, %v1102
    %v1223 = vpack.c.b16 %v1119, %v1111
    %v1224 = vpack.c.b16 %v1120, %v1112
    %v1225 = vpack.c.b16 %v1121, %v1113
    %v1226 = vpack.c.b16 %v1122, %v1114
    %v1227 = vpack.c.b16 %v1123, %v1115
    %v1228 = vpack.c.b16 %v1124, %v1116
    %v1229 = vpack.c.b16 %v1125, %v1117
    %v1230 = vpack.c.b16 %v1126, %v1118
    %v1231 = vpack.c.b16 %v1135, %v1127
    %v1232 = vpack.c.b16 %v1136, %v1128
    %v1233 = vpack.c.b16 %v1137, %v1129
    %v1234 = vpack.c.b16 %v1138, %v1130
    %v1235 = vpack.c.b16 %v1139, %v1131
    %v1236 = vpack.c.b16 %v1140, %v1132
    %v1237 = vpack.c.b16 %v1141, %v1133
    %v1238 = vpack.c.b16 %v1142, %v1134
    %v1239 = vpack.c.b16 %v1151, %v1143
    %v1240 = vpack.c.b16 %v1152, %v1144
    %v1241 = vpack.c.b16 %v1153, %v1145
    %v1242 = vpack.c.b16 %v1154, %v1146
    %v1243 = vpack.c.b16 %v1155, %v1147
    %v1244 = vpack.c.b16 %v1156, %v1148
    %v1245 = vpack.c.b16 %v1157, %v1149
    %v1246 = vpack.c.b16 %v1158, %v1150
    %v1247 = vpack.c.b16 %v1167, %v1159
    %v1248 = vpack.c.b16 %v1168, %v1160
    %v1249 = vpack.c.b16 %v1169, %v1161
    %v1250 = vpack.c.b16 %v1170, %v1162
    %v1251 = vpack.c.b16 %v1171, %v1163
    %v1252 = vpack.c.b16 %v1172, %v1164
    %v1253 = vpack.c.b16 %v1173, %v1165
    %v1254 = vpack.c.b16 %v1174, %v1166
    %v1255 = vpack.c.b16 %v1183, %v1175
    %v1256 = vpack.c.b16 %v1184, %v1176
    %v1257 = vpack.c.b16 %v1185, %v1177
    %v1258 = vpack.c.b16 %v1186, %v1178
    %v1259 = vpack.c.b16 %v1187, %v1179
    %v1260 = vpack.c.b16 %v1188, %v1180
    %v1261 = vpack.c.b16 %v1189, %v1181
    %v1262 = vpack.c.b16 %v1190, %v1182
    %v1263 = vpack.c.b16 %v1199, %v1191
    %v1264 = vpack.c.b16 %v1200, %v1192
    %v1265 = vpack.c.b16 %v1201, %v1193
    %v1266 = vpack.c.b16 %v1202, %v1194
    %v1267 = vpack.c.b16 %v1203, %v1195
    %v1268 = vpack.c.b16 %v1204, %v1196
    %v1269 = vpack.c.b16 %v1205, %v1197
    %v1270 = vpack.c.b16 %v1206, %v1198
    %1335 = vmatprep.subr.bf16.mxu0 %v1264
    %1336 = vmatpush1.bf16.msra.mxu0 %v1263
    %1337 = vmatprep.subr.bf16.mxu0 %v1256
    %1338 = vmatpush1.bf16.msra.mxu0 %v1255
    %1339 = vmatprep.subr.bf16.mxu0 %v1248
    %1340 = vmatpush1.bf16.msra.mxu0 %v1247
    %1341 = vmatprep.subr.bf16.mxu0 %v1240
    %1342 = vmatpush1.bf16.msra.mxu0 %v1239
    %1343 = vmatprep.subr.bf16.mxu0 %v1232
    %1344 = vmatpush1.bf16.msra.mxu0 %v1231
    %1345 = vmatprep.subr.bf16.mxu0 %v1224
    %1346 = vmatpush1.bf16.msra.mxu0 %v1223
    %1347 = vmatprep.subr.bf16.mxu0 %v1216
    %1348 = vmatpush1.bf16.msra.mxu0 %v1215
    %1349 = vmatprep.subr.bf16.mxu0 %v1208
    %1350 = vmatpush1.bf16.msra.mxu0 %v1207
    %1351 = vmatprep.subr.bf16.mxu0 0
    %1352 = vmatpush2.bf16.msra.mxu0 0
    %1353 = vmatprep.subr.bf16.mxu0 0
    %1354 = vmatpush2.bf16.msra.mxu0 0
    %1355 = vmatprep.subr.bf16.mxu0 0
    %1356 = vmatpush2.bf16.msra.mxu0 0
    %1357 = vmatprep.subr.bf16.mxu0 0
    %1358 = vmatpush2.bf16.msra.mxu0 0
    %1359 = vmatprep.subr.bf16.mxu0 0
    %1360 = vmatpush2.bf16.msra.mxu0 0
    %1361 = vmatprep.subr.bf16.mxu0 0
    %1362 = vmatpush2.bf16.msra.mxu0 0
    %1363 = vmatprep.subr.bf16.mxu0 0
    %1364 = vmatpush2.bf16.msra.mxu0 0
    %1365 = vmatprep.subr.bf16.mxu0 0
    %1366 = vmatpush2.bf16.msra.mxu0 0
    %1367 = vmatprep.mubr.bf16.mxu0 0
    %1368 = vmatmul.mubr.bf16.gmra.mxu0 %v886
    %v1369 = vpop.f32.mrf.mxu0
    %v1370 = vadd.f32 0.0, %v1369
    %v1371 = vpop.f32.mrf.mxu0
    %v1372 = vadd.f32 0.0, %v1371
    %v1373 = vpop.f32.mrf.mxu0
    %v1374 = vpop.f32.mrf.mxu0
    %1375 = vdwg.mxu0
    %1376 = vmatprep.subr.bf16.mxu0 %v1266
    %1377 = vmatpush1.bf16.msra.mxu0 %v1265
    %1378 = vmatprep.subr.bf16.mxu0 %v1258
    %1379 = vmatpush1.bf16.msra.mxu0 %v1257
    %1380 = vmatprep.subr.bf16.mxu0 %v1250
    %1381 = vmatpush1.bf16.msra.mxu0 %v1249
    %1382 = vmatprep.subr.bf16.mxu0 %v1242
    %1383 = vmatpush1.bf16.msra.mxu0 %v1241
    %1384 = vmatprep.subr.bf16.mxu0 %v1234
    %1385 = vmatpush1.bf16.msra.mxu0 %v1233
    %1386 = vmatprep.subr.bf16.mxu0 %v1226
    %1387 = vmatpush1.bf16.msra.mxu0 %v1225
    %1388 = vmatprep.subr.bf16.mxu0 %v1218
    %1389 = vmatpush1.bf16.msra.mxu0 %v1217
    %1390 = vmatprep.subr.bf16.mxu0 %v1210
    %1391 = vmatpush1.bf16.msra.mxu0 %v1209
    %1392 = vmatprep.subr.bf16.mxu0 0
    %1393 = vmatpush2.bf16.msra.mxu0 0
    %1394 = vmatprep.subr.bf16.mxu0 0
    %1395 = vmatpush2.bf16.msra.mxu0 0
    %1396 = vmatprep.subr.bf16.mxu0 0
    %1397 = vmatpush2.bf16.msra.mxu0 0
    %1398 = vmatprep.subr.bf16.mxu0 0
    %1399 = vmatpush2.bf16.msra.mxu0 0
    %1400 = vmatprep.subr.bf16.mxu0 0
    %1401 = vmatpush2.bf16.msra.mxu0 0
    %1402 = vmatprep.subr.bf16.mxu0 0
    %1403 = vmatpush2.bf16.msra.mxu0 0
    %1404 = vmatprep.subr.bf16.mxu0 0
    %1405 = vmatpush2.bf16.msra.mxu0 0
    %1406 = vmatprep.subr.bf16.mxu0 0
    %1407 = vmatpush2.bf16.msra.mxu0 0
    %1408 = vmatprep.mubr.bf16.mxu0 0
    %1409 = vmatmul.mubr.bf16.gmra.mxu0 %v886
    %v1410 = vpop.f32.mrf.mxu0
    %v1411 = vadd.f32 0.0, %v1410
    %v1412 = vpop.f32.mrf.mxu0
    %v1413 = vadd.f32 0.0, %v1412
    %v1414 = vpop.f32.mrf.mxu0
    %v1415 = vpop.f32.mrf.mxu0
    %1416 = vdwg.mxu0
    %1417 = vmatprep.subr.bf16.mxu0 %v1268
    %1418 = vmatpush1.bf16.msra.mxu0 %v1267
    %1419 = vmatprep.subr.bf16.mxu0 %v1260
    %1420 = vmatpush1.bf16.msra.mxu0 %v1259
    %1421 = vmatprep.subr.bf16.mxu0 %v1252
    %1422 = vmatpush1.bf16.msra.mxu0 %v1251
    %1423 = vmatprep.subr.bf16.mxu0 %v1244
    %1424 = vmatpush1.bf16.msra.mxu0 %v1243
    %1425 = vmatprep.subr.bf16.mxu0 %v1236
    %1426 = vmatpush1.bf16.msra.mxu0 %v1235
    %1427 = vmatprep.subr.bf16.mxu0 %v1228
    %1428 = vmatpush1.bf16.msra.mxu0 %v1227
    %1429 = vmatprep.subr.bf16.mxu0 %v1220
    %1430 = vmatpush1.bf16.msra.mxu0 %v1219
    %1431 = vmatprep.subr.bf16.mxu0 %v1212
    %1432 = vmatpush1.bf16.msra.mxu0 %v1211
    %1433 = vmatprep.subr.bf16.mxu0 0
    %1434 = vmatpush2.bf16.msra.mxu0 0
    %1435 = vmatprep.subr.bf16.mxu0 0
    %1436 = vmatpush2.bf16.msra.mxu0 0
    %1437 = vmatprep.subr.bf16.mxu0 0
    %1438 = vmatpush2.bf16.msra.mxu0 0
    %1439 = vmatprep.subr.bf16.mxu0 0
    %1440 = vmatpush2.bf16.msra.mxu0 0
    %1441 = vmatprep.subr.bf16.mxu0 0
    %1442 = vmatpush2.bf16.msra.mxu0 0
    %1443 = vmatprep.subr.bf16.mxu0 0
    %1444 = vmatpush2.bf16.msra.mxu0 0
    %1445 = vmatprep.subr.bf16.mxu0 0
    %1446 = vmatpush2.bf16.msra.mxu0 0
    %1447 = vmatprep.subr.bf16.mxu0 0
    %1448 = vmatpush2.bf16.msra.mxu0 0
    %1449 = vmatprep.mubr.bf16.mxu0 0
    %1450 = vmatmul.mubr.bf16.gmra.mxu0 %v886
    %v1451 = vpop.f32.mrf.mxu0
    %v1452 = vadd.f32 0.0, %v1451
    %v1453 = vpop.f32.mrf.mxu0
    %v1454 = vadd.f32 0.0, %v1453
    %v1455 = vpop.f32.mrf.mxu0
    %v1456 = vpop.f32.mrf.mxu0
    %1457 = vdwg.mxu0
    %1458 = vmatprep.subr.bf16.mxu0 %v1270
    %1459 = vmatpush1.bf16.msra.mxu0 %v1269
    %1460 = vmatprep.subr.bf16.mxu0 %v1262
    %1461 = vmatpush1.bf16.msra.mxu0 %v1261
    %1462 = vmatprep.subr.bf16.mxu0 %v1254
    %1463 = vmatpush1.bf16.msra.mxu0 %v1253
    %1464 = vmatprep.subr.bf16.mxu0 %v1246
    %1465 = vmatpush1.bf16.msra.mxu0 %v1245
    %1466 = vmatprep.subr.bf16.mxu0 %v1238
    %1467 = vmatpush1.bf16.msra.mxu0 %v1237
    %1468 = vmatprep.subr.bf16.mxu0 %v1230
    %1469 = vmatpush1.bf16.msra.mxu0 %v1229
    %1470 = vmatprep.subr.bf16.mxu0 %v1222
    %1471 = vmatpush1.bf16.msra.mxu0 %v1221
    %1472 = vmatprep.subr.bf16.mxu0 %v1214
    %1473 = vmatpush1.bf16.msra.mxu0 %v1213
    %1474 = vmatprep.subr.bf16.mxu0 0
    %1475 = vmatpush2.bf16.msra.mxu0 0
    %1476 = vmatprep.subr.bf16.mxu0 0
    %1477 = vmatpush2.bf16.msra.mxu0 0
    %1478 = vmatprep.subr.bf16.mxu0 0
    %1479 = vmatpush2.bf16.msra.mxu0 0
    %1480 = vmatprep.subr.bf16.mxu0 0
    %1481 = vmatpush2.bf16.msra.mxu0 0
    %1482 = vmatprep.subr.bf16.mxu0 0
    %1483 = vmatpush2.bf16.msra.mxu0 0
    %1484 = vmatprep.subr.bf16.mxu0 0
    %1485 = vmatpush2.bf16.msra.mxu0 0
    %1486 = vmatprep.subr.bf16.mxu0 0
    %1487 = vmatpush2.bf16.msra.mxu0 0
    %1488 = vmatprep.subr.bf16.mxu0 0
    %1489 = vmatpush2.bf16.msra.mxu0 0
    %1490 = vmatprep.mubr.bf16.mxu0 0
    %1491 = vmatmul.mubr.bf16.gmra.mxu0 %v886
    %v1492 = vpop.f32.mrf.mxu0
    %v1493 = vadd.f32 0.0, %v1492
    %v1494 = vpop.f32.mrf.mxu0
    %v1495 = vadd.f32 0.0, %v1494
    %v1496 = vpop.f32.mrf.mxu0
    %v1497 = vpop.f32.mrf.mxu0
    %1498 = vdwg.mxu0
    %v1563 = vunpack.c.l.b16 %v887
    %v1564 = vunpack.c.h.b16 %v887
    %v1565 = vunpack.c.l.b16 %v888
    %v1566 = vunpack.c.h.b16 %v888
    %v1567 = vunpack.c.l.b16 %v889
    %v1568 = vunpack.c.h.b16 %v889
    %v1569 = vunpack.c.l.b16 %v890
    %v1570 = vunpack.c.h.b16 %v890
    %v1571 = vunpack.c.l.b16 %v891
    %v1572 = vunpack.c.h.b16 %v891
    %v1573 = vunpack.c.l.b16 %v892
    %v1574 = vunpack.c.h.b16 %v892
    %v1575 = vunpack.c.l.b16 %v893
    %v1576 = vunpack.c.h.b16 %v893
    %v1577 = vunpack.c.l.b16 %v894
    %v1578 = vunpack.c.h.b16 %v894
    %v1579 = vunpack.c.l.b16 %v895
    %v1580 = vunpack.c.h.b16 %v895
    %v1581 = vunpack.c.l.b16 %v896
    %v1582 = vunpack.c.h.b16 %v896
    %v1583 = vunpack.c.l.b16 %v897
    %v1584 = vunpack.c.h.b16 %v897
    %v1585 = vunpack.c.l.b16 %v898
    %v1586 = vunpack.c.h.b16 %v898
    %v1587 = vunpack.c.l.b16 %v899
    %v1588 = vunpack.c.h.b16 %v899
    %v1589 = vunpack.c.l.b16 %v900
    %v1590 = vunpack.c.h.b16 %v900
    %v1591 = vunpack.c.l.b16 %v901
    %v1592 = vunpack.c.h.b16 %v901
    %v1593 = vunpack.c.l.b16 %v902
    %v1594 = vunpack.c.h.b16 %v902
    %v1595 = vunpack.c.l.b16 %v903
    %v1596 = vunpack.c.h.b16 %v903
    %v1597 = vunpack.c.l.b16 %v904
    %v1598 = vunpack.c.h.b16 %v904
    %v1599 = vunpack.c.l.b16 %v905
    %v1600 = vunpack.c.h.b16 %v905
    %v1601 = vunpack.c.l.b16 %v906
    %v1602 = vunpack.c.h.b16 %v906
    %v1603 = vunpack.c.l.b16 %v907
    %v1604 = vunpack.c.h.b16 %v907
    %v1605 = vunpack.c.l.b16 %v908
    %v1606 = vunpack.c.h.b16 %v908
    %v1607 = vunpack.c.l.b16 %v909
    %v1608 = vunpack.c.h.b16 %v909
    %v1609 = vunpack.c.l.b16 %v910
    %v1610 = vunpack.c.h.b16 %v910
    %v1611 = vunpack.c.l.b16 %v911
    %v1612 = vunpack.c.h.b16 %v911
    %v1613 = vunpack.c.l.b16 %v912
    %v1614 = vunpack.c.h.b16 %v912
    %v1615 = vunpack.c.l.b16 %v913
    %v1616 = vunpack.c.h.b16 %v913
    %v1617 = vunpack.c.l.b16 %v914
    %v1618 = vunpack.c.h.b16 %v914
    %v1619 = vunpack.c.l.b16 %v915
    %v1620 = vunpack.c.h.b16 %v915
    %v1621 = vunpack.c.l.b16 %v916
    %v1622 = vunpack.c.h.b16 %v916
    %v1623 = vunpack.c.l.b16 %v917
    %v1624 = vunpack.c.h.b16 %v917
    %v1625 = vunpack.c.l.b16 %v918
    %v1626 = vunpack.c.h.b16 %v918
    %v1627 = vunpack.c.l.b16 %v919
    %v1628 = vunpack.c.h.b16 %v919
    %v1629 = vunpack.c.l.b16 %v920
    %v1630 = vunpack.c.h.b16 %v920
    %v1631 = vunpack.c.l.b16 %v921
    %v1632 = vunpack.c.h.b16 %v921
    %v1633 = vunpack.c.l.b16 %v922
    %v1634 = vunpack.c.h.b16 %v922
    %v1635 = vunpack.c.l.b16 %v923
    %v1636 = vunpack.c.h.b16 %v923
    %v1637 = vunpack.c.l.b16 %v924
    %v1638 = vunpack.c.h.b16 %v924
    %v1639 = vunpack.c.l.b16 %v925
    %v1640 = vunpack.c.h.b16 %v925
    %v1641 = vunpack.c.l.b16 %v926
    %v1642 = vunpack.c.h.b16 %v926
    %v1643 = vunpack.c.l.b16 %v927
    %v1644 = vunpack.c.h.b16 %v927
    %v1645 = vunpack.c.l.b16 %v928
    %v1646 = vunpack.c.h.b16 %v928
    %v1647 = vunpack.c.l.b16 %v929
    %v1648 = vunpack.c.h.b16 %v929
    %v1649 = vunpack.c.l.b16 %v930
    %v1650 = vunpack.c.h.b16 %v930
    %v1651 = vunpack.c.l.b16 %v931
    %v1652 = vunpack.c.h.b16 %v931
    %v1653 = vunpack.c.l.b16 %v932
    %v1654 = vunpack.c.h.b16 %v932
    %v1655 = vunpack.c.l.b16 %v933
    %v1656 = vunpack.c.h.b16 %v933
    %v1657 = vunpack.c.l.b16 %v934
    %v1658 = vunpack.c.h.b16 %v934
    %v1659 = vunpack.c.l.b16 %v935
    %v1660 = vunpack.c.h.b16 %v935
    %v1661 = vunpack.c.l.b16 %v936
    %v1662 = vunpack.c.h.b16 %v936
    %v1663 = vunpack.c.l.b16 %v937
    %v1664 = vunpack.c.h.b16 %v937
    %v1665 = vunpack.c.l.b16 %v938
    %v1666 = vunpack.c.h.b16 %v938
    %v1667 = vunpack.c.l.b16 %v939
    %v1668 = vunpack.c.h.b16 %v939
    %v1669 = vunpack.c.l.b16 %v940
    %v1670 = vunpack.c.h.b16 %v940
    %v1671 = vunpack.c.l.b16 %v941
    %v1672 = vunpack.c.h.b16 %v941
    %v1673 = vunpack.c.l.b16 %v942
    %v1674 = vunpack.c.h.b16 %v942
    %v1675 = vunpack.c.l.b16 %v943
    %v1676 = vunpack.c.h.b16 %v943
    %v1677 = vunpack.c.l.b16 %v944
    %v1678 = vunpack.c.h.b16 %v944
    %v1679 = vunpack.c.l.b16 %v945
    %v1680 = vunpack.c.h.b16 %v945
    %v1681 = vunpack.c.l.b16 %v946
    %v1682 = vunpack.c.h.b16 %v946
    %v1683 = vunpack.c.l.b16 %v947
    %v1684 = vunpack.c.h.b16 %v947
    %v1685 = vunpack.c.l.b16 %v948
    %v1686 = vunpack.c.h.b16 %v948
    %v1687 = vunpack.c.l.b16 %v949
    %v1688 = vunpack.c.h.b16 %v949
    %v1689 = vunpack.c.l.b16 %v950
    %v1690 = vunpack.c.h.b16 %v950
    %v1691 = vpack.c.b16 %v1571, %v1563
    %v1692 = vpack.c.b16 %v1572, %v1564
    %v1693 = vpack.c.b16 %v1573, %v1565
    %v1694 = vpack.c.b16 %v1574, %v1566
    %v1695 = vpack.c.b16 %v1575, %v1567
    %v1696 = vpack.c.b16 %v1576, %v1568
    %v1697 = vpack.c.b16 %v1577, %v1569
    %v1698 = vpack.c.b16 %v1578, %v1570
    %v1699 = vpack.c.b16 %v1587, %v1579
    %v1700 = vpack.c.b16 %v1588, %v1580
    %v1701 = vpack.c.b16 %v1589, %v1581
    %v1702 = vpack.c.b16 %v1590, %v1582
    %v1703 = vpack.c.b16 %v1591, %v1583
    %v1704 = vpack.c.b16 %v1592, %v1584
    %v1705 = vpack.c.b16 %v1593, %v1585
    %v1706 = vpack.c.b16 %v1594, %v1586
    %v1707 = vpack.c.b16 %v1603, %v1595
    %v1708 = vpack.c.b16 %v1604, %v1596
    %v1709 = vpack.c.b16 %v1605, %v1597
    %v1710 = vpack.c.b16 %v1606, %v1598
    %v1711 = vpack.c.b16 %v1607, %v1599
    %v1712 = vpack.c.b16 %v1608, %v1600
    %v1713 = vpack.c.b16 %v1609, %v1601
    %v1714 = vpack.c.b16 %v1610, %v1602
    %v1715 = vpack.c.b16 %v1619, %v1611
    %v1716 = vpack.c.b16 %v1620, %v1612
    %v1717 = vpack.c.b16 %v1621, %v1613
    %v1718 = vpack.c.b16 %v1622, %v1614
    %v1719 = vpack.c.b16 %v1623, %v1615
    %v1720 = vpack.c.b16 %v1624, %v1616
    %v1721 = vpack.c.b16 %v1625, %v1617
    %v1722 = vpack.c.b16 %v1626, %v1618
    %v1723 = vpack.c.b16 %v1635, %v1627
    %v1724 = vpack.c.b16 %v1636, %v1628
    %v1725 = vpack.c.b16 %v1637, %v1629
    %v1726 = vpack.c.b16 %v1638, %v1630
    %v1727 = vpack.c.b16 %v1639, %v1631
    %v1728 = vpack.c.b16 %v1640, %v1632
    %v1729 = vpack.c.b16 %v1641, %v1633
    %v1730 = vpack.c.b16 %v1642, %v1634
    %v1731 = vpack.c.b16 %v1651, %v1643
    %v1732 = vpack.c.b16 %v1652, %v1644
    %v1733 = vpack.c.b16 %v1653, %v1645
    %v1734 = vpack.c.b16 %v1654, %v1646
    %v1735 = vpack.c.b16 %v1655, %v1647
    %v1736 = vpack.c.b16 %v1656, %v1648
    %v1737 = vpack.c.b16 %v1657, %v1649
    %v1738 = vpack.c.b16 %v1658, %v1650
    %v1739 = vpack.c.b16 %v1667, %v1659
    %v1740 = vpack.c.b16 %v1668, %v1660
    %v1741 = vpack.c.b16 %v1669, %v1661
    %v1742 = vpack.c.b16 %v1670, %v1662
    %v1743 = vpack.c.b16 %v1671, %v1663
    %v1744 = vpack.c.b16 %v1672, %v1664
    %v1745 = vpack.c.b16 %v1673, %v1665
    %v1746 = vpack.c.b16 %v1674, %v1666
    %v1747 = vpack.c.b16 %v1683, %v1675
    %v1748 = vpack.c.b16 %v1684, %v1676
    %v1749 = vpack.c.b16 %v1685, %v1677
    %v1750 = vpack.c.b16 %v1686, %v1678
    %v1751 = vpack.c.b16 %v1687, %v1679
    %v1752 = vpack.c.b16 %v1688, %v1680
    %v1753 = vpack.c.b16 %v1689, %v1681
    %v1754 = vpack.c.b16 %v1690, %v1682
    %1819 = vmatprep.subr.bf16.mxu0 %v1748
    %1820 = vmatpush1.bf16.msra.mxu0 %v1747
    %1821 = vmatprep.subr.bf16.mxu0 %v1740
    %1822 = vmatpush1.bf16.msra.mxu0 %v1739
    %1823 = vmatprep.subr.bf16.mxu0 %v1732
    %1824 = vmatpush1.bf16.msra.mxu0 %v1731
    %1825 = vmatprep.subr.bf16.mxu0 %v1724
    %1826 = vmatpush1.bf16.msra.mxu0 %v1723
    %1827 = vmatprep.subr.bf16.mxu0 %v1716
    %1828 = vmatpush1.bf16.msra.mxu0 %v1715
    %1829 = vmatprep.subr.bf16.mxu0 %v1708
    %1830 = vmatpush1.bf16.msra.mxu0 %v1707
    %1831 = vmatprep.subr.bf16.mxu0 %v1700
    %1832 = vmatpush1.bf16.msra.mxu0 %v1699
    %1833 = vmatprep.subr.bf16.mxu0 %v1692
    %1834 = vmatpush1.bf16.msra.mxu0 %v1691
    %1835 = vmatprep.subr.bf16.mxu0 0
    %1836 = vmatpush2.bf16.msra.mxu0 0
    %1837 = vmatprep.subr.bf16.mxu0 0
    %1838 = vmatpush2.bf16.msra.mxu0 0
    %1839 = vmatprep.subr.bf16.mxu0 0
    %1840 = vmatpush2.bf16.msra.mxu0 0
    %1841 = vmatprep.subr.bf16.mxu0 0
    %1842 = vmatpush2.bf16.msra.mxu0 0
    %1843 = vmatprep.subr.bf16.mxu0 0
    %1844 = vmatpush2.bf16.msra.mxu0 0
    %1845 = vmatprep.subr.bf16.mxu0 0
    %1846 = vmatpush2.bf16.msra.mxu0 0
    %1847 = vmatprep.subr.bf16.mxu0 0
    %1848 = vmatpush2.bf16.msra.mxu0 0
    %1849 = vmatprep.subr.bf16.mxu0 0
    %1850 = vmatpush2.bf16.msra.mxu0 0
    %1851 = vmatprep.mubr.bf16.mxu0 0
    %1852 = vmatmul.mubr.bf16.gmra.mxu0 %v885
    %v1853 = vpop.f32.mrf.mxu0
    %v1854 = vadd.f32 %v1370, %v1853
    %v1855 = vpop.f32.mrf.mxu0
    %v1856 = vadd.f32 %v1372, %v1855
    %v1857 = vpop.f32.mrf.mxu0
    %v1858 = vpop.f32.mrf.mxu0
    %1859 = vdwg.mxu0
    %1860 = vmatprep.subr.bf16.mxu0 %v1750
    %1861 = vmatpush1.bf16.msra.mxu0 %v1749
    %1862 = vmatprep.subr.bf16.mxu0 %v1742
    %1863 = vmatpush1.bf16.msra.mxu0 %v1741
    %1864 = vmatprep.subr.bf16.mxu0 %v1734
    %1865 = vmatpush1.bf16.msra.mxu0 %v1733
    %1866 = vmatprep.subr.bf16.mxu0 %v1726
    %1867 = vmatpush1.bf16.msra.mxu0 %v1725
    %1868 = vmatprep.subr.bf16.mxu0 %v1718
    %1869 = vmatpush1.bf16.msra.mxu0 %v1717
    %1870 = vmatprep.subr.bf16.mxu0 %v1710
    %1871 = vmatpush1.bf16.msra.mxu0 %v1709
    %1872 = vmatprep.subr.bf16.mxu0 %v1702
    %1873 = vmatpush1.bf16.msra.mxu0 %v1701
    %1874 = vmatprep.subr.bf16.mxu0 %v1694
    %1875 = vmatpush1.bf16.msra.mxu0 %v1693
    %1876 = vmatprep.subr.bf16.mxu0 0
    %1877 = vmatpush2.bf16.msra.mxu0 0
    %1878 = vmatprep.subr.bf16.mxu0 0
    %1879 = vmatpush2.bf16.msra.mxu0 0
    %1880 = vmatprep.subr.bf16.mxu0 0
    %1881 = vmatpush2.bf16.msra.mxu0 0
    %1882 = vmatprep.subr.bf16.mxu0 0
    %1883 = vmatpush2.bf16.msra.mxu0 0
    %1884 = vmatprep.subr.bf16.mxu0 0
    %1885 = vmatpush2.bf16.msra.mxu0 0
    %1886 = vmatprep.subr.bf16.mxu0 0
    %1887 = vmatpush2.bf16.msra.mxu0 0
    %1888 = vmatprep.subr.bf16.mxu0 0
    %1889 = vmatpush2.bf16.msra.mxu0 0
    %1890 = vmatprep.subr.bf16.mxu0 0
    %1891 = vmatpush2.bf16.msra.mxu0 0
    %1892 = vmatprep.mubr.bf16.mxu0 0
    %1893 = vmatmul.mubr.bf16.gmra.mxu0 %v885
    %v1894 = vpop.f32.mrf.mxu0
    %v1895 = vadd.f32 %v1411, %v1894
    %v1896 = vpop.f32.mrf.mxu0
    %v1897 = vadd.f32 %v1413, %v1896
    %v1898 = vpop.f32.mrf.mxu0
    %v1899 = vpop.f32.mrf.mxu0
    %1900 = vdwg.mxu0
    %1901 = vmatprep.subr.bf16.mxu0 %v1752
    %1902 = vmatpush1.bf16.msra.mxu0 %v1751
    %1903 = vmatprep.subr.bf16.mxu0 %v1744
    %1904 = vmatpush1.bf16.msra.mxu0 %v1743
    %1905 = vmatprep.subr.bf16.mxu0 %v1736
    %1906 = vmatpush1.bf16.msra.mxu0 %v1735
    %1907 = vmatprep.subr.bf16.mxu0 %v1728
    %1908 = vmatpush1.bf16.msra.mxu0 %v1727
    %1909 = vmatprep.subr.bf16.mxu0 %v1720
    %1910 = vmatpush1.bf16.msra.mxu0 %v1719
    %1911 = vmatprep.subr.bf16.mxu0 %v1712
    %1912 = vmatpush1.bf16.msra.mxu0 %v1711
    %1913 = vmatprep.subr.bf16.mxu0 %v1704
    %1914 = vmatpush1.bf16.msra.mxu0 %v1703
    %1915 = vmatprep.subr.bf16.mxu0 %v1696
    %1916 = vmatpush1.bf16.msra.mxu0 %v1695
    %1917 = vmatprep.subr.bf16.mxu0 0
    %1918 = vmatpush2.bf16.msra.mxu0 0
    %1919 = vmatprep.subr.bf16.mxu0 0
    %1920 = vmatpush2.bf16.msra.mxu0 0
    %1921 = vmatprep.subr.bf16.mxu0 0
    %1922 = vmatpush2.bf16.msra.mxu0 0
    %1923 = vmatprep.subr.bf16.mxu0 0
    %1924 = vmatpush2.bf16.msra.mxu0 0
    %1925 = vmatprep.subr.bf16.mxu0 0
    %1926 = vmatpush2.bf16.msra.mxu0 0
    %1927 = vmatprep.subr.bf16.mxu0 0
    %1928 = vmatpush2.bf16.msra.mxu0 0
    %1929 = vmatprep.subr.bf16.mxu0 0
    %1930 = vmatpush2.bf16.msra.mxu0 0
    %1931 = vmatprep.subr.bf16.mxu0 0
    %1932 = vmatpush2.bf16.msra.mxu0 0
    %1933 = vmatprep.mubr.bf16.mxu0 0
    %1934 = vmatmul.mubr.bf16.gmra.mxu0 %v885
    %v1935 = vpop.f32.mrf.mxu0
    %v1936 = vadd.f32 %v1452, %v1935
    %v1937 = vpop.f32.mrf.mxu0
    %v1938 = vadd.f32 %v1454, %v1937
    %v1939 = vpop.f32.mrf.mxu0
    %v1940 = vpop.f32.mrf.mxu0
    %1941 = vdwg.mxu0
    %1942 = vmatprep.subr.bf16.mxu0 %v1754
    %1943 = vmatpush1.bf16.msra.mxu0 %v1753
    %1944 = vmatprep.subr.bf16.mxu0 %v1746
    %1945 = vmatpush1.bf16.msra.mxu0 %v1745
    %1946 = vmatprep.subr.bf16.mxu0 %v1738
    %1947 = vmatpush1.bf16.msra.mxu0 %v1737
    %1948 = vmatprep.subr.bf16.mxu0 %v1730
    %1949 = vmatpush1.bf16.msra.mxu0 %v1729
    %1950 = vmatprep.subr.bf16.mxu0 %v1722
    %1951 = vmatpush1.bf16.msra.mxu0 %v1721
    %1952 = vmatprep.subr.bf16.mxu0 %v1714
    %1953 = vmatpush1.bf16.msra.mxu0 %v1713
    %1954 = vmatprep.subr.bf16.mxu0 %v1706
    %1955 = vmatpush1.bf16.msra.mxu0 %v1705
    %1956 = vmatprep.subr.bf16.mxu0 %v1698
    %1957 = vmatpush1.bf16.msra.mxu0 %v1697
    %1958 = vmatprep.subr.bf16.mxu0 0
    %1959 = vmatpush2.bf16.msra.mxu0 0
    %1960 = vmatprep.subr.bf16.mxu0 0
    %1961 = vmatpush2.bf16.msra.mxu0 0
    %1962 = vmatprep.subr.bf16.mxu0 0
    %1963 = vmatpush2.bf16.msra.mxu0 0
    %1964 = vmatprep.subr.bf16.mxu0 0
    %1965 = vmatpush2.bf16.msra.mxu0 0
    %1966 = vmatprep.subr.bf16.mxu0 0
    %1967 = vmatpush2.bf16.msra.mxu0 0
    %1968 = vmatprep.subr.bf16.mxu0 0
    %1969 = vmatpush2.bf16.msra.mxu0 0
    %1970 = vmatprep.subr.bf16.mxu0 0
    %1971 = vmatpush2.bf16.msra.mxu0 0
    %1972 = vmatprep.subr.bf16.mxu0 0
    %1973 = vmatpush2.bf16.msra.mxu0 0
    %1974 = vmatprep.mubr.bf16.mxu0 0
    %1975 = vmatmul.mubr.bf16.gmra.mxu0 %v885
    %v1976 = vpop.f32.mrf.mxu0
    %v1977 = vadd.f32 %v1493, %v1976
    %v1978 = vpop.f32.mrf.mxu0
    %v1979 = vadd.f32 %v1495, %v1978
    %v1980 = vpop.f32.mrf.mxu0
    %v1981 = vpop.f32.mrf.mxu0
    %1982 = vdwg.mxu0
    %v1983 = vld [vmem:[%s6] sm:$0xff]
    %v1985 = vlaneseq
    %v1986 = vshrl.u32 %v1985, 7
    %v1987 = vsub.s32 0, %v1986
    %v1988 = vrot.slane %v1983, %v1987
    %v1989 = vlaneseq
    %v1990 = vshrl.u32 %v1989, 7
    %v1991 = vsub.s32 1, %v1990
    %v1992 = vrot.slane %v1983, %v1991
    %v1993 = vlaneseq
    %v1994 = vshrl.u32 %v1993, 7
    %v1995 = vsub.s32 2, %v1994
    %v1996 = vrot.slane %v1983, %v1995
    %v1997 = vlaneseq
    %v1998 = vshrl.u32 %v1997, 7
    %v1999 = vsub.s32 3, %v1998
    %v2000 = vrot.slane %v1983, %v1999
    %v2001 = vlaneseq
    %v2002 = vshrl.u32 %v2001, 7
    %v2003 = vsub.s32 4, %v2002
    %v2004 = vrot.slane %v1983, %v2003
    %v2005 = vlaneseq
    %v2006 = vshrl.u32 %v2005, 7
    %v2007 = vsub.s32 5, %v2006
    %v2008 = vrot.slane %v1983, %v2007
    %v2009 = vlaneseq
    %v2010 = vshrl.u32 %v2009, 7
    %v2011 = vsub.s32 6, %v2010
    %v2012 = vrot.slane %v1983, %v2011
    %v2013 = vlaneseq
    %v2014 = vshrl.u32 %v2013, 7
    %v2015 = vsub.s32 7, %v2014
    %v2016 = vrot.slane %v1983, %v2015
    %v2025 = vadd.f32 %v1854, %v1988
    %v2026 = vadd.f32 %v1856, %v1992
    %v2027 = vadd.f32 %v1895, %v1996
    %v2028 = vadd.f32 %v1897, %v2000
    %v2029 = vadd.f32 %v1936, %v2004
    %v2030 = vadd.f32 %v1938, %v2008
    %v2031 = vadd.f32 %v1977, %v2012
    %v2032 = vadd.f32 %v1979, %v2016
    %v2033 = vmax.f32 %v2025, 0.0
    %v2034 = vmax.f32 %v2026, 0.0
    %v2035 = vmax.f32 %v2027, 0.0
    %v2036 = vmax.f32 %v2028, 0.0
    %v2037 = vmax.f32 %v2029, 0.0
    %v2038 = vmax.f32 %v2030, 0.0
    %v2039 = vmax.f32 %v2031, 0.0
    %v2040 = vmax.f32 %v2032, 0.0
    %v2041 = vpack.c.bf16 %v2033, %v2033
    %v2042 = vpack.c.bf16 %v2034, %v2034
    %v2043 = vpack.c.bf16 %v2035, %v2035
    %v2044 = vpack.c.bf16 %v2036, %v2036
    %v2045 = vpack.c.bf16 %v2037, %v2037
    %v2046 = vpack.c.bf16 %v2038, %v2038
    %v2047 = vpack.c.bf16 %v2039, %v2039
    %v2048 = vpack.c.bf16 %v2040, %v2040
    %v2049 = vld [vmem:[#allocation6] sm:$0xff]
    %v2050 = vld [vmem:[#allocation6 + $0x8] sm:$0xff]
    %v2051 = vld [vmem:[#allocation6 + $0x10] sm:$0xff]
    %v2052 = vld [vmem:[#allocation6 + $0x18] sm:$0xff]
    %v2053 = vld [vmem:[#allocation6 + $0x20] sm:$0xff]
    %v2054 = vld [vmem:[#allocation6 + $0x28] sm:$0xff]
    %v2055 = vld [vmem:[#allocation6 + $0x30] sm:$0xff]
    %v2056 = vld [vmem:[#allocation6 + $0x38] sm:$0xff]
    %v2057 = vld [vmem:[#allocation6 + $0x40] sm:$0xff]
    %v2058 = vld [vmem:[#allocation6 + $0x48] sm:$0xff]
    %v2059 = vld [vmem:[#allocation6 + $0x50] sm:$0xff]
    %v2060 = vld [vmem:[#allocation6 + $0x58] sm:$0xff]
    %v2061 = vld [vmem:[#allocation6 + $0x60] sm:$0xff]
    %v2062 = vld [vmem:[#allocation6 + $0x68] sm:$0xff]
    %v2063 = vld [vmem:[#allocation6 + $0x70] sm:$0xff]
    %v2064 = vld [vmem:[#allocation6 + $0x78] sm:$0xff]
    %v2065 = vld [vmem:[#allocation6 + $0x80] sm:$0xff]
    %v2066 = vld [vmem:[#allocation6 + $0x88] sm:$0xff]
    %v2067 = vld [vmem:[#allocation6 + $0x90] sm:$0xff]
    %v2068 = vld [vmem:[#allocation6 + $0x98] sm:$0xff]
    %v2069 = vld [vmem:[#allocation6 + $0xa0] sm:$0xff]
    %v2070 = vld [vmem:[#allocation6 + $0xa8] sm:$0xff]
    %v2071 = vld [vmem:[#allocation6 + $0xb0] sm:$0xff]
    %v2072 = vld [vmem:[#allocation6 + $0xb8] sm:$0xff]
    %v2073 = vld [vmem:[#allocation6 + $0xc0] sm:$0xff]
    %v2074 = vld [vmem:[#allocation6 + $0xc8] sm:$0xff]
    %v2075 = vld [vmem:[#allocation6 + $0xd0] sm:$0xff]
    %v2076 = vld [vmem:[#allocation6 + $0xd8] sm:$0xff]
    %v2077 = vld [vmem:[#allocation6 + $0xe0] sm:$0xff]
    %v2078 = vld [vmem:[#allocation6 + $0xe8] sm:$0xff]
    %v2079 = vld [vmem:[#allocation6 + $0xf0] sm:$0xff]
    %v2080 = vld [vmem:[#allocation6 + $0xf8] sm:$0xff]
    %v2081 = vld [vmem:[#allocation6 + $0x100] sm:$0xff]
    %v2082 = vld [vmem:[#allocation6 + $0x108] sm:$0xff]
    %v2083 = vld [vmem:[#allocation6 + $0x110] sm:$0xff]
    %v2084 = vld [vmem:[#allocation6 + $0x118] sm:$0xff]
    %v2085 = vld [vmem:[#allocation6 + $0x120] sm:$0xff]
    %v2086 = vld [vmem:[#allocation6 + $0x128] sm:$0xff]
    %v2087 = vld [vmem:[#allocation6 + $0x130] sm:$0xff]
    %v2088 = vld [vmem:[#allocation6 + $0x138] sm:$0xff]
    %v2089 = vld [vmem:[#allocation6 + $0x140] sm:$0xff]
    %v2090 = vld [vmem:[#allocation6 + $0x148] sm:$0xff]
    %v2091 = vld [vmem:[#allocation6 + $0x150] sm:$0xff]
    %v2092 = vld [vmem:[#allocation6 + $0x158] sm:$0xff]
    %v2093 = vld [vmem:[#allocation6 + $0x160] sm:$0xff]
    %v2094 = vld [vmem:[#allocation6 + $0x168] sm:$0xff]
    %v2095 = vld [vmem:[#allocation6 + $0x170] sm:$0xff]
    %v2096 = vld [vmem:[#allocation6 + $0x178] sm:$0xff]
    %v2097 = vld [vmem:[#allocation6 + $0x180] sm:$0xff]
    %v2098 = vld [vmem:[#allocation6 + $0x188] sm:$0xff]
    %v2099 = vld [vmem:[#allocation6 + $0x190] sm:$0xff]
    %v2100 = vld [vmem:[#allocation6 + $0x198] sm:$0xff]
    %v2101 = vld [vmem:[#allocation6 + $0x1a0] sm:$0xff]
    %v2102 = vld [vmem:[#allocation6 + $0x1a8] sm:$0xff]
    %v2103 = vld [vmem:[#allocation6 + $0x1b0] sm:$0xff]
    %v2104 = vld [vmem:[#allocation6 + $0x1b8] sm:$0xff]
    %v2105 = vld [vmem:[#allocation6 + $0x1c0] sm:$0xff]
    %v2106 = vld [vmem:[#allocation6 + $0x1c8] sm:$0xff]
    %v2107 = vld [vmem:[#allocation6 + $0x1d0] sm:$0xff]
    %v2108 = vld [vmem:[#allocation6 + $0x1d8] sm:$0xff]
    %v2109 = vld [vmem:[#allocation6 + $0x1e0] sm:$0xff]
    %v2110 = vld [vmem:[#allocation6 + $0x1e8] sm:$0xff]
    %v2111 = vld [vmem:[#allocation6 + $0x1f0] sm:$0xff]
    %v2112 = vld [vmem:[#allocation6 + $0x1f8] sm:$0xff]
    %v2113 = vld [vmem:[#allocation6 + $0x200] sm:$0xff]
    %v2114 = vld [vmem:[#allocation6 + $0x208] sm:$0xff]
    %v2115 = vld [vmem:[#allocation6 + $0x210] sm:$0xff]
    %v2116 = vld [vmem:[#allocation6 + $0x218] sm:$0xff]
    %v2117 = vld [vmem:[#allocation6 + $0x220] sm:$0xff]
    %v2118 = vld [vmem:[#allocation6 + $0x228] sm:$0xff]
    %v2119 = vld [vmem:[#allocation6 + $0x230] sm:$0xff]
    %v2120 = vld [vmem:[#allocation6 + $0x238] sm:$0xff]
    %v2121 = vld [vmem:[#allocation6 + $0x240] sm:$0xff]
    %v2122 = vld [vmem:[#allocation6 + $0x248] sm:$0xff]
    %v2123 = vld [vmem:[#allocation6 + $0x250] sm:$0xff]
    %v2124 = vld [vmem:[#allocation6 + $0x258] sm:$0xff]
    %v2125 = vld [vmem:[#allocation6 + $0x260] sm:$0xff]
    %v2126 = vld [vmem:[#allocation6 + $0x268] sm:$0xff]
    %v2127 = vld [vmem:[#allocation6 + $0x270] sm:$0xff]
    %v2128 = vld [vmem:[#allocation6 + $0x278] sm:$0xff]
    %v2129 = vld [vmem:[#allocation6 + $0x280] sm:$0xff]
    %v2130 = vld [vmem:[#allocation6 + $0x288] sm:$0xff]
    %v2131 = vld [vmem:[#allocation6 + $0x290] sm:$0xff]
    %v2132 = vld [vmem:[#allocation6 + $0x298] sm:$0xff]
    %v2133 = vld [vmem:[#allocation6 + $0x2a0] sm:$0xff]
    %v2134 = vld [vmem:[#allocation6 + $0x2a8] sm:$0xff]
    %v2135 = vld [vmem:[#allocation6 + $0x2b0] sm:$0xff]
    %v2136 = vld [vmem:[#allocation6 + $0x2b8] sm:$0xff]
    %v2137 = vld [vmem:[#allocation6 + $0x2c0] sm:$0xff]
    %v2138 = vld [vmem:[#allocation6 + $0x2c8] sm:$0xff]
    %v2139 = vld [vmem:[#allocation6 + $0x2d0] sm:$0xff]
    %v2140 = vld [vmem:[#allocation6 + $0x2d8] sm:$0xff]
    %v2141 = vld [vmem:[#allocation6 + $0x2e0] sm:$0xff]
    %v2142 = vld [vmem:[#allocation6 + $0x2e8] sm:$0xff]
    %v2143 = vld [vmem:[#allocation6 + $0x2f0] sm:$0xff]
    %v2144 = vld [vmem:[#allocation6 + $0x2f8] sm:$0xff]
    %v2145 = vld [vmem:[#allocation6 + $0x300] sm:$0xff]
    %v2146 = vld [vmem:[#allocation6 + $0x308] sm:$0xff]
    %v2147 = vld [vmem:[#allocation6 + $0x310] sm:$0xff]
    %v2148 = vld [vmem:[#allocation6 + $0x318] sm:$0xff]
    %v2149 = vld [vmem:[#allocation6 + $0x320] sm:$0xff]
    %v2150 = vld [vmem:[#allocation6 + $0x328] sm:$0xff]
    %v2151 = vld [vmem:[#allocation6 + $0x330] sm:$0xff]
    %v2152 = vld [vmem:[#allocation6 + $0x338] sm:$0xff]
    %v2153 = vld [vmem:[#allocation6 + $0x340] sm:$0xff]
    %v2154 = vld [vmem:[#allocation6 + $0x348] sm:$0xff]
    %v2155 = vld [vmem:[#allocation6 + $0x350] sm:$0xff]
    %v2156 = vld [vmem:[#allocation6 + $0x358] sm:$0xff]
    %v2157 = vld [vmem:[#allocation6 + $0x360] sm:$0xff]
    %v2158 = vld [vmem:[#allocation6 + $0x368] sm:$0xff]
    %v2159 = vld [vmem:[#allocation6 + $0x370] sm:$0xff]
    %v2160 = vld [vmem:[#allocation6 + $0x378] sm:$0xff]
    %v2161 = vld [vmem:[#allocation6 + $0x380] sm:$0xff]
    %v2162 = vld [vmem:[#allocation6 + $0x388] sm:$0xff]
    %v2163 = vld [vmem:[#allocation6 + $0x390] sm:$0xff]
    %v2164 = vld [vmem:[#allocation6 + $0x398] sm:$0xff]
    %v2165 = vld [vmem:[#allocation6 + $0x3a0] sm:$0xff]
    %v2166 = vld [vmem:[#allocation6 + $0x3a8] sm:$0xff]
    %v2167 = vld [vmem:[#allocation6 + $0x3b0] sm:$0xff]
    %v2168 = vld [vmem:[#allocation6 + $0x3b8] sm:$0xff]
    %v2169 = vld [vmem:[#allocation6 + $0x3c0] sm:$0xff]
    %v2170 = vld [vmem:[#allocation6 + $0x3c8] sm:$0xff]
    %v2171 = vld [vmem:[#allocation6 + $0x3d0] sm:$0xff]
    %v2172 = vld [vmem:[#allocation6 + $0x3d8] sm:$0xff]
    %v2173 = vld [vmem:[#allocation6 + $0x3e0] sm:$0xff]
    %v2174 = vld [vmem:[#allocation6 + $0x3e8] sm:$0xff]
    %v2175 = vld [vmem:[#allocation6 + $0x3f0] sm:$0xff]
    %v2176 = vld [vmem:[#allocation6 + $0x3f8] sm:$0xff]
    %v2177 = vld [vmem:[#allocation6 + $0x400] sm:$0xff]
    %v2178 = vld [vmem:[#allocation6 + $0x408] sm:$0xff]
    %v2179 = vld [vmem:[#allocation6 + $0x410] sm:$0xff]
    %v2180 = vld [vmem:[#allocation6 + $0x418] sm:$0xff]
    %v2181 = vld [vmem:[#allocation6 + $0x420] sm:$0xff]
    %v2182 = vld [vmem:[#allocation6 + $0x428] sm:$0xff]
    %v2183 = vld [vmem:[#allocation6 + $0x430] sm:$0xff]
    %v2184 = vld [vmem:[#allocation6 + $0x438] sm:$0xff]
    %v2185 = vld [vmem:[#allocation6 + $0x440] sm:$0xff]
    %v2186 = vld [vmem:[#allocation6 + $0x448] sm:$0xff]
    %v2187 = vld [vmem:[#allocation6 + $0x450] sm:$0xff]
    %v2188 = vld [vmem:[#allocation6 + $0x458] sm:$0xff]
    %v2189 = vld [vmem:[#allocation6 + $0x460] sm:$0xff]
    %v2190 = vld [vmem:[#allocation6 + $0x468] sm:$0xff]
    %v2191 = vld [vmem:[#allocation6 + $0x470] sm:$0xff]
    %v2192 = vld [vmem:[#allocation6 + $0x478] sm:$0xff]
    %v2193 = vld [vmem:[#allocation6 + $0x480] sm:$0xff]
    %v2194 = vld [vmem:[#allocation6 + $0x488] sm:$0xff]
    %v2195 = vld [vmem:[#allocation6 + $0x490] sm:$0xff]
    %v2196 = vld [vmem:[#allocation6 + $0x498] sm:$0xff]
    %v2197 = vld [vmem:[#allocation6 + $0x4a0] sm:$0xff]
    %v2198 = vld [vmem:[#allocation6 + $0x4a8] sm:$0xff]
    %v2199 = vld [vmem:[#allocation6 + $0x4b0] sm:$0xff]
    %v2200 = vld [vmem:[#allocation6 + $0x4b8] sm:$0xff]
    %v2201 = vld [vmem:[#allocation6 + $0x4c0] sm:$0xff]
    %v2202 = vld [vmem:[#allocation6 + $0x4c8] sm:$0xff]
    %v2203 = vld [vmem:[#allocation6 + $0x4d0] sm:$0xff]
    %v2204 = vld [vmem:[#allocation6 + $0x4d8] sm:$0xff]
    %v2205 = vld [vmem:[#allocation6 + $0x4e0] sm:$0xff]
    %v2206 = vld [vmem:[#allocation6 + $0x4e8] sm:$0xff]
    %v2207 = vld [vmem:[#allocation6 + $0x4f0] sm:$0xff]
    %v2208 = vld [vmem:[#allocation6 + $0x4f8] sm:$0xff]
    %v2209 = vld [vmem:[#allocation6 + $0x500] sm:$0xff]
    %v2210 = vld [vmem:[#allocation6 + $0x508] sm:$0xff]
    %v2211 = vld [vmem:[#allocation6 + $0x510] sm:$0xff]
    %v2212 = vld [vmem:[#allocation6 + $0x518] sm:$0xff]
    %v2213 = vld [vmem:[#allocation6 + $0x520] sm:$0xff]
    %v2214 = vld [vmem:[#allocation6 + $0x528] sm:$0xff]
    %v2215 = vld [vmem:[#allocation6 + $0x530] sm:$0xff]
    %v2216 = vld [vmem:[#allocation6 + $0x538] sm:$0xff]
    %v2217 = vld [vmem:[#allocation6 + $0x540] sm:$0xff]
    %v2218 = vld [vmem:[#allocation6 + $0x548] sm:$0xff]
    %v2219 = vld [vmem:[#allocation6 + $0x550] sm:$0xff]
    %v2220 = vld [vmem:[#allocation6 + $0x558] sm:$0xff]
    %v2221 = vld [vmem:[#allocation6 + $0x560] sm:$0xff]
    %v2222 = vld [vmem:[#allocation6 + $0x568] sm:$0xff]
    %v2223 = vld [vmem:[#allocation6 + $0x570] sm:$0xff]
    %v2224 = vld [vmem:[#allocation6 + $0x578] sm:$0xff]
    %v2225 = vld [vmem:[#allocation6 + $0x580] sm:$0xff]
    %v2226 = vld [vmem:[#allocation6 + $0x588] sm:$0xff]
    %v2227 = vld [vmem:[#allocation6 + $0x590] sm:$0xff]
    %v2228 = vld [vmem:[#allocation6 + $0x598] sm:$0xff]
    %v2229 = vld [vmem:[#allocation6 + $0x5a0] sm:$0xff]
    %v2230 = vld [vmem:[#allocation6 + $0x5a8] sm:$0xff]
    %v2231 = vld [vmem:[#allocation6 + $0x5b0] sm:$0xff]
    %v2232 = vld [vmem:[#allocation6 + $0x5b8] sm:$0xff]
    %v2233 = vld [vmem:[#allocation6 + $0x5c0] sm:$0xff]
    %v2234 = vld [vmem:[#allocation6 + $0x5c8] sm:$0xff]
    %v2235 = vld [vmem:[#allocation6 + $0x5d0] sm:$0xff]
    %v2236 = vld [vmem:[#allocation6 + $0x5d8] sm:$0xff]
    %v2237 = vld [vmem:[#allocation6 + $0x5e0] sm:$0xff]
    %v2238 = vld [vmem:[#allocation6 + $0x5e8] sm:$0xff]
    %v2239 = vld [vmem:[#allocation6 + $0x5f0] sm:$0xff]
    %v2240 = vld [vmem:[#allocation6 + $0x5f8] sm:$0xff]
    %v2241 = vld [vmem:[#allocation6 + $0x600] sm:$0xff]
    %v2242 = vld [vmem:[#allocation6 + $0x608] sm:$0xff]
    %v2243 = vld [vmem:[#allocation6 + $0x610] sm:$0xff]
    %v2244 = vld [vmem:[#allocation6 + $0x618] sm:$0xff]
    %v2245 = vld [vmem:[#allocation6 + $0x620] sm:$0xff]
    %v2246 = vld [vmem:[#allocation6 + $0x628] sm:$0xff]
    %v2247 = vld [vmem:[#allocation6 + $0x630] sm:$0xff]
    %v2248 = vld [vmem:[#allocation6 + $0x638] sm:$0xff]
    %v2249 = vld [vmem:[#allocation6 + $0x640] sm:$0xff]
    %v2250 = vld [vmem:[#allocation6 + $0x648] sm:$0xff]
    %v2251 = vld [vmem:[#allocation6 + $0x650] sm:$0xff]
    %v2252 = vld [vmem:[#allocation6 + $0x658] sm:$0xff]
    %v2253 = vld [vmem:[#allocation6 + $0x660] sm:$0xff]
    %v2254 = vld [vmem:[#allocation6 + $0x668] sm:$0xff]
    %v2255 = vld [vmem:[#allocation6 + $0x670] sm:$0xff]
    %v2256 = vld [vmem:[#allocation6 + $0x678] sm:$0xff]
    %v2257 = vld [vmem:[#allocation6 + $0x680] sm:$0xff]
    %v2258 = vld [vmem:[#allocation6 + $0x688] sm:$0xff]
    %v2259 = vld [vmem:[#allocation6 + $0x690] sm:$0xff]
    %v2260 = vld [vmem:[#allocation6 + $0x698] sm:$0xff]
    %v2261 = vld [vmem:[#allocation6 + $0x6a0] sm:$0xff]
    %v2262 = vld [vmem:[#allocation6 + $0x6a8] sm:$0xff]
    %v2263 = vld [vmem:[#allocation6 + $0x6b0] sm:$0xff]
    %v2264 = vld [vmem:[#allocation6 + $0x6b8] sm:$0xff]
    %v2265 = vld [vmem:[#allocation6 + $0x6c0] sm:$0xff]
    %v2266 = vld [vmem:[#allocation6 + $0x6c8] sm:$0xff]
    %v2267 = vld [vmem:[#allocation6 + $0x6d0] sm:$0xff]
    %v2268 = vld [vmem:[#allocation6 + $0x6d8] sm:$0xff]
    %v2269 = vld [vmem:[#allocation6 + $0x6e0] sm:$0xff]
    %v2270 = vld [vmem:[#allocation6 + $0x6e8] sm:$0xff]
    %v2271 = vld [vmem:[#allocation6 + $0x6f0] sm:$0xff]
    %v2272 = vld [vmem:[#allocation6 + $0x6f8] sm:$0xff]
    %v2273 = vld [vmem:[#allocation6 + $0x700] sm:$0xff]
    %v2274 = vld [vmem:[#allocation6 + $0x708] sm:$0xff]
    %v2275 = vld [vmem:[#allocation6 + $0x710] sm:$0xff]
    %v2276 = vld [vmem:[#allocation6 + $0x718] sm:$0xff]
    %v2277 = vld [vmem:[#allocation6 + $0x720] sm:$0xff]
    %v2278 = vld [vmem:[#allocation6 + $0x728] sm:$0xff]
    %v2279 = vld [vmem:[#allocation6 + $0x730] sm:$0xff]
    %v2280 = vld [vmem:[#allocation6 + $0x738] sm:$0xff]
    %v2281 = vld [vmem:[#allocation6 + $0x740] sm:$0xff]
    %v2282 = vld [vmem:[#allocation6 + $0x748] sm:$0xff]
    %v2283 = vld [vmem:[#allocation6 + $0x750] sm:$0xff]
    %v2284 = vld [vmem:[#allocation6 + $0x758] sm:$0xff]
    %v2285 = vld [vmem:[#allocation6 + $0x760] sm:$0xff]
    %v2286 = vld [vmem:[#allocation6 + $0x768] sm:$0xff]
    %v2287 = vld [vmem:[#allocation6 + $0x770] sm:$0xff]
    %v2288 = vld [vmem:[#allocation6 + $0x778] sm:$0xff]
    %v2289 = vld [vmem:[#allocation6 + $0x780] sm:$0xff]
    %v2290 = vld [vmem:[#allocation6 + $0x788] sm:$0xff]
    %v2291 = vld [vmem:[#allocation6 + $0x790] sm:$0xff]
    %v2292 = vld [vmem:[#allocation6 + $0x798] sm:$0xff]
    %v2293 = vld [vmem:[#allocation6 + $0x7a0] sm:$0xff]
    %v2294 = vld [vmem:[#allocation6 + $0x7a8] sm:$0xff]
    %v2295 = vld [vmem:[#allocation6 + $0x7b0] sm:$0xff]
    %v2296 = vld [vmem:[#allocation6 + $0x7b8] sm:$0xff]
    %v2297 = vld [vmem:[#allocation6 + $0x7c0] sm:$0xff]
    %v2298 = vld [vmem:[#allocation6 + $0x7c8] sm:$0xff]
    %v2299 = vld [vmem:[#allocation6 + $0x7d0] sm:$0xff]
    %v2300 = vld [vmem:[#allocation6 + $0x7d8] sm:$0xff]
    %v2301 = vld [vmem:[#allocation6 + $0x7e0] sm:$0xff]
    %v2302 = vld [vmem:[#allocation6 + $0x7e8] sm:$0xff]
    %v2303 = vld [vmem:[#allocation6 + $0x7f0] sm:$0xff]
    %v2304 = vld [vmem:[#allocation6 + $0x7f8] sm:$0xff]
    %v2305 = vld [vmem:[%s8] sm:$0xf]
    %v2307 = vlaneseq
    %v2308 = vshrl.u32 %v2307, 7
    %v2309 = vsub.s32 0, %v2308
    %v2310 = vrot.slane %v2305, %v2309
    %v2311 = vlaneseq
    %v2312 = vshrl.u32 %v2311, 7
    %v2313 = vsub.s32 1, %v2312
    %v2314 = vrot.slane %v2305, %v2313
    %v2315 = vlaneseq
    %v2316 = vshrl.u32 %v2315, 7
    %v2317 = vsub.s32 2, %v2316
    %v2318 = vrot.slane %v2305, %v2317
    %v2319 = vlaneseq
    %v2320 = vshrl.u32 %v2319, 7
    %v2321 = vsub.s32 3, %v2320
    %v2322 = vrot.slane %v2305, %v2321
    %v2583 = vunpack.c.l.b16 %v2049
    %v2584 = vunpack.c.h.b16 %v2049
    %v2585 = vunpack.c.l.b16 %v2050
    %v2586 = vunpack.c.h.b16 %v2050
    %v2587 = vunpack.c.l.b16 %v2051
    %v2588 = vunpack.c.h.b16 %v2051
    %v2589 = vunpack.c.l.b16 %v2052
    %v2590 = vunpack.c.h.b16 %v2052
    %v2591 = vunpack.c.l.b16 %v2053
    %v2592 = vunpack.c.h.b16 %v2053
    %v2593 = vunpack.c.l.b16 %v2054
    %v2594 = vunpack.c.h.b16 %v2054
    %v2595 = vunpack.c.l.b16 %v2055
    %v2596 = vunpack.c.h.b16 %v2055
    %v2597 = vunpack.c.l.b16 %v2056
    %v2598 = vunpack.c.h.b16 %v2056
    %v2599 = vunpack.c.l.b16 %v2057
    %v2600 = vunpack.c.h.b16 %v2057
    %v2601 = vunpack.c.l.b16 %v2058
    %v2602 = vunpack.c.h.b16 %v2058
    %v2603 = vunpack.c.l.b16 %v2059
    %v2604 = vunpack.c.h.b16 %v2059
    %v2605 = vunpack.c.l.b16 %v2060
    %v2606 = vunpack.c.h.b16 %v2060
    %v2607 = vunpack.c.l.b16 %v2061
    %v2608 = vunpack.c.h.b16 %v2061
    %v2609 = vunpack.c.l.b16 %v2062
    %v2610 = vunpack.c.h.b16 %v2062
    %v2611 = vunpack.c.l.b16 %v2063
    %v2612 = vunpack.c.h.b16 %v2063
    %v2613 = vunpack.c.l.b16 %v2064
    %v2614 = vunpack.c.h.b16 %v2064
    %v2615 = vunpack.c.l.b16 %v2065
    %v2616 = vunpack.c.h.b16 %v2065
    %v2617 = vunpack.c.l.b16 %v2066
    %v2618 = vunpack.c.h.b16 %v2066
    %v2619 = vunpack.c.l.b16 %v2067
    %v2620 = vunpack.c.h.b16 %v2067
    %v2621 = vunpack.c.l.b16 %v2068
    %v2622 = vunpack.c.h.b16 %v2068
    %v2623 = vunpack.c.l.b16 %v2069
    %v2624 = vunpack.c.h.b16 %v2069
    %v2625 = vunpack.c.l.b16 %v2070
    %v2626 = vunpack.c.h.b16 %v2070
    %v2627 = vunpack.c.l.b16 %v2071
    %v2628 = vunpack.c.h.b16 %v2071
    %v2629 = vunpack.c.l.b16 %v2072
    %v2630 = vunpack.c.h.b16 %v2072
    %v2631 = vunpack.c.l.b16 %v2073
    %v2632 = vunpack.c.h.b16 %v2073
    %v2633 = vunpack.c.l.b16 %v2074
    %v2634 = vunpack.c.h.b16 %v2074
    %v2635 = vunpack.c.l.b16 %v2075
    %v2636 = vunpack.c.h.b16 %v2075
    %v2637 = vunpack.c.l.b16 %v2076
    %v2638 = vunpack.c.h.b16 %v2076
    %v2639 = vunpack.c.l.b16 %v2077
    %v2640 = vunpack.c.h.b16 %v2077
    %v2641 = vunpack.c.l.b16 %v2078
    %v2642 = vunpack.c.h.b16 %v2078
    %v2643 = vunpack.c.l.b16 %v2079
    %v2644 = vunpack.c.h.b16 %v2079
    %v2645 = vunpack.c.l.b16 %v2080
    %v2646 = vunpack.c.h.b16 %v2080
    %v2647 = vunpack.c.l.b16 %v2081
    %v2648 = vunpack.c.h.b16 %v2081
    %v2649 = vunpack.c.l.b16 %v2082
    %v2650 = vunpack.c.h.b16 %v2082
    %v2651 = vunpack.c.l.b16 %v2083
    %v2652 = vunpack.c.h.b16 %v2083
    %v2653 = vunpack.c.l.b16 %v2084
    %v2654 = vunpack.c.h.b16 %v2084
    %v2655 = vunpack.c.l.b16 %v2085
    %v2656 = vunpack.c.h.b16 %v2085
    %v2657 = vunpack.c.l.b16 %v2086
    %v2658 = vunpack.c.h.b16 %v2086
    %v2659 = vunpack.c.l.b16 %v2087
    %v2660 = vunpack.c.h.b16 %v2087
    %v2661 = vunpack.c.l.b16 %v2088
    %v2662 = vunpack.c.h.b16 %v2088
    %v2663 = vunpack.c.l.b16 %v2089
    %v2664 = vunpack.c.h.b16 %v2089
    %v2665 = vunpack.c.l.b16 %v2090
    %v2666 = vunpack.c.h.b16 %v2090
    %v2667 = vunpack.c.l.b16 %v2091
    %v2668 = vunpack.c.h.b16 %v2091
    %v2669 = vunpack.c.l.b16 %v2092
    %v2670 = vunpack.c.h.b16 %v2092
    %v2671 = vunpack.c.l.b16 %v2093
    %v2672 = vunpack.c.h.b16 %v2093
    %v2673 = vunpack.c.l.b16 %v2094
    %v2674 = vunpack.c.h.b16 %v2094
    %v2675 = vunpack.c.l.b16 %v2095
    %v2676 = vunpack.c.h.b16 %v2095
    %v2677 = vunpack.c.l.b16 %v2096
    %v2678 = vunpack.c.h.b16 %v2096
    %v2679 = vunpack.c.l.b16 %v2097
    %v2680 = vunpack.c.h.b16 %v2097
    %v2681 = vunpack.c.l.b16 %v2098
    %v2682 = vunpack.c.h.b16 %v2098
    %v2683 = vunpack.c.l.b16 %v2099
    %v2684 = vunpack.c.h.b16 %v2099
    %v2685 = vunpack.c.l.b16 %v2100
    %v2686 = vunpack.c.h.b16 %v2100
    %v2687 = vunpack.c.l.b16 %v2101
    %v2688 = vunpack.c.h.b16 %v2101
    %v2689 = vunpack.c.l.b16 %v2102
    %v2690 = vunpack.c.h.b16 %v2102
    %v2691 = vunpack.c.l.b16 %v2103
    %v2692 = vunpack.c.h.b16 %v2103
    %v2693 = vunpack.c.l.b16 %v2104
    %v2694 = vunpack.c.h.b16 %v2104
    %v2695 = vunpack.c.l.b16 %v2105
    %v2696 = vunpack.c.h.b16 %v2105
    %v2697 = vunpack.c.l.b16 %v2106
    %v2698 = vunpack.c.h.b16 %v2106
    %v2699 = vunpack.c.l.b16 %v2107
    %v2700 = vunpack.c.h.b16 %v2107
    %v2701 = vunpack.c.l.b16 %v2108
    %v2702 = vunpack.c.h.b16 %v2108
    %v2703 = vunpack.c.l.b16 %v2109
    %v2704 = vunpack.c.h.b16 %v2109
    %v2705 = vunpack.c.l.b16 %v2110
    %v2706 = vunpack.c.h.b16 %v2110
    %v2707 = vunpack.c.l.b16 %v2111
    %v2708 = vunpack.c.h.b16 %v2111
    %v2709 = vunpack.c.l.b16 %v2112
    %v2710 = vunpack.c.h.b16 %v2112
    %v2711 = vunpack.c.l.b16 %v2113
    %v2712 = vunpack.c.h.b16 %v2113
    %v2713 = vunpack.c.l.b16 %v2114
    %v2714 = vunpack.c.h.b16 %v2114
    %v2715 = vunpack.c.l.b16 %v2115
    %v2716 = vunpack.c.h.b16 %v2115
    %v2717 = vunpack.c.l.b16 %v2116
    %v2718 = vunpack.c.h.b16 %v2116
    %v2719 = vunpack.c.l.b16 %v2117
    %v2720 = vunpack.c.h.b16 %v2117
    %v2721 = vunpack.c.l.b16 %v2118
    %v2722 = vunpack.c.h.b16 %v2118
    %v2723 = vunpack.c.l.b16 %v2119
    %v2724 = vunpack.c.h.b16 %v2119
    %v2725 = vunpack.c.l.b16 %v2120
    %v2726 = vunpack.c.h.b16 %v2120
    %v2727 = vunpack.c.l.b16 %v2121
    %v2728 = vunpack.c.h.b16 %v2121
    %v2729 = vunpack.c.l.b16 %v2122
    %v2730 = vunpack.c.h.b16 %v2122
    %v2731 = vunpack.c.l.b16 %v2123
    %v2732 = vunpack.c.h.b16 %v2123
    %v2733 = vunpack.c.l.b16 %v2124
    %v2734 = vunpack.c.h.b16 %v2124
    %v2735 = vunpack.c.l.b16 %v2125
    %v2736 = vunpack.c.h.b16 %v2125
    %v2737 = vunpack.c.l.b16 %v2126
    %v2738 = vunpack.c.h.b16 %v2126
    %v2739 = vunpack.c.l.b16 %v2127
    %v2740 = vunpack.c.h.b16 %v2127
    %v2741 = vunpack.c.l.b16 %v2128
    %v2742 = vunpack.c.h.b16 %v2128
    %v2743 = vunpack.c.l.b16 %v2129
    %v2744 = vunpack.c.h.b16 %v2129
    %v2745 = vunpack.c.l.b16 %v2130
    %v2746 = vunpack.c.h.b16 %v2130
    %v2747 = vunpack.c.l.b16 %v2131
    %v2748 = vunpack.c.h.b16 %v2131
    %v2749 = vunpack.c.l.b16 %v2132
    %v2750 = vunpack.c.h.b16 %v2132
    %v2751 = vunpack.c.l.b16 %v2133
    %v2752 = vunpack.c.h.b16 %v2133
    %v2753 = vunpack.c.l.b16 %v2134
    %v2754 = vunpack.c.h.b16 %v2134
    %v2755 = vunpack.c.l.b16 %v2135
    %v2756 = vunpack.c.h.b16 %v2135
    %v2757 = vunpack.c.l.b16 %v2136
    %v2758 = vunpack.c.h.b16 %v2136
    %v2759 = vunpack.c.l.b16 %v2137
    %v2760 = vunpack.c.h.b16 %v2137
    %v2761 = vunpack.c.l.b16 %v2138
    %v2762 = vunpack.c.h.b16 %v2138
    %v2763 = vunpack.c.l.b16 %v2139
    %v2764 = vunpack.c.h.b16 %v2139
    %v2765 = vunpack.c.l.b16 %v2140
    %v2766 = vunpack.c.h.b16 %v2140
    %v2767 = vunpack.c.l.b16 %v2141
    %v2768 = vunpack.c.h.b16 %v2141
    %v2769 = vunpack.c.l.b16 %v2142
    %v2770 = vunpack.c.h.b16 %v2142
    %v2771 = vunpack.c.l.b16 %v2143
    %v2772 = vunpack.c.h.b16 %v2143
    %v2773 = vunpack.c.l.b16 %v2144
    %v2774 = vunpack.c.h.b16 %v2144
    %v2775 = vunpack.c.l.b16 %v2145
    %v2776 = vunpack.c.h.b16 %v2145
    %v2777 = vunpack.c.l.b16 %v2146
    %v2778 = vunpack.c.h.b16 %v2146
    %v2779 = vunpack.c.l.b16 %v2147
    %v2780 = vunpack.c.h.b16 %v2147
    %v2781 = vunpack.c.l.b16 %v2148
    %v2782 = vunpack.c.h.b16 %v2148
    %v2783 = vunpack.c.l.b16 %v2149
    %v2784 = vunpack.c.h.b16 %v2149
    %v2785 = vunpack.c.l.b16 %v2150
    %v2786 = vunpack.c.h.b16 %v2150
    %v2787 = vunpack.c.l.b16 %v2151
    %v2788 = vunpack.c.h.b16 %v2151
    %v2789 = vunpack.c.l.b16 %v2152
    %v2790 = vunpack.c.h.b16 %v2152
    %v2791 = vunpack.c.l.b16 %v2153
    %v2792 = vunpack.c.h.b16 %v2153
    %v2793 = vunpack.c.l.b16 %v2154
    %v2794 = vunpack.c.h.b16 %v2154
    %v2795 = vunpack.c.l.b16 %v2155
    %v2796 = vunpack.c.h.b16 %v2155
    %v2797 = vunpack.c.l.b16 %v2156
    %v2798 = vunpack.c.h.b16 %v2156
    %v2799 = vunpack.c.l.b16 %v2157
    %v2800 = vunpack.c.h.b16 %v2157
    %v2801 = vunpack.c.l.b16 %v2158
    %v2802 = vunpack.c.h.b16 %v2158
    %v2803 = vunpack.c.l.b16 %v2159
    %v2804 = vunpack.c.h.b16 %v2159
    %v2805 = vunpack.c.l.b16 %v2160
    %v2806 = vunpack.c.h.b16 %v2160
    %v2807 = vunpack.c.l.b16 %v2161
    %v2808 = vunpack.c.h.b16 %v2161
    %v2809 = vunpack.c.l.b16 %v2162
    %v2810 = vunpack.c.h.b16 %v2162
    %v2811 = vunpack.c.l.b16 %v2163
    %v2812 = vunpack.c.h.b16 %v2163
    %v2813 = vunpack.c.l.b16 %v2164
    %v2814 = vunpack.c.h.b16 %v2164
    %v2815 = vunpack.c.l.b16 %v2165
    %v2816 = vunpack.c.h.b16 %v2165
    %v2817 = vunpack.c.l.b16 %v2166
    %v2818 = vunpack.c.h.b16 %v2166
    %v2819 = vunpack.c.l.b16 %v2167
    %v2820 = vunpack.c.h.b16 %v2167
    %v2821 = vunpack.c.l.b16 %v2168
    %v2822 = vunpack.c.h.b16 %v2168
    %v2823 = vunpack.c.l.b16 %v2169
    %v2824 = vunpack.c.h.b16 %v2169
    %v2825 = vunpack.c.l.b16 %v2170
    %v2826 = vunpack.c.h.b16 %v2170
    %v2827 = vunpack.c.l.b16 %v2171
    %v2828 = vunpack.c.h.b16 %v2171
    %v2829 = vunpack.c.l.b16 %v2172
    %v2830 = vunpack.c.h.b16 %v2172
    %v2831 = vunpack.c.l.b16 %v2173
    %v2832 = vunpack.c.h.b16 %v2173
    %v2833 = vunpack.c.l.b16 %v2174
    %v2834 = vunpack.c.h.b16 %v2174
    %v2835 = vunpack.c.l.b16 %v2175
    %v2836 = vunpack.c.h.b16 %v2175
    %v2837 = vunpack.c.l.b16 %v2176
    %v2838 = vunpack.c.h.b16 %v2176
    %v2839 = vunpack.c.l.b16 %v2177
    %v2840 = vunpack.c.h.b16 %v2177
    %v2841 = vunpack.c.l.b16 %v2178
    %v2842 = vunpack.c.h.b16 %v2178
    %v2843 = vunpack.c.l.b16 %v2179
    %v2844 = vunpack.c.h.b16 %v2179
    %v2845 = vunpack.c.l.b16 %v2180
    %v2846 = vunpack.c.h.b16 %v2180
    %v2847 = vunpack.c.l.b16 %v2181
    %v2848 = vunpack.c.h.b16 %v2181
    %v2849 = vunpack.c.l.b16 %v2182
    %v2850 = vunpack.c.h.b16 %v2182
    %v2851 = vunpack.c.l.b16 %v2183
    %v2852 = vunpack.c.h.b16 %v2183
    %v2853 = vunpack.c.l.b16 %v2184
    %v2854 = vunpack.c.h.b16 %v2184
    %v2855 = vunpack.c.l.b16 %v2185
    %v2856 = vunpack.c.h.b16 %v2185
    %v2857 = vunpack.c.l.b16 %v2186
    %v2858 = vunpack.c.h.b16 %v2186
    %v2859 = vunpack.c.l.b16 %v2187
    %v2860 = vunpack.c.h.b16 %v2187
    %v2861 = vunpack.c.l.b16 %v2188
    %v2862 = vunpack.c.h.b16 %v2188
    %v2863 = vunpack.c.l.b16 %v2189
    %v2864 = vunpack.c.h.b16 %v2189
    %v2865 = vunpack.c.l.b16 %v2190
    %v2866 = vunpack.c.h.b16 %v2190
    %v2867 = vunpack.c.l.b16 %v2191
    %v2868 = vunpack.c.h.b16 %v2191
    %v2869 = vunpack.c.l.b16 %v2192
    %v2870 = vunpack.c.h.b16 %v2192
    %v2871 = vunpack.c.l.b16 %v2193
    %v2872 = vunpack.c.h.b16 %v2193
    %v2873 = vunpack.c.l.b16 %v2194
    %v2874 = vunpack.c.h.b16 %v2194
    %v2875 = vunpack.c.l.b16 %v2195
    %v2876 = vunpack.c.h.b16 %v2195
    %v2877 = vunpack.c.l.b16 %v2196
    %v2878 = vunpack.c.h.b16 %v2196
    %v2879 = vunpack.c.l.b16 %v2197
    %v2880 = vunpack.c.h.b16 %v2197
    %v2881 = vunpack.c.l.b16 %v2198
    %v2882 = vunpack.c.h.b16 %v2198
    %v2883 = vunpack.c.l.b16 %v2199
    %v2884 = vunpack.c.h.b16 %v2199
    %v2885 = vunpack.c.l.b16 %v2200
    %v2886 = vunpack.c.h.b16 %v2200
    %v2887 = vunpack.c.l.b16 %v2201
    %v2888 = vunpack.c.h.b16 %v2201
    %v2889 = vunpack.c.l.b16 %v2202
    %v2890 = vunpack.c.h.b16 %v2202
    %v2891 = vunpack.c.l.b16 %v2203
    %v2892 = vunpack.c.h.b16 %v2203
    %v2893 = vunpack.c.l.b16 %v2204
    %v2894 = vunpack.c.h.b16 %v2204
    %v2895 = vunpack.c.l.b16 %v2205
    %v2896 = vunpack.c.h.b16 %v2205
    %v2897 = vunpack.c.l.b16 %v2206
    %v2898 = vunpack.c.h.b16 %v2206
    %v2899 = vunpack.c.l.b16 %v2207
    %v2900 = vunpack.c.h.b16 %v2207
    %v2901 = vunpack.c.l.b16 %v2208
    %v2902 = vunpack.c.h.b16 %v2208
    %v2903 = vunpack.c.l.b16 %v2209
    %v2904 = vunpack.c.h.b16 %v2209
    %v2905 = vunpack.c.l.b16 %v2210
    %v2906 = vunpack.c.h.b16 %v2210
    %v2907 = vunpack.c.l.b16 %v2211
    %v2908 = vunpack.c.h.b16 %v2211
    %v2909 = vunpack.c.l.b16 %v2212
    %v2910 = vunpack.c.h.b16 %v2212
    %v2911 = vunpack.c.l.b16 %v2213
    %v2912 = vunpack.c.h.b16 %v2213
    %v2913 = vunpack.c.l.b16 %v2214
    %v2914 = vunpack.c.h.b16 %v2214
    %v2915 = vunpack.c.l.b16 %v2215
    %v2916 = vunpack.c.h.b16 %v2215
    %v2917 = vunpack.c.l.b16 %v2216
    %v2918 = vunpack.c.h.b16 %v2216
    %v2919 = vunpack.c.l.b16 %v2217
    %v2920 = vunpack.c.h.b16 %v2217
    %v2921 = vunpack.c.l.b16 %v2218
    %v2922 = vunpack.c.h.b16 %v2218
    %v2923 = vunpack.c.l.b16 %v2219
    %v2924 = vunpack.c.h.b16 %v2219
    %v2925 = vunpack.c.l.b16 %v2220
    %v2926 = vunpack.c.h.b16 %v2220
    %v2927 = vunpack.c.l.b16 %v2221
    %v2928 = vunpack.c.h.b16 %v2221
    %v2929 = vunpack.c.l.b16 %v2222
    %v2930 = vunpack.c.h.b16 %v2222
    %v2931 = vunpack.c.l.b16 %v2223
    %v2932 = vunpack.c.h.b16 %v2223
    %v2933 = vunpack.c.l.b16 %v2224
    %v2934 = vunpack.c.h.b16 %v2224
    %v2935 = vunpack.c.l.b16 %v2225
    %v2936 = vunpack.c.h.b16 %v2225
    %v2937 = vunpack.c.l.b16 %v2226
    %v2938 = vunpack.c.h.b16 %v2226
    %v2939 = vunpack.c.l.b16 %v2227
    %v2940 = vunpack.c.h.b16 %v2227
    %v2941 = vunpack.c.l.b16 %v2228
    %v2942 = vunpack.c.h.b16 %v2228
    %v2943 = vunpack.c.l.b16 %v2229
    %v2944 = vunpack.c.h.b16 %v2229
    %v2945 = vunpack.c.l.b16 %v2230
    %v2946 = vunpack.c.h.b16 %v2230
    %v2947 = vunpack.c.l.b16 %v2231
    %v2948 = vunpack.c.h.b16 %v2231
    %v2949 = vunpack.c.l.b16 %v2232
    %v2950 = vunpack.c.h.b16 %v2232
    %v2951 = vunpack.c.l.b16 %v2233
    %v2952 = vunpack.c.h.b16 %v2233
    %v2953 = vunpack.c.l.b16 %v2234
    %v2954 = vunpack.c.h.b16 %v2234
    %v2955 = vunpack.c.l.b16 %v2235
    %v2956 = vunpack.c.h.b16 %v2235
    %v2957 = vunpack.c.l.b16 %v2236
    %v2958 = vunpack.c.h.b16 %v2236
    %v2959 = vunpack.c.l.b16 %v2237
    %v2960 = vunpack.c.h.b16 %v2237
    %v2961 = vunpack.c.l.b16 %v2238
    %v2962 = vunpack.c.h.b16 %v2238
    %v2963 = vunpack.c.l.b16 %v2239
    %v2964 = vunpack.c.h.b16 %v2239
    %v2965 = vunpack.c.l.b16 %v2240
    %v2966 = vunpack.c.h.b16 %v2240
    %v2967 = vunpack.c.l.b16 %v2241
    %v2968 = vunpack.c.h.b16 %v2241
    %v2969 = vunpack.c.l.b16 %v2242
    %v2970 = vunpack.c.h.b16 %v2242
    %v2971 = vunpack.c.l.b16 %v2243
    %v2972 = vunpack.c.h.b16 %v2243
    %v2973 = vunpack.c.l.b16 %v2244
    %v2974 = vunpack.c.h.b16 %v2244
    %v2975 = vunpack.c.l.b16 %v2245
    %v2976 = vunpack.c.h.b16 %v2245
    %v2977 = vunpack.c.l.b16 %v2246
    %v2978 = vunpack.c.h.b16 %v2246
    %v2979 = vunpack.c.l.b16 %v2247
    %v2980 = vunpack.c.h.b16 %v2247
    %v2981 = vunpack.c.l.b16 %v2248
    %v2982 = vunpack.c.h.b16 %v2248
    %v2983 = vunpack.c.l.b16 %v2249
    %v2984 = vunpack.c.h.b16 %v2249
    %v2985 = vunpack.c.l.b16 %v2250
    %v2986 = vunpack.c.h.b16 %v2250
    %v2987 = vunpack.c.l.b16 %v2251
    %v2988 = vunpack.c.h.b16 %v2251
    %v2989 = vunpack.c.l.b16 %v2252
    %v2990 = vunpack.c.h.b16 %v2252
    %v2991 = vunpack.c.l.b16 %v2253
    %v2992 = vunpack.c.h.b16 %v2253
    %v2993 = vunpack.c.l.b16 %v2254
    %v2994 = vunpack.c.h.b16 %v2254
    %v2995 = vunpack.c.l.b16 %v2255
    %v2996 = vunpack.c.h.b16 %v2255
    %v2997 = vunpack.c.l.b16 %v2256
    %v2998 = vunpack.c.h.b16 %v2256
    %v2999 = vunpack.c.l.b16 %v2257
    %v3000 = vunpack.c.h.b16 %v2257
    %v3001 = vunpack.c.l.b16 %v2258
    %v3002 = vunpack.c.h.b16 %v2258
    %v3003 = vunpack.c.l.b16 %v2259
    %v3004 = vunpack.c.h.b16 %v2259
    %v3005 = vunpack.c.l.b16 %v2260
    %v3006 = vunpack.c.h.b16 %v2260
    %v3007 = vunpack.c.l.b16 %v2261
    %v3008 = vunpack.c.h.b16 %v2261
    %v3009 = vunpack.c.l.b16 %v2262
    %v3010 = vunpack.c.h.b16 %v2262
    %v3011 = vunpack.c.l.b16 %v2263
    %v3012 = vunpack.c.h.b16 %v2263
    %v3013 = vunpack.c.l.b16 %v2264
    %v3014 = vunpack.c.h.b16 %v2264
    %v3015 = vunpack.c.l.b16 %v2265
    %v3016 = vunpack.c.h.b16 %v2265
    %v3017 = vunpack.c.l.b16 %v2266
    %v3018 = vunpack.c.h.b16 %v2266
    %v3019 = vunpack.c.l.b16 %v2267
    %v3020 = vunpack.c.h.b16 %v2267
    %v3021 = vunpack.c.l.b16 %v2268
    %v3022 = vunpack.c.h.b16 %v2268
    %v3023 = vunpack.c.l.b16 %v2269
    %v3024 = vunpack.c.h.b16 %v2269
    %v3025 = vunpack.c.l.b16 %v2270
    %v3026 = vunpack.c.h.b16 %v2270
    %v3027 = vunpack.c.l.b16 %v2271
    %v3028 = vunpack.c.h.b16 %v2271
    %v3029 = vunpack.c.l.b16 %v2272
    %v3030 = vunpack.c.h.b16 %v2272
    %v3031 = vunpack.c.l.b16 %v2273
    %v3032 = vunpack.c.h.b16 %v2273
    %v3033 = vunpack.c.l.b16 %v2274
    %v3034 = vunpack.c.h.b16 %v2274
    %v3035 = vunpack.c.l.b16 %v2275
    %v3036 = vunpack.c.h.b16 %v2275
    %v3037 = vunpack.c.l.b16 %v2276
    %v3038 = vunpack.c.h.b16 %v2276
    %v3039 = vunpack.c.l.b16 %v2277
    %v3040 = vunpack.c.h.b16 %v2277
    %v3041 = vunpack.c.l.b16 %v2278
    %v3042 = vunpack.c.h.b16 %v2278
    %v3043 = vunpack.c.l.b16 %v2279
    %v3044 = vunpack.c.h.b16 %v2279
    %v3045 = vunpack.c.l.b16 %v2280
    %v3046 = vunpack.c.h.b16 %v2280
    %v3047 = vunpack.c.l.b16 %v2281
    %v3048 = vunpack.c.h.b16 %v2281
    %v3049 = vunpack.c.l.b16 %v2282
    %v3050 = vunpack.c.h.b16 %v2282
    %v3051 = vunpack.c.l.b16 %v2283
    %v3052 = vunpack.c.h.b16 %v2283
    %v3053 = vunpack.c.l.b16 %v2284
    %v3054 = vunpack.c.h.b16 %v2284
    %v3055 = vunpack.c.l.b16 %v2285
    %v3056 = vunpack.c.h.b16 %v2285
    %v3057 = vunpack.c.l.b16 %v2286
    %v3058 = vunpack.c.h.b16 %v2286
    %v3059 = vunpack.c.l.b16 %v2287
    %v3060 = vunpack.c.h.b16 %v2287
    %v3061 = vunpack.c.l.b16 %v2288
    %v3062 = vunpack.c.h.b16 %v2288
    %v3063 = vunpack.c.l.b16 %v2289
    %v3064 = vunpack.c.h.b16 %v2289
    %v3065 = vunpack.c.l.b16 %v2290
    %v3066 = vunpack.c.h.b16 %v2290
    %v3067 = vunpack.c.l.b16 %v2291
    %v3068 = vunpack.c.h.b16 %v2291
    %v3069 = vunpack.c.l.b16 %v2292
    %v3070 = vunpack.c.h.b16 %v2292
    %v3071 = vunpack.c.l.b16 %v2293
    %v3072 = vunpack.c.h.b16 %v2293
    %v3073 = vunpack.c.l.b16 %v2294
    %v3074 = vunpack.c.h.b16 %v2294
    %v3075 = vunpack.c.l.b16 %v2295
    %v3076 = vunpack.c.h.b16 %v2295
    %v3077 = vunpack.c.l.b16 %v2296
    %v3078 = vunpack.c.h.b16 %v2296
    %v3079 = vunpack.c.l.b16 %v2297
    %v3080 = vunpack.c.h.b16 %v2297
    %v3081 = vunpack.c.l.b16 %v2298
    %v3082 = vunpack.c.h.b16 %v2298
    %v3083 = vunpack.c.l.b16 %v2299
    %v3084 = vunpack.c.h.b16 %v2299
    %v3085 = vunpack.c.l.b16 %v2300
    %v3086 = vunpack.c.h.b16 %v2300
    %v3087 = vunpack.c.l.b16 %v2301
    %v3088 = vunpack.c.h.b16 %v2301
    %v3089 = vunpack.c.l.b16 %v2302
    %v3090 = vunpack.c.h.b16 %v2302
    %v3091 = vunpack.c.l.b16 %v2303
    %v3092 = vunpack.c.h.b16 %v2303
    %v3093 = vunpack.c.l.b16 %v2304
    %v3094 = vunpack.c.h.b16 %v2304
    %v3095 = vpack.c.b16 %v2587, %v2583
    %v3096 = vpack.c.b16 %v2588, %v2584
    %v3097 = vpack.c.b16 %v2589, %v2585
    %v3098 = vpack.c.b16 %v2590, %v2586
    %v3099 = vpack.c.b16 %v2595, %v2591
    %v3100 = vpack.c.b16 %v2596, %v2592
    %v3101 = vpack.c.b16 %v2597, %v2593
    %v3102 = vpack.c.b16 %v2598, %v2594
    %v3103 = vpack.c.b16 %v2603, %v2599
    %v3104 = vpack.c.b16 %v2604, %v2600
    %v3105 = vpack.c.b16 %v2605, %v2601
    %v3106 = vpack.c.b16 %v2606, %v2602
    %v3107 = vpack.c.b16 %v2611, %v2607
    %v3108 = vpack.c.b16 %v2612, %v2608
    %v3109 = vpack.c.b16 %v2613, %v2609
    %v3110 = vpack.c.b16 %v2614, %v2610
    %v3111 = vpack.c.b16 %v2619, %v2615
    %v3112 = vpack.c.b16 %v2620, %v2616
    %v3113 = vpack.c.b16 %v2621, %v2617
    %v3114 = vpack.c.b16 %v2622, %v2618
    %v3115 = vpack.c.b16 %v2627, %v2623
    %v3116 = vpack.c.b16 %v2628, %v2624
    %v3117 = vpack.c.b16 %v2629, %v2625
    %v3118 = vpack.c.b16 %v2630, %v2626
    %v3119 = vpack.c.b16 %v2635, %v2631
    %v3120 = vpack.c.b16 %v2636, %v2632
    %v3121 = vpack.c.b16 %v2637, %v2633
    %v3122 = vpack.c.b16 %v2638, %v2634
    %v3123 = vpack.c.b16 %v2643, %v2639
    %v3124 = vpack.c.b16 %v2644, %v2640
    %v3125 = vpack.c.b16 %v2645, %v2641
    %v3126 = vpack.c.b16 %v2646, %v2642
    %v3127 = vpack.c.b16 %v2651, %v2647
    %v3128 = vpack.c.b16 %v2652, %v2648
    %v3129 = vpack.c.b16 %v2653, %v2649
    %v3130 = vpack.c.b16 %v2654, %v2650
    %v3131 = vpack.c.b16 %v2659, %v2655
    %v3132 = vpack.c.b16 %v2660, %v2656
    %v3133 = vpack.c.b16 %v2661, %v2657
    %v3134 = vpack.c.b16 %v2662, %v2658
    %v3135 = vpack.c.b16 %v2667, %v2663
    %v3136 = vpack.c.b16 %v2668, %v2664
    %v3137 = vpack.c.b16 %v2669, %v2665
    %v3138 = vpack.c.b16 %v2670, %v2666
    %v3139 = vpack.c.b16 %v2675, %v2671
    %v3140 = vpack.c.b16 %v2676, %v2672
    %v3141 = vpack.c.b16 %v2677, %v2673
    %v3142 = vpack.c.b16 %v2678, %v2674
    %v3143 = vpack.c.b16 %v2683, %v2679
    %v3144 = vpack.c.b16 %v2684, %v2680
    %v3145 = vpack.c.b16 %v2685, %v2681
    %v3146 = vpack.c.b16 %v2686, %v2682
    %v3147 = vpack.c.b16 %v2691, %v2687
    %v3148 = vpack.c.b16 %v2692, %v2688
    %v3149 = vpack.c.b16 %v2693, %v2689
    %v3150 = vpack.c.b16 %v2694, %v2690
    %v3151 = vpack.c.b16 %v2699, %v2695
    %v3152 = vpack.c.b16 %v2700, %v2696
    %v3153 = vpack.c.b16 %v2701, %v2697
    %v3154 = vpack.c.b16 %v2702, %v2698
    %v3155 = vpack.c.b16 %v2707, %v2703
    %v3156 = vpack.c.b16 %v2708, %v2704
    %v3157 = vpack.c.b16 %v2709, %v2705
    %v3158 = vpack.c.b16 %v2710, %v2706
    %v3159 = vpack.c.b16 %v2715, %v2711
    %v3160 = vpack.c.b16 %v2716, %v2712
    %v3161 = vpack.c.b16 %v2717, %v2713
    %v3162 = vpack.c.b16 %v2718, %v2714
    %v3163 = vpack.c.b16 %v2723, %v2719
    %v3164 = vpack.c.b16 %v2724, %v2720
    %v3165 = vpack.c.b16 %v2725, %v2721
    %v3166 = vpack.c.b16 %v2726, %v2722
    %v3167 = vpack.c.b16 %v2731, %v2727
    %v3168 = vpack.c.b16 %v2732, %v2728
    %v3169 = vpack.c.b16 %v2733, %v2729
    %v3170 = vpack.c.b16 %v2734, %v2730
    %v3171 = vpack.c.b16 %v2739, %v2735
    %v3172 = vpack.c.b16 %v2740, %v2736
    %v3173 = vpack.c.b16 %v2741, %v2737
    %v3174 = vpack.c.b16 %v2742, %v2738
    %v3175 = vpack.c.b16 %v2747, %v2743
    %v3176 = vpack.c.b16 %v2748, %v2744
    %v3177 = vpack.c.b16 %v2749, %v2745
    %v3178 = vpack.c.b16 %v2750, %v2746
    %v3179 = vpack.c.b16 %v2755, %v2751
    %v3180 = vpack.c.b16 %v2756, %v2752
    %v3181 = vpack.c.b16 %v2757, %v2753
    %v3182 = vpack.c.b16 %v2758, %v2754
    %v3183 = vpack.c.b16 %v2763, %v2759
    %v3184 = vpack.c.b16 %v2764, %v2760
    %v3185 = vpack.c.b16 %v2765, %v2761
    %v3186 = vpack.c.b16 %v2766, %v2762
    %v3187 = vpack.c.b16 %v2771, %v2767
    %v3188 = vpack.c.b16 %v2772, %v2768
    %v3189 = vpack.c.b16 %v2773, %v2769
    %v3190 = vpack.c.b16 %v2774, %v2770
    %v3191 = vpack.c.b16 %v2779, %v2775
    %v3192 = vpack.c.b16 %v2780, %v2776
    %v3193 = vpack.c.b16 %v2781, %v2777
    %v3194 = vpack.c.b16 %v2782, %v2778
    %v3195 = vpack.c.b16 %v2787, %v2783
    %v3196 = vpack.c.b16 %v2788, %v2784
    %v3197 = vpack.c.b16 %v2789, %v2785
    %v3198 = vpack.c.b16 %v2790, %v2786
    %v3199 = vpack.c.b16 %v2795, %v2791
    %v3200 = vpack.c.b16 %v2796, %v2792
    %v3201 = vpack.c.b16 %v2797, %v2793
    %v3202 = vpack.c.b16 %v2798, %v2794
    %v3203 = vpack.c.b16 %v2803, %v2799
    %v3204 = vpack.c.b16 %v2804, %v2800
    %v3205 = vpack.c.b16 %v2805, %v2801
    %v3206 = vpack.c.b16 %v2806, %v2802
    %v3207 = vpack.c.b16 %v2811, %v2807
    %v3208 = vpack.c.b16 %v2812, %v2808
    %v3209 = vpack.c.b16 %v2813, %v2809
    %v3210 = vpack.c.b16 %v2814, %v2810
    %v3211 = vpack.c.b16 %v2819, %v2815
    %v3212 = vpack.c.b16 %v2820, %v2816
    %v3213 = vpack.c.b16 %v2821, %v2817
    %v3214 = vpack.c.b16 %v2822, %v2818
    %v3215 = vpack.c.b16 %v2827, %v2823
    %v3216 = vpack.c.b16 %v2828, %v2824
    %v3217 = vpack.c.b16 %v2829, %v2825
    %v3218 = vpack.c.b16 %v2830, %v2826
    %v3219 = vpack.c.b16 %v2835, %v2831
    %v3220 = vpack.c.b16 %v2836, %v2832
    %v3221 = vpack.c.b16 %v2837, %v2833
    %v3222 = vpack.c.b16 %v2838, %v2834
    %v3223 = vpack.c.b16 %v2843, %v2839
    %v3224 = vpack.c.b16 %v2844, %v2840
    %v3225 = vpack.c.b16 %v2845, %v2841
    %v3226 = vpack.c.b16 %v2846, %v2842
    %v3227 = vpack.c.b16 %v2851, %v2847
    %v3228 = vpack.c.b16 %v2852, %v2848
    %v3229 = vpack.c.b16 %v2853, %v2849
    %v3230 = vpack.c.b16 %v2854, %v2850
    %v3231 = vpack.c.b16 %v2859, %v2855
    %v3232 = vpack.c.b16 %v2860, %v2856
    %v3233 = vpack.c.b16 %v2861, %v2857
    %v3234 = vpack.c.b16 %v2862, %v2858
    %v3235 = vpack.c.b16 %v2867, %v2863
    %v3236 = vpack.c.b16 %v2868, %v2864
    %v3237 = vpack.c.b16 %v2869, %v2865
    %v3238 = vpack.c.b16 %v2870, %v2866
    %v3239 = vpack.c.b16 %v2875, %v2871
    %v3240 = vpack.c.b16 %v2876, %v2872
    %v3241 = vpack.c.b16 %v2877, %v2873
    %v3242 = vpack.c.b16 %v2878, %v2874
    %v3243 = vpack.c.b16 %v2883, %v2879
    %v3244 = vpack.c.b16 %v2884, %v2880
    %v3245 = vpack.c.b16 %v2885, %v2881
    %v3246 = vpack.c.b16 %v2886, %v2882
    %v3247 = vpack.c.b16 %v2891, %v2887
    %v3248 = vpack.c.b16 %v2892, %v2888
    %v3249 = vpack.c.b16 %v2893, %v2889
    %v3250 = vpack.c.b16 %v2894, %v2890
    %v3251 = vpack.c.b16 %v2899, %v2895
    %v3252 = vpack.c.b16 %v2900, %v2896
    %v3253 = vpack.c.b16 %v2901, %v2897
    %v3254 = vpack.c.b16 %v2902, %v2898
    %v3255 = vpack.c.b16 %v2907, %v2903
    %v3256 = vpack.c.b16 %v2908, %v2904
    %v3257 = vpack.c.b16 %v2909, %v2905
    %v3258 = vpack.c.b16 %v2910, %v2906
    %v3259 = vpack.c.b16 %v2915, %v2911
    %v3260 = vpack.c.b16 %v2916, %v2912
    %v3261 = vpack.c.b16 %v2917, %v2913
    %v3262 = vpack.c.b16 %v2918, %v2914
    %v3263 = vpack.c.b16 %v2923, %v2919
    %v3264 = vpack.c.b16 %v2924, %v2920
    %v3265 = vpack.c.b16 %v2925, %v2921
    %v3266 = vpack.c.b16 %v2926, %v2922
    %v3267 = vpack.c.b16 %v2931, %v2927
    %v3268 = vpack.c.b16 %v2932, %v2928
    %v3269 = vpack.c.b16 %v2933, %v2929
    %v3270 = vpack.c.b16 %v2934, %v2930
    %v3271 = vpack.c.b16 %v2939, %v2935
    %v3272 = vpack.c.b16 %v2940, %v2936
    %v3273 = vpack.c.b16 %v2941, %v2937
    %v3274 = vpack.c.b16 %v2942, %v2938
    %v3275 = vpack.c.b16 %v2947, %v2943
    %v3276 = vpack.c.b16 %v2948, %v2944
    %v3277 = vpack.c.b16 %v2949, %v2945
    %v3278 = vpack.c.b16 %v2950, %v2946
    %v3279 = vpack.c.b16 %v2955, %v2951
    %v3280 = vpack.c.b16 %v2956, %v2952
    %v3281 = vpack.c.b16 %v2957, %v2953
    %v3282 = vpack.c.b16 %v2958, %v2954
    %v3283 = vpack.c.b16 %v2963, %v2959
    %v3284 = vpack.c.b16 %v2964, %v2960
    %v3285 = vpack.c.b16 %v2965, %v2961
    %v3286 = vpack.c.b16 %v2966, %v2962
    %v3287 = vpack.c.b16 %v2971, %v2967
    %v3288 = vpack.c.b16 %v2972, %v2968
    %v3289 = vpack.c.b16 %v2973, %v2969
    %v3290 = vpack.c.b16 %v2974, %v2970
    %v3291 = vpack.c.b16 %v2979, %v2975
    %v3292 = vpack.c.b16 %v2980, %v2976
    %v3293 = vpack.c.b16 %v2981, %v2977
    %v3294 = vpack.c.b16 %v2982, %v2978
    %v3295 = vpack.c.b16 %v2987, %v2983
    %v3296 = vpack.c.b16 %v2988, %v2984
    %v3297 = vpack.c.b16 %v2989, %v2985
    %v3298 = vpack.c.b16 %v2990, %v2986
    %v3299 = vpack.c.b16 %v2995, %v2991
    %v3300 = vpack.c.b16 %v2996, %v2992
    %v3301 = vpack.c.b16 %v2997, %v2993
    %v3302 = vpack.c.b16 %v2998, %v2994
    %v3303 = vpack.c.b16 %v3003, %v2999
    %v3304 = vpack.c.b16 %v3004, %v3000
    %v3305 = vpack.c.b16 %v3005, %v3001
    %v3306 = vpack.c.b16 %v3006, %v3002
    %v3307 = vpack.c.b16 %v3011, %v3007
    %v3308 = vpack.c.b16 %v3012, %v3008
    %v3309 = vpack.c.b16 %v3013, %v3009
    %v3310 = vpack.c.b16 %v3014, %v3010
    %v3311 = vpack.c.b16 %v3019, %v3015
    %v3312 = vpack.c.b16 %v3020, %v3016
    %v3313 = vpack.c.b16 %v3021, %v3017
    %v3314 = vpack.c.b16 %v3022, %v3018
    %v3315 = vpack.c.b16 %v3027, %v3023
    %v3316 = vpack.c.b16 %v3028, %v3024
    %v3317 = vpack.c.b16 %v3029, %v3025
    %v3318 = vpack.c.b16 %v3030, %v3026
    %v3319 = vpack.c.b16 %v3035, %v3031
    %v3320 = vpack.c.b16 %v3036, %v3032
    %v3321 = vpack.c.b16 %v3037, %v3033
    %v3322 = vpack.c.b16 %v3038, %v3034
    %v3323 = vpack.c.b16 %v3043, %v3039
    %v3324 = vpack.c.b16 %v3044, %v3040
    %v3325 = vpack.c.b16 %v3045, %v3041
    %v3326 = vpack.c.b16 %v3046, %v3042
    %v3327 = vpack.c.b16 %v3051, %v3047
    %v3328 = vpack.c.b16 %v3052, %v3048
    %v3329 = vpack.c.b16 %v3053, %v3049
    %v3330 = vpack.c.b16 %v3054, %v3050
    %v3331 = vpack.c.b16 %v3059, %v3055
    %v3332 = vpack.c.b16 %v3060, %v3056
    %v3333 = vpack.c.b16 %v3061, %v3057
    %v3334 = vpack.c.b16 %v3062, %v3058
    %v3335 = vpack.c.b16 %v3067, %v3063
    %v3336 = vpack.c.b16 %v3068, %v3064
    %v3337 = vpack.c.b16 %v3069, %v3065
    %v3338 = vpack.c.b16 %v3070, %v3066
    %v3339 = vpack.c.b16 %v3075, %v3071
    %v3340 = vpack.c.b16 %v3076, %v3072
    %v3341 = vpack.c.b16 %v3077, %v3073
    %v3342 = vpack.c.b16 %v3078, %v3074
    %v3343 = vpack.c.b16 %v3083, %v3079
    %v3344 = vpack.c.b16 %v3084, %v3080
    %v3345 = vpack.c.b16 %v3085, %v3081
    %v3346 = vpack.c.b16 %v3086, %v3082
    %v3347 = vpack.c.b16 %v3091, %v3087
    %v3348 = vpack.c.b16 %v3092, %v3088
    %v3349 = vpack.c.b16 %v3093, %v3089
    %v3350 = vpack.c.b16 %v3094, %v3090
    %3607 = vmatprep.subr.bf16.mxu0 %v3124
    %3608 = vmatpush1.bf16.msra.mxu0 %v3123
    %3609 = vmatprep.subr.bf16.mxu0 %v3120
    %3610 = vmatpush1.bf16.msra.mxu0 %v3119
    %3611 = vmatprep.subr.bf16.mxu0 %v3116
    %3612 = vmatpush1.bf16.msra.mxu0 %v3115
    %3613 = vmatprep.subr.bf16.mxu0 %v3112
    %3614 = vmatpush1.bf16.msra.mxu0 %v3111
    %3615 = vmatprep.subr.bf16.mxu0 %v3108
    %3616 = vmatpush1.bf16.msra.mxu0 %v3107
    %3617 = vmatprep.subr.bf16.mxu0 %v3104
    %3618 = vmatpush1.bf16.msra.mxu0 %v3103
    %3619 = vmatprep.subr.bf16.mxu0 %v3100
    %3620 = vmatpush1.bf16.msra.mxu0 %v3099
    %3621 = vmatprep.subr.bf16.mxu0 %v3096
    %3622 = vmatpush1.bf16.msra.mxu0 %v3095
    %3623 = vmatprep.subr.bf16.mxu0 %v3156
    %3624 = vmatpush2.bf16.msra.mxu0 %v3155
    %3625 = vmatprep.subr.bf16.mxu0 %v3152
    %3626 = vmatpush2.bf16.msra.mxu0 %v3151
    %3627 = vmatprep.subr.bf16.mxu0 %v3148
    %3628 = vmatpush2.bf16.msra.mxu0 %v3147
    %3629 = vmatprep.subr.bf16.mxu0 %v3144
    %3630 = vmatpush2.bf16.msra.mxu0 %v3143
    %3631 = vmatprep.subr.bf16.mxu0 %v3140
    %3632 = vmatpush2.bf16.msra.mxu0 %v3139
    %3633 = vmatprep.subr.bf16.mxu0 %v3136
    %3634 = vmatpush2.bf16.msra.mxu0 %v3135
    %3635 = vmatprep.subr.bf16.mxu0 %v3132
    %3636 = vmatpush2.bf16.msra.mxu0 %v3131
    %3637 = vmatprep.subr.bf16.mxu0 %v3128
    %3638 = vmatpush2.bf16.msra.mxu0 %v3127
    %3639 = vmatprep.mubr.bf16.mxu0 %v2042
    %3640 = vmatmul.mubr.bf16.gmra.mxu0 %v2041
    %v3641 = vpop.f32.mrf.mxu0
    %v3642 = vadd.f32 %v2310, %v3641
    %v3643 = vpop.f32.mrf.mxu0
    %v3644 = vadd.f32 %v2314, %v3643
    %v3645 = vpop.f32.mrf.mxu0
    %v3646 = vpop.f32.mrf.mxu0
    %3647 = vdwg.mxu0
    %3648 = vmatprep.subr.bf16.mxu0 %v3188
    %3649 = vmatpush1.bf16.msra.mxu0 %v3187
    %3650 = vmatprep.subr.bf16.mxu0 %v3184
    %3651 = vmatpush1.bf16.msra.mxu0 %v3183
    %3652 = vmatprep.subr.bf16.mxu0 %v3180
    %3653 = vmatpush1.bf16.msra.mxu0 %v3179
    %3654 = vmatprep.subr.bf16.mxu0 %v3176
    %3655 = vmatpush1.bf16.msra.mxu0 %v3175
    %3656 = vmatprep.subr.bf16.mxu0 %v3172
    %3657 = vmatpush1.bf16.msra.mxu0 %v3171
    %3658 = vmatprep.subr.bf16.mxu0 %v3168
    %3659 = vmatpush1.bf16.msra.mxu0 %v3167
    %3660 = vmatprep.subr.bf16.mxu0 %v3164
    %3661 = vmatpush1.bf16.msra.mxu0 %v3163
    %3662 = vmatprep.subr.bf16.mxu0 %v3160
    %3663 = vmatpush1.bf16.msra.mxu0 %v3159
    %3664 = vmatprep.subr.bf16.mxu0 %v3220
    %3665 = vmatpush2.bf16.msra.mxu0 %v3219
    %3666 = vmatprep.subr.bf16.mxu0 %v3216
    %3667 = vmatpush2.bf16.msra.mxu0 %v3215
    %3668 = vmatprep.subr.bf16.mxu0 %v3212
    %3669 = vmatpush2.bf16.msra.mxu0 %v3211
    %3670 = vmatprep.subr.bf16.mxu0 %v3208
    %3671 = vmatpush2.bf16.msra.mxu0 %v3207
    %3672 = vmatprep.subr.bf16.mxu0 %v3204
    %3673 = vmatpush2.bf16.msra.mxu0 %v3203
    %3674 = vmatprep.subr.bf16.mxu0 %v3200
    %3675 = vmatpush2.bf16.msra.mxu0 %v3199
    %3676 = vmatprep.subr.bf16.mxu0 %v3196
    %3677 = vmatpush2.bf16.msra.mxu0 %v3195
    %3678 = vmatprep.subr.bf16.mxu0 %v3192
    %3679 = vmatpush2.bf16.msra.mxu0 %v3191
    %3680 = vmatprep.mubr.bf16.mxu0 %v2044
    %3681 = vmatmul.mubr.bf16.gmra.mxu0 %v2043
    %v3682 = vpop.f32.mrf.mxu0
    %v3683 = vadd.f32 %v3642, %v3682
    %v3684 = vpop.f32.mrf.mxu0
    %v3685 = vadd.f32 %v3644, %v3684
    %v3686 = vpop.f32.mrf.mxu0
    %v3687 = vpop.f32.mrf.mxu0
    %3688 = vdwg.mxu0
    %3689 = vmatprep.subr.bf16.mxu0 %v3252
    %3690 = vmatpush1.bf16.msra.mxu0 %v3251
    %3691 = vmatprep.subr.bf16.mxu0 %v3248
    %3692 = vmatpush1.bf16.msra.mxu0 %v3247
    %3693 = vmatprep.subr.bf16.mxu0 %v3244
    %3694 = vmatpush1.bf16.msra.mxu0 %v3243
    %3695 = vmatprep.subr.bf16.mxu0 %v3240
    %3696 = vmatpush1.bf16.msra.mxu0 %v3239
    %3697 = vmatprep.subr.bf16.mxu0 %v3236
    %3698 = vmatpush1.bf16.msra.mxu0 %v3235
    %3699 = vmatprep.subr.bf16.mxu0 %v3232
    %3700 = vmatpush1.bf16.msra.mxu0 %v3231
    %3701 = vmatprep.subr.bf16.mxu0 %v3228
    %3702 = vmatpush1.bf16.msra.mxu0 %v3227
    %3703 = vmatprep.subr.bf16.mxu0 %v3224
    %3704 = vmatpush1.bf16.msra.mxu0 %v3223
    %3705 = vmatprep.subr.bf16.mxu0 %v3284
    %3706 = vmatpush2.bf16.msra.mxu0 %v3283
    %3707 = vmatprep.subr.bf16.mxu0 %v3280
    %3708 = vmatpush2.bf16.msra.mxu0 %v3279
    %3709 = vmatprep.subr.bf16.mxu0 %v3276
    %3710 = vmatpush2.bf16.msra.mxu0 %v3275
    %3711 = vmatprep.subr.bf16.mxu0 %v3272
    %3712 = vmatpush2.bf16.msra.mxu0 %v3271
    %3713 = vmatprep.subr.bf16.mxu0 %v3268
    %3714 = vmatpush2.bf16.msra.mxu0 %v3267
    %3715 = vmatprep.subr.bf16.mxu0 %v3264
    %3716 = vmatpush2.bf16.msra.mxu0 %v3263
    %3717 = vmatprep.subr.bf16.mxu0 %v3260
    %3718 = vmatpush2.bf16.msra.mxu0 %v3259
    %3719 = vmatprep.subr.bf16.mxu0 %v3256
    %3720 = vmatpush2.bf16.msra.mxu0 %v3255
    %3721 = vmatprep.mubr.bf16.mxu0 %v2046
    %3722 = vmatmul.mubr.bf16.gmra.mxu0 %v2045
    %v3723 = vpop.f32.mrf.mxu0
    %v3724 = vadd.f32 %v3683, %v3723
    %v3725 = vpop.f32.mrf.mxu0
    %v3726 = vadd.f32 %v3685, %v3725
    %v3727 = vpop.f32.mrf.mxu0
    %v3728 = vpop.f32.mrf.mxu0
    %3729 = vdwg.mxu0
    %3730 = vmatprep.subr.bf16.mxu0 %v3316
    %3731 = vmatpush1.bf16.msra.mxu0 %v3315
    %3732 = vmatprep.subr.bf16.mxu0 %v3312
    %3733 = vmatpush1.bf16.msra.mxu0 %v3311
    %3734 = vmatprep.subr.bf16.mxu0 %v3308
    %3735 = vmatpush1.bf16.msra.mxu0 %v3307
    %3736 = vmatprep.subr.bf16.mxu0 %v3304
    %3737 = vmatpush1.bf16.msra.mxu0 %v3303
    %3738 = vmatprep.subr.bf16.mxu0 %v3300
    %3739 = vmatpush1.bf16.msra.mxu0 %v3299
    %3740 = vmatprep.subr.bf16.mxu0 %v3296
    %3741 = vmatpush1.bf16.msra.mxu0 %v3295
    %3742 = vmatprep.subr.bf16.mxu0 %v3292
    %3743 = vmatpush1.bf16.msra.mxu0 %v3291
    %3744 = vmatprep.subr.bf16.mxu0 %v3288
    %3745 = vmatpush1.bf16.msra.mxu0 %v3287
    %3746 = vmatprep.subr.bf16.mxu0 %v3348
    %3747 = vmatpush2.bf16.msra.mxu0 %v3347
    %3748 = vmatprep.subr.bf16.mxu0 %v3344
    %3749 = vmatpush2.bf16.msra.mxu0 %v3343
    %3750 = vmatprep.subr.bf16.mxu0 %v3340
    %3751 = vmatpush2.bf16.msra.mxu0 %v3339
    %3752 = vmatprep.subr.bf16.mxu0 %v3336
    %3753 = vmatpush2.bf16.msra.mxu0 %v3335
    %3754 = vmatprep.subr.bf16.mxu0 %v3332
    %3755 = vmatpush2.bf16.msra.mxu0 %v3331
    %3756 = vmatprep.subr.bf16.mxu0 %v3328
    %3757 = vmatpush2.bf16.msra.mxu0 %v3327
    %3758 = vmatprep.subr.bf16.mxu0 %v3324
    %3759 = vmatpush2.bf16.msra.mxu0 %v3323
    %3760 = vmatprep.subr.bf16.mxu0 %v3320
    %3761 = vmatpush2.bf16.msra.mxu0 %v3319
    %3762 = vmatprep.mubr.bf16.mxu0 %v2048
    %3763 = vmatmul.mubr.bf16.gmra.mxu0 %v2047
    %v3764 = vpop.f32.mrf.mxu0
    %v3765 = vadd.f32 %v3724, %v3764
    %v3766 = vpop.f32.mrf.mxu0
    %v3767 = vadd.f32 %v3726, %v3766
    %v3768 = vpop.f32.mrf.mxu0
    %v3769 = vpop.f32.mrf.mxu0
    %3770 = vdwg.mxu0
    %3771 = vmatprep.subr.bf16.mxu0 %v3126
    %3772 = vmatpush1.bf16.msra.mxu0 %v3125
    %3773 = vmatprep.subr.bf16.mxu0 %v3122
    %3774 = vmatpush1.bf16.msra.mxu0 %v3121
    %3775 = vmatprep.subr.bf16.mxu0 %v3118
    %3776 = vmatpush1.bf16.msra.mxu0 %v3117
    %3777 = vmatprep.subr.bf16.mxu0 %v3114
    %3778 = vmatpush1.bf16.msra.mxu0 %v3113
    %3779 = vmatprep.subr.bf16.mxu0 %v3110
    %3780 = vmatpush1.bf16.msra.mxu0 %v3109
    %3781 = vmatprep.subr.bf16.mxu0 %v3106
    %3782 = vmatpush1.bf16.msra.mxu0 %v3105
    %3783 = vmatprep.subr.bf16.mxu0 %v3102
    %3784 = vmatpush1.bf16.msra.mxu0 %v3101
    %3785 = vmatprep.subr.bf16.mxu0 %v3098
    %3786 = vmatpush1.bf16.msra.mxu0 %v3097
    %3787 = vmatprep.subr.bf16.mxu0 %v3158
    %3788 = vmatpush2.bf16.msra.mxu0 %v3157
    %3789 = vmatprep.subr.bf16.mxu0 %v3154
    %3790 = vmatpush2.bf16.msra.mxu0 %v3153
    %3791 = vmatprep.subr.bf16.mxu0 %v3150
    %3792 = vmatpush2.bf16.msra.mxu0 %v3149
    %3793 = vmatprep.subr.bf16.mxu0 %v3146
    %3794 = vmatpush2.bf16.msra.mxu0 %v3145
    %3795 = vmatprep.subr.bf16.mxu0 %v3142
    %3796 = vmatpush2.bf16.msra.mxu0 %v3141
    %3797 = vmatprep.subr.bf16.mxu0 %v3138
    %3798 = vmatpush2.bf16.msra.mxu0 %v3137
    %3799 = vmatprep.subr.bf16.mxu0 %v3134
    %3800 = vmatpush2.bf16.msra.mxu0 %v3133
    %3801 = vmatprep.subr.bf16.mxu0 %v3130
    %3802 = vmatpush2.bf16.msra.mxu0 %v3129
    %3803 = vmatprep.mubr.bf16.mxu0 %v2042
    %3804 = vmatmul.mubr.bf16.gmra.mxu0 %v2041
    %v3805 = vpop.f32.mrf.mxu0
    %v3806 = vadd.f32 %v2318, %v3805
    %v3807 = vpop.f32.mrf.mxu0
    %v3808 = vadd.f32 %v2322, %v3807
    %v3809 = vpop.f32.mrf.mxu0
    %v3810 = vpop.f32.mrf.mxu0
    %3811 = vdwg.mxu0
    %3812 = vmatprep.subr.bf16.mxu0 %v3190
    %3813 = vmatpush1.bf16.msra.mxu0 %v3189
    %3814 = vmatprep.subr.bf16.mxu0 %v3186
    %3815 = vmatpush1.bf16.msra.mxu0 %v3185
    %3816 = vmatprep.subr.bf16.mxu0 %v3182
    %3817 = vmatpush1.bf16.msra.mxu0 %v3181
    %3818 = vmatprep.subr.bf16.mxu0 %v3178
    %3819 = vmatpush1.bf16.msra.mxu0 %v3177
    %3820 = vmatprep.subr.bf16.mxu0 %v3174
    %3821 = vmatpush1.bf16.msra.mxu0 %v3173
    %3822 = vmatprep.subr.bf16.mxu0 %v3170
    %3823 = vmatpush1.bf16.msra.mxu0 %v3169
    %3824 = vmatprep.subr.bf16.mxu0 %v3166
    %3825 = vmatpush1.bf16.msra.mxu0 %v3165
    %3826 = vmatprep.subr.bf16.mxu0 %v3162
    %3827 = vmatpush1.bf16.msra.mxu0 %v3161
    %3828 = vmatprep.subr.bf16.mxu0 %v3222
    %3829 = vmatpush2.bf16.msra.mxu0 %v3221
    %3830 = vmatprep.subr.bf16.mxu0 %v3218
    %3831 = vmatpush2.bf16.msra.mxu0 %v3217
    %3832 = vmatprep.subr.bf16.mxu0 %v3214
    %3833 = vmatpush2.bf16.msra.mxu0 %v3213
    %3834 = vmatprep.subr.bf16.mxu0 %v3210
    %3835 = vmatpush2.bf16.msra.mxu0 %v3209
    %3836 = vmatprep.subr.bf16.mxu0 %v3206
    %3837 = vmatpush2.bf16.msra.mxu0 %v3205
    %3838 = vmatprep.subr.bf16.mxu0 %v3202
    %3839 = vmatpush2.bf16.msra.mxu0 %v3201
    %3840 = vmatprep.subr.bf16.mxu0 %v3198
    %3841 = vmatpush2.bf16.msra.mxu0 %v3197
    %3842 = vmatprep.subr.bf16.mxu0 %v3194
    %3843 = vmatpush2.bf16.msra.mxu0 %v3193
    %3844 = vmatprep.mubr.bf16.mxu0 %v2044
    %3845 = vmatmul.mubr.bf16.gmra.mxu0 %v2043
    %v3846 = vpop.f32.mrf.mxu0
    %v3847 = vadd.f32 %v3806, %v3846
    %v3848 = vpop.f32.mrf.mxu0
    %v3849 = vadd.f32 %v3808, %v3848
    %v3850 = vpop.f32.mrf.mxu0
    %v3851 = vpop.f32.mrf.mxu0
    %3852 = vdwg.mxu0
    %3853 = vmatprep.subr.bf16.mxu0 %v3254
    %3854 = vmatpush1.bf16.msra.mxu0 %v3253
    %3855 = vmatprep.subr.bf16.mxu0 %v3250
    %3856 = vmatpush1.bf16.msra.mxu0 %v3249
    %3857 = vmatprep.subr.bf16.mxu0 %v3246
    %3858 = vmatpush1.bf16.msra.mxu0 %v3245
    %3859 = vmatprep.subr.bf16.mxu0 %v3242
    %3860 = vmatpush1.bf16.msra.mxu0 %v3241
    %3861 = vmatprep.subr.bf16.mxu0 %v3238
    %3862 = vmatpush1.bf16.msra.mxu0 %v3237
    %3863 = vmatprep.subr.bf16.mxu0 %v3234
    %3864 = vmatpush1.bf16.msra.mxu0 %v3233
    %3865 = vmatprep.subr.bf16.mxu0 %v3230
    %3866 = vmatpush1.bf16.msra.mxu0 %v3229
    %3867 = vmatprep.subr.bf16.mxu0 %v3226
    %3868 = vmatpush1.bf16.msra.mxu0 %v3225
    %3869 = vmatprep.subr.bf16.mxu0 %v3286
    %3870 = vmatpush2.bf16.msra.mxu0 %v3285
    %3871 = vmatprep.subr.bf16.mxu0 %v3282
    %3872 = vmatpush2.bf16.msra.mxu0 %v3281
    %3873 = vmatprep.subr.bf16.mxu0 %v3278
    %3874 = vmatpush2.bf16.msra.mxu0 %v3277
    %3875 = vmatprep.subr.bf16.mxu0 %v3274
    %3876 = vmatpush2.bf16.msra.mxu0 %v3273
    %3877 = vmatprep.subr.bf16.mxu0 %v3270
    %3878 = vmatpush2.bf16.msra.mxu0 %v3269
    %3879 = vmatprep.subr.bf16.mxu0 %v3266
    %3880 = vmatpush2.bf16.msra.mxu0 %v3265
    %3881 = vmatprep.subr.bf16.mxu0 %v3262
    %3882 = vmatpush2.bf16.msra.mxu0 %v3261
    %3883 = vmatprep.subr.bf16.mxu0 %v3258
    %3884 = vmatpush2.bf16.msra.mxu0 %v3257
    %3885 = vmatprep.mubr.bf16.mxu0 %v2046
    %3886 = vmatmul.mubr.bf16.gmra.mxu0 %v2045
    %v3887 = vpop.f32.mrf.mxu0
    %v3888 = vadd.f32 %v3847, %v3887
    %v3889 = vpop.f32.mrf.mxu0
    %v3890 = vadd.f32 %v3849, %v3889
    %v3891 = vpop.f32.mrf.mxu0
    %v3892 = vpop.f32.mrf.mxu0
    %3893 = vdwg.mxu0
    %3894 = vmatprep.subr.bf16.mxu0 %v3318
    %3895 = vmatpush1.bf16.msra.mxu0 %v3317
    %3896 = vmatprep.subr.bf16.mxu0 %v3314
    %3897 = vmatpush1.bf16.msra.mxu0 %v3313
    %3898 = vmatprep.subr.bf16.mxu0 %v3310
    %3899 = vmatpush1.bf16.msra.mxu0 %v3309
    %3900 = vmatprep.subr.bf16.mxu0 %v3306
    %3901 = vmatpush1.bf16.msra.mxu0 %v3305
    %3902 = vmatprep.subr.bf16.mxu0 %v3302
    %3903 = vmatpush1.bf16.msra.mxu0 %v3301
    %3904 = vmatprep.subr.bf16.mxu0 %v3298
    %3905 = vmatpush1.bf16.msra.mxu0 %v3297
    %3906 = vmatprep.subr.bf16.mxu0 %v3294
    %3907 = vmatpush1.bf16.msra.mxu0 %v3293
    %3908 = vmatprep.subr.bf16.mxu0 %v3290
    %3909 = vmatpush1.bf16.msra.mxu0 %v3289
    %3910 = vmatprep.subr.bf16.mxu0 %v3350
    %3911 = vmatpush2.bf16.msra.mxu0 %v3349
    %3912 = vmatprep.subr.bf16.mxu0 %v3346
    %3913 = vmatpush2.bf16.msra.mxu0 %v3345
    %3914 = vmatprep.subr.bf16.mxu0 %v3342
    %3915 = vmatpush2.bf16.msra.mxu0 %v3341
    %3916 = vmatprep.subr.bf16.mxu0 %v3338
    %3917 = vmatpush2.bf16.msra.mxu0 %v3337
    %3918 = vmatprep.subr.bf16.mxu0 %v3334
    %3919 = vmatpush2.bf16.msra.mxu0 %v3333
    %3920 = vmatprep.subr.bf16.mxu0 %v3330
    %3921 = vmatpush2.bf16.msra.mxu0 %v3329
    %3922 = vmatprep.subr.bf16.mxu0 %v3326
    %3923 = vmatpush2.bf16.msra.mxu0 %v3325
    %3924 = vmatprep.subr.bf16.mxu0 %v3322
    %3925 = vmatpush2.bf16.msra.mxu0 %v3321
    %3926 = vmatprep.mubr.bf16.mxu0 %v2048
    %3927 = vmatmul.mubr.bf16.gmra.mxu0 %v2047
    %v3928 = vpop.f32.mrf.mxu0
    %v3929 = vadd.f32 %v3888, %v3928
    %v3930 = vpop.f32.mrf.mxu0
    %v3931 = vadd.f32 %v3890, %v3930
    %v3932 = vpop.f32.mrf.mxu0
    %v3933 = vpop.f32.mrf.mxu0
    %3934 = vdwg.mxu0
    %v3935 = vmax.f32 %v3765, 0.0
    %v3936 = vmax.f32 %v3767, 0.0
    %v3937 = vmax.f32 %v3929, 0.0
    %v3938 = vmax.f32 %v3931, 0.0
    %v3939 = vpack.c.bf16 %v3935, %v3935
    %v3940 = vpack.c.bf16 %v3936, %v3936
    %v3941 = vpack.c.bf16 %v3937, %v3937
    %v3942 = vpack.c.bf16 %v3938, %v3938
    %v3943 = vld [vmem:[#allocation7] sm:$0xff]
    %v3944 = vld [vmem:[#allocation7 + $0x8] sm:$0xff]
    %v3945 = vld [vmem:[#allocation7 + $0x10] sm:$0xff]
    %v3946 = vld [vmem:[#allocation7 + $0x18] sm:$0xff]
    %v3947 = vld [vmem:[#allocation7 + $0x20] sm:$0xff]
    %v3948 = vld [vmem:[#allocation7 + $0x28] sm:$0xff]
    %v3949 = vld [vmem:[#allocation7 + $0x30] sm:$0xff]
    %v3950 = vld [vmem:[#allocation7 + $0x38] sm:$0xff]
    %v3951 = vld [vmem:[#allocation7 + $0x40] sm:$0xff]
    %v3952 = vld [vmem:[#allocation7 + $0x48] sm:$0xff]
    %v3953 = vld [vmem:[#allocation7 + $0x50] sm:$0xff]
    %v3954 = vld [vmem:[#allocation7 + $0x58] sm:$0xff]
    %v3955 = vld [vmem:[#allocation7 + $0x60] sm:$0xff]
    %v3956 = vld [vmem:[#allocation7 + $0x68] sm:$0xff]
    %v3957 = vld [vmem:[#allocation7 + $0x70] sm:$0xff]
    %v3958 = vld [vmem:[#allocation7 + $0x78] sm:$0xff]
    %v3959 = vld [vmem:[#allocation7 + $0x80] sm:$0xff]
    %v3960 = vld [vmem:[#allocation7 + $0x88] sm:$0xff]
    %v3961 = vld [vmem:[#allocation7 + $0x90] sm:$0xff]
    %v3962 = vld [vmem:[#allocation7 + $0x98] sm:$0xff]
    %v3963 = vld [vmem:[#allocation7 + $0xa0] sm:$0xff]
    %v3964 = vld [vmem:[#allocation7 + $0xa8] sm:$0xff]
    %v3965 = vld [vmem:[#allocation7 + $0xb0] sm:$0xff]
    %v3966 = vld [vmem:[#allocation7 + $0xb8] sm:$0xff]
    %v3967 = vld [vmem:[#allocation7 + $0xc0] sm:$0xff]
    %v3968 = vld [vmem:[#allocation7 + $0xc8] sm:$0xff]
    %v3969 = vld [vmem:[#allocation7 + $0xd0] sm:$0xff]
    %v3970 = vld [vmem:[#allocation7 + $0xd8] sm:$0xff]
    %v3971 = vld [vmem:[#allocation7 + $0xe0] sm:$0xff]
    %v3972 = vld [vmem:[#allocation7 + $0xe8] sm:$0xff]
    %v3973 = vld [vmem:[#allocation7 + $0xf0] sm:$0xff]
    %v3974 = vld [vmem:[#allocation7 + $0xf8] sm:$0xff]
    %v3975 = vld [vmem:[#allocation7 + $0x100] sm:$0xff]
    %v3976 = vld [vmem:[#allocation7 + $0x108] sm:$0xff]
    %v3977 = vld [vmem:[#allocation7 + $0x110] sm:$0xff]
    %v3978 = vld [vmem:[#allocation7 + $0x118] sm:$0xff]
    %v3979 = vld [vmem:[#allocation7 + $0x120] sm:$0xff]
    %v3980 = vld [vmem:[#allocation7 + $0x128] sm:$0xff]
    %v3981 = vld [vmem:[#allocation7 + $0x130] sm:$0xff]
    %v3982 = vld [vmem:[#allocation7 + $0x138] sm:$0xff]
    %v3983 = vld [vmem:[#allocation7 + $0x140] sm:$0xff]
    %v3984 = vld [vmem:[#allocation7 + $0x148] sm:$0xff]
    %v3985 = vld [vmem:[#allocation7 + $0x150] sm:$0xff]
    %v3986 = vld [vmem:[#allocation7 + $0x158] sm:$0xff]
    %v3987 = vld [vmem:[#allocation7 + $0x160] sm:$0xff]
    %v3988 = vld [vmem:[#allocation7 + $0x168] sm:$0xff]
    %v3989 = vld [vmem:[#allocation7 + $0x170] sm:$0xff]
    %v3990 = vld [vmem:[#allocation7 + $0x178] sm:$0xff]
    %v3991 = vld [vmem:[#allocation7 + $0x180] sm:$0xff]
    %v3992 = vld [vmem:[#allocation7 + $0x188] sm:$0xff]
    %v3993 = vld [vmem:[#allocation7 + $0x190] sm:$0xff]
    %v3994 = vld [vmem:[#allocation7 + $0x198] sm:$0xff]
    %v3995 = vld [vmem:[#allocation7 + $0x1a0] sm:$0xff]
    %v3996 = vld [vmem:[#allocation7 + $0x1a8] sm:$0xff]
    %v3997 = vld [vmem:[#allocation7 + $0x1b0] sm:$0xff]
    %v3998 = vld [vmem:[#allocation7 + $0x1b8] sm:$0xff]
    %v3999 = vld [vmem:[#allocation7 + $0x1c0] sm:$0xff]
    %v4000 = vld [vmem:[#allocation7 + $0x1c8] sm:$0xff]
    %v4001 = vld [vmem:[#allocation7 + $0x1d0] sm:$0xff]
    %v4002 = vld [vmem:[#allocation7 + $0x1d8] sm:$0xff]
    %v4003 = vld [vmem:[#allocation7 + $0x1e0] sm:$0xff]
    %v4004 = vld [vmem:[#allocation7 + $0x1e8] sm:$0xff]
    %v4005 = vld [vmem:[#allocation7 + $0x1f0] sm:$0xff]
    %v4006 = vld [vmem:[#allocation7 + $0x1f8] sm:$0xff]
    %v4007 = vld [vmem:[#allocation7 + $0x200] sm:$0xff]
    %v4008 = vld [vmem:[#allocation7 + $0x208] sm:$0xff]
    %v4009 = vld [vmem:[#allocation7 + $0x210] sm:$0xff]
    %v4010 = vld [vmem:[#allocation7 + $0x218] sm:$0xff]
    %v4011 = vld [vmem:[#allocation7 + $0x220] sm:$0xff]
    %v4012 = vld [vmem:[#allocation7 + $0x228] sm:$0xff]
    %v4013 = vld [vmem:[#allocation7 + $0x230] sm:$0xff]
    %v4014 = vld [vmem:[#allocation7 + $0x238] sm:$0xff]
    %v4015 = vld [vmem:[#allocation7 + $0x240] sm:$0xff]
    %v4016 = vld [vmem:[#allocation7 + $0x248] sm:$0xff]
    %v4017 = vld [vmem:[#allocation7 + $0x250] sm:$0xff]
    %v4018 = vld [vmem:[#allocation7 + $0x258] sm:$0xff]
    %v4019 = vld [vmem:[#allocation7 + $0x260] sm:$0xff]
    %v4020 = vld [vmem:[#allocation7 + $0x268] sm:$0xff]
    %v4021 = vld [vmem:[#allocation7 + $0x270] sm:$0xff]
    %v4022 = vld [vmem:[#allocation7 + $0x278] sm:$0xff]
    %v4023 = vld [vmem:[#allocation7 + $0x280] sm:$0xff]
    %v4024 = vld [vmem:[#allocation7 + $0x288] sm:$0xff]
    %v4025 = vld [vmem:[#allocation7 + $0x290] sm:$0xff]
    %v4026 = vld [vmem:[#allocation7 + $0x298] sm:$0xff]
    %v4027 = vld [vmem:[#allocation7 + $0x2a0] sm:$0xff]
    %v4028 = vld [vmem:[#allocation7 + $0x2a8] sm:$0xff]
    %v4029 = vld [vmem:[#allocation7 + $0x2b0] sm:$0xff]
    %v4030 = vld [vmem:[#allocation7 + $0x2b8] sm:$0xff]
    %v4031 = vld [vmem:[#allocation7 + $0x2c0] sm:$0xff]
    %v4032 = vld [vmem:[#allocation7 + $0x2c8] sm:$0xff]
    %v4033 = vld [vmem:[#allocation7 + $0x2d0] sm:$0xff]
    %v4034 = vld [vmem:[#allocation7 + $0x2d8] sm:$0xff]
    %v4035 = vld [vmem:[#allocation7 + $0x2e0] sm:$0xff]
    %v4036 = vld [vmem:[#allocation7 + $0x2e8] sm:$0xff]
    %v4037 = vld [vmem:[#allocation7 + $0x2f0] sm:$0xff]
    %v4038 = vld [vmem:[#allocation7 + $0x2f8] sm:$0xff]
    %v4039 = vld [vmem:[#allocation7 + $0x300] sm:$0xff]
    %v4040 = vld [vmem:[#allocation7 + $0x308] sm:$0xff]
    %v4041 = vld [vmem:[#allocation7 + $0x310] sm:$0xff]
    %v4042 = vld [vmem:[#allocation7 + $0x318] sm:$0xff]
    %v4043 = vld [vmem:[#allocation7 + $0x320] sm:$0xff]
    %v4044 = vld [vmem:[#allocation7 + $0x328] sm:$0xff]
    %v4045 = vld [vmem:[#allocation7 + $0x330] sm:$0xff]
    %v4046 = vld [vmem:[#allocation7 + $0x338] sm:$0xff]
    %v4047 = vld [vmem:[#allocation7 + $0x340] sm:$0xff]
    %v4048 = vld [vmem:[#allocation7 + $0x348] sm:$0xff]
    %v4049 = vld [vmem:[#allocation7 + $0x350] sm:$0xff]
    %v4050 = vld [vmem:[#allocation7 + $0x358] sm:$0xff]
    %v4051 = vld [vmem:[#allocation7 + $0x360] sm:$0xff]
    %v4052 = vld [vmem:[#allocation7 + $0x368] sm:$0xff]
    %v4053 = vld [vmem:[#allocation7 + $0x370] sm:$0xff]
    %v4054 = vld [vmem:[#allocation7 + $0x378] sm:$0xff]
    %v4055 = vld [vmem:[#allocation7 + $0x380] sm:$0xff]
    %v4056 = vld [vmem:[#allocation7 + $0x388] sm:$0xff]
    %v4057 = vld [vmem:[#allocation7 + $0x390] sm:$0xff]
    %v4058 = vld [vmem:[#allocation7 + $0x398] sm:$0xff]
    %v4059 = vld [vmem:[#allocation7 + $0x3a0] sm:$0xff]
    %v4060 = vld [vmem:[#allocation7 + $0x3a8] sm:$0xff]
    %v4061 = vld [vmem:[#allocation7 + $0x3b0] sm:$0xff]
    %v4062 = vld [vmem:[#allocation7 + $0x3b8] sm:$0xff]
    %v4063 = vld [vmem:[#allocation7 + $0x3c0] sm:$0xff]
    %v4064 = vld [vmem:[#allocation7 + $0x3c8] sm:$0xff]
    %v4065 = vld [vmem:[#allocation7 + $0x3d0] sm:$0xff]
    %v4066 = vld [vmem:[#allocation7 + $0x3d8] sm:$0xff]
    %v4067 = vld [vmem:[#allocation7 + $0x3e0] sm:$0xff]
    %v4068 = vld [vmem:[#allocation7 + $0x3e8] sm:$0xff]
    %v4069 = vld [vmem:[#allocation7 + $0x3f0] sm:$0xff]
    %v4070 = vld [vmem:[#allocation7 + $0x3f8] sm:$0xff]
    %v4071 = vld [vmem:[%s10] sm:$0xf]
    %v4073 = vlaneseq
    %v4074 = vshrl.u32 %v4073, 7
    %v4075 = vsub.s32 0, %v4074
    %v4076 = vrot.slane %v4071, %v4075
    %v4077 = vlaneseq
    %v4078 = vshrl.u32 %v4077, 7
    %v4079 = vsub.s32 1, %v4078
    %v4080 = vrot.slane %v4071, %v4079
    %v4081 = vlaneseq
    %v4082 = vshrl.u32 %v4081, 7
    %v4083 = vsub.s32 2, %v4082
    %v4084 = vrot.slane %v4071, %v4083
    %v4085 = vlaneseq
    %v4086 = vshrl.u32 %v4085, 7
    %v4087 = vsub.s32 3, %v4086
    %v4088 = vrot.slane %v4071, %v4087
    %v4221 = vunpack.c.l.b16 %v3943
    %v4222 = vunpack.c.h.b16 %v3943
    %v4223 = vunpack.c.l.b16 %v3944
    %v4224 = vunpack.c.h.b16 %v3944
    %v4225 = vunpack.c.l.b16 %v3945
    %v4226 = vunpack.c.h.b16 %v3945
    %v4227 = vunpack.c.l.b16 %v3946
    %v4228 = vunpack.c.h.b16 %v3946
    %v4229 = vunpack.c.l.b16 %v3947
    %v4230 = vunpack.c.h.b16 %v3947
    %v4231 = vunpack.c.l.b16 %v3948
    %v4232 = vunpack.c.h.b16 %v3948
    %v4233 = vunpack.c.l.b16 %v3949
    %v4234 = vunpack.c.h.b16 %v3949
    %v4235 = vunpack.c.l.b16 %v3950
    %v4236 = vunpack.c.h.b16 %v3950
    %v4237 = vunpack.c.l.b16 %v3951
    %v4238 = vunpack.c.h.b16 %v3951
    %v4239 = vunpack.c.l.b16 %v3952
    %v4240 = vunpack.c.h.b16 %v3952
    %v4241 = vunpack.c.l.b16 %v3953
    %v4242 = vunpack.c.h.b16 %v3953
    %v4243 = vunpack.c.l.b16 %v3954
    %v4244 = vunpack.c.h.b16 %v3954
    %v4245 = vunpack.c.l.b16 %v3955
    %v4246 = vunpack.c.h.b16 %v3955
    %v4247 = vunpack.c.l.b16 %v3956
    %v4248 = vunpack.c.h.b16 %v3956
    %v4249 = vunpack.c.l.b16 %v3957
    %v4250 = vunpack.c.h.b16 %v3957
    %v4251 = vunpack.c.l.b16 %v3958
    %v4252 = vunpack.c.h.b16 %v3958
    %v4253 = vunpack.c.l.b16 %v3959
    %v4254 = vunpack.c.h.b16 %v3959
    %v4255 = vunpack.c.l.b16 %v3960
    %v4256 = vunpack.c.h.b16 %v3960
    %v4257 = vunpack.c.l.b16 %v3961
    %v4258 = vunpack.c.h.b16 %v3961
    %v4259 = vunpack.c.l.b16 %v3962
    %v4260 = vunpack.c.h.b16 %v3962
    %v4261 = vunpack.c.l.b16 %v3963
    %v4262 = vunpack.c.h.b16 %v3963
    %v4263 = vunpack.c.l.b16 %v3964
    %v4264 = vunpack.c.h.b16 %v3964
    %v4265 = vunpack.c.l.b16 %v3965
    %v4266 = vunpack.c.h.b16 %v3965
    %v4267 = vunpack.c.l.b16 %v3966
    %v4268 = vunpack.c.h.b16 %v3966
    %v4269 = vunpack.c.l.b16 %v3967
    %v4270 = vunpack.c.h.b16 %v3967
    %v4271 = vunpack.c.l.b16 %v3968
    %v4272 = vunpack.c.h.b16 %v3968
    %v4273 = vunpack.c.l.b16 %v3969
    %v4274 = vunpack.c.h.b16 %v3969
    %v4275 = vunpack.c.l.b16 %v3970
    %v4276 = vunpack.c.h.b16 %v3970
    %v4277 = vunpack.c.l.b16 %v3971
    %v4278 = vunpack.c.h.b16 %v3971
    %v4279 = vunpack.c.l.b16 %v3972
    %v4280 = vunpack.c.h.b16 %v3972
    %v4281 = vunpack.c.l.b16 %v3973
    %v4282 = vunpack.c.h.b16 %v3973
    %v4283 = vunpack.c.l.b16 %v3974
    %v4284 = vunpack.c.h.b16 %v3974
    %v4285 = vunpack.c.l.b16 %v3975
    %v4286 = vunpack.c.h.b16 %v3975
    %v4287 = vunpack.c.l.b16 %v3976
    %v4288 = vunpack.c.h.b16 %v3976
    %v4289 = vunpack.c.l.b16 %v3977
    %v4290 = vunpack.c.h.b16 %v3977
    %v4291 = vunpack.c.l.b16 %v3978
    %v4292 = vunpack.c.h.b16 %v3978
    %v4293 = vunpack.c.l.b16 %v3979
    %v4294 = vunpack.c.h.b16 %v3979
    %v4295 = vunpack.c.l.b16 %v3980
    %v4296 = vunpack.c.h.b16 %v3980
    %v4297 = vunpack.c.l.b16 %v3981
    %v4298 = vunpack.c.h.b16 %v3981
    %v4299 = vunpack.c.l.b16 %v3982
    %v4300 = vunpack.c.h.b16 %v3982
    %v4301 = vunpack.c.l.b16 %v3983
    %v4302 = vunpack.c.h.b16 %v3983
    %v4303 = vunpack.c.l.b16 %v3984
    %v4304 = vunpack.c.h.b16 %v3984
    %v4305 = vunpack.c.l.b16 %v3985
    %v4306 = vunpack.c.h.b16 %v3985
    %v4307 = vunpack.c.l.b16 %v3986
    %v4308 = vunpack.c.h.b16 %v3986
    %v4309 = vunpack.c.l.b16 %v3987
    %v4310 = vunpack.c.h.b16 %v3987
    %v4311 = vunpack.c.l.b16 %v3988
    %v4312 = vunpack.c.h.b16 %v3988
    %v4313 = vunpack.c.l.b16 %v3989
    %v4314 = vunpack.c.h.b16 %v3989
    %v4315 = vunpack.c.l.b16 %v3990
    %v4316 = vunpack.c.h.b16 %v3990
    %v4317 = vunpack.c.l.b16 %v3991
    %v4318 = vunpack.c.h.b16 %v3991
    %v4319 = vunpack.c.l.b16 %v3992
    %v4320 = vunpack.c.h.b16 %v3992
    %v4321 = vunpack.c.l.b16 %v3993
    %v4322 = vunpack.c.h.b16 %v3993
    %v4323 = vunpack.c.l.b16 %v3994
    %v4324 = vunpack.c.h.b16 %v3994
    %v4325 = vunpack.c.l.b16 %v3995
    %v4326 = vunpack.c.h.b16 %v3995
    %v4327 = vunpack.c.l.b16 %v3996
    %v4328 = vunpack.c.h.b16 %v3996
    %v4329 = vunpack.c.l.b16 %v3997
    %v4330 = vunpack.c.h.b16 %v3997
    %v4331 = vunpack.c.l.b16 %v3998
    %v4332 = vunpack.c.h.b16 %v3998
    %v4333 = vunpack.c.l.b16 %v3999
    %v4334 = vunpack.c.h.b16 %v3999
    %v4335 = vunpack.c.l.b16 %v4000
    %v4336 = vunpack.c.h.b16 %v4000
    %v4337 = vunpack.c.l.b16 %v4001
    %v4338 = vunpack.c.h.b16 %v4001
    %v4339 = vunpack.c.l.b16 %v4002
    %v4340 = vunpack.c.h.b16 %v4002
    %v4341 = vunpack.c.l.b16 %v4003
    %v4342 = vunpack.c.h.b16 %v4003
    %v4343 = vunpack.c.l.b16 %v4004
    %v4344 = vunpack.c.h.b16 %v4004
    %v4345 = vunpack.c.l.b16 %v4005
    %v4346 = vunpack.c.h.b16 %v4005
    %v4347 = vunpack.c.l.b16 %v4006
    %v4348 = vunpack.c.h.b16 %v4006
    %v4349 = vunpack.c.l.b16 %v4007
    %v4350 = vunpack.c.h.b16 %v4007
    %v4351 = vunpack.c.l.b16 %v4008
    %v4352 = vunpack.c.h.b16 %v4008
    %v4353 = vunpack.c.l.b16 %v4009
    %v4354 = vunpack.c.h.b16 %v4009
    %v4355 = vunpack.c.l.b16 %v4010
    %v4356 = vunpack.c.h.b16 %v4010
    %v4357 = vunpack.c.l.b16 %v4011
    %v4358 = vunpack.c.h.b16 %v4011
    %v4359 = vunpack.c.l.b16 %v4012
    %v4360 = vunpack.c.h.b16 %v4012
    %v4361 = vunpack.c.l.b16 %v4013
    %v4362 = vunpack.c.h.b16 %v4013
    %v4363 = vunpack.c.l.b16 %v4014
    %v4364 = vunpack.c.h.b16 %v4014
    %v4365 = vunpack.c.l.b16 %v4015
    %v4366 = vunpack.c.h.b16 %v4015
    %v4367 = vunpack.c.l.b16 %v4016
    %v4368 = vunpack.c.h.b16 %v4016
    %v4369 = vunpack.c.l.b16 %v4017
    %v4370 = vunpack.c.h.b16 %v4017
    %v4371 = vunpack.c.l.b16 %v4018
    %v4372 = vunpack.c.h.b16 %v4018
    %v4373 = vunpack.c.l.b16 %v4019
    %v4374 = vunpack.c.h.b16 %v4019
    %v4375 = vunpack.c.l.b16 %v4020
    %v4376 = vunpack.c.h.b16 %v4020
    %v4377 = vunpack.c.l.b16 %v4021
    %v4378 = vunpack.c.h.b16 %v4021
    %v4379 = vunpack.c.l.b16 %v4022
    %v4380 = vunpack.c.h.b16 %v4022
    %v4381 = vunpack.c.l.b16 %v4023
    %v4382 = vunpack.c.h.b16 %v4023
    %v4383 = vunpack.c.l.b16 %v4024
    %v4384 = vunpack.c.h.b16 %v4024
    %v4385 = vunpack.c.l.b16 %v4025
    %v4386 = vunpack.c.h.b16 %v4025
    %v4387 = vunpack.c.l.b16 %v4026
    %v4388 = vunpack.c.h.b16 %v4026
    %v4389 = vunpack.c.l.b16 %v4027
    %v4390 = vunpack.c.h.b16 %v4027
    %v4391 = vunpack.c.l.b16 %v4028
    %v4392 = vunpack.c.h.b16 %v4028
    %v4393 = vunpack.c.l.b16 %v4029
    %v4394 = vunpack.c.h.b16 %v4029
    %v4395 = vunpack.c.l.b16 %v4030
    %v4396 = vunpack.c.h.b16 %v4030
    %v4397 = vunpack.c.l.b16 %v4031
    %v4398 = vunpack.c.h.b16 %v4031
    %v4399 = vunpack.c.l.b16 %v4032
    %v4400 = vunpack.c.h.b16 %v4032
    %v4401 = vunpack.c.l.b16 %v4033
    %v4402 = vunpack.c.h.b16 %v4033
    %v4403 = vunpack.c.l.b16 %v4034
    %v4404 = vunpack.c.h.b16 %v4034
    %v4405 = vunpack.c.l.b16 %v4035
    %v4406 = vunpack.c.h.b16 %v4035
    %v4407 = vunpack.c.l.b16 %v4036
    %v4408 = vunpack.c.h.b16 %v4036
    %v4409 = vunpack.c.l.b16 %v4037
    %v4410 = vunpack.c.h.b16 %v4037
    %v4411 = vunpack.c.l.b16 %v4038
    %v4412 = vunpack.c.h.b16 %v4038
    %v4413 = vunpack.c.l.b16 %v4039
    %v4414 = vunpack.c.h.b16 %v4039
    %v4415 = vunpack.c.l.b16 %v4040
    %v4416 = vunpack.c.h.b16 %v4040
    %v4417 = vunpack.c.l.b16 %v4041
    %v4418 = vunpack.c.h.b16 %v4041
    %v4419 = vunpack.c.l.b16 %v4042
    %v4420 = vunpack.c.h.b16 %v4042
    %v4421 = vunpack.c.l.b16 %v4043
    %v4422 = vunpack.c.h.b16 %v4043
    %v4423 = vunpack.c.l.b16 %v4044
    %v4424 = vunpack.c.h.b16 %v4044
    %v4425 = vunpack.c.l.b16 %v4045
    %v4426 = vunpack.c.h.b16 %v4045
    %v4427 = vunpack.c.l.b16 %v4046
    %v4428 = vunpack.c.h.b16 %v4046
    %v4429 = vunpack.c.l.b16 %v4047
    %v4430 = vunpack.c.h.b16 %v4047
    %v4431 = vunpack.c.l.b16 %v4048
    %v4432 = vunpack.c.h.b16 %v4048
    %v4433 = vunpack.c.l.b16 %v4049
    %v4434 = vunpack.c.h.b16 %v4049
    %v4435 = vunpack.c.l.b16 %v4050
    %v4436 = vunpack.c.h.b16 %v4050
    %v4437 = vunpack.c.l.b16 %v4051
    %v4438 = vunpack.c.h.b16 %v4051
    %v4439 = vunpack.c.l.b16 %v4052
    %v4440 = vunpack.c.h.b16 %v4052
    %v4441 = vunpack.c.l.b16 %v4053
    %v4442 = vunpack.c.h.b16 %v4053
    %v4443 = vunpack.c.l.b16 %v4054
    %v4444 = vunpack.c.h.b16 %v4054
    %v4445 = vunpack.c.l.b16 %v4055
    %v4446 = vunpack.c.h.b16 %v4055
    %v4447 = vunpack.c.l.b16 %v4056
    %v4448 = vunpack.c.h.b16 %v4056
    %v4449 = vunpack.c.l.b16 %v4057
    %v4450 = vunpack.c.h.b16 %v4057
    %v4451 = vunpack.c.l.b16 %v4058
    %v4452 = vunpack.c.h.b16 %v4058
    %v4453 = vunpack.c.l.b16 %v4059
    %v4454 = vunpack.c.h.b16 %v4059
    %v4455 = vunpack.c.l.b16 %v4060
    %v4456 = vunpack.c.h.b16 %v4060
    %v4457 = vunpack.c.l.b16 %v4061
    %v4458 = vunpack.c.h.b16 %v4061
    %v4459 = vunpack.c.l.b16 %v4062
    %v4460 = vunpack.c.h.b16 %v4062
    %v4461 = vunpack.c.l.b16 %v4063
    %v4462 = vunpack.c.h.b16 %v4063
    %v4463 = vunpack.c.l.b16 %v4064
    %v4464 = vunpack.c.h.b16 %v4064
    %v4465 = vunpack.c.l.b16 %v4065
    %v4466 = vunpack.c.h.b16 %v4065
    %v4467 = vunpack.c.l.b16 %v4066
    %v4468 = vunpack.c.h.b16 %v4066
    %v4469 = vunpack.c.l.b16 %v4067
    %v4470 = vunpack.c.h.b16 %v4067
    %v4471 = vunpack.c.l.b16 %v4068
    %v4472 = vunpack.c.h.b16 %v4068
    %v4473 = vunpack.c.l.b16 %v4069
    %v4474 = vunpack.c.h.b16 %v4069
    %v4475 = vunpack.c.l.b16 %v4070
    %v4476 = vunpack.c.h.b16 %v4070
    %v4477 = vpack.c.b16 %v4225, %v4221
    %v4478 = vpack.c.b16 %v4226, %v4222
    %v4479 = vpack.c.b16 %v4227, %v4223
    %v4480 = vpack.c.b16 %v4228, %v4224
    %v4481 = vpack.c.b16 %v4233, %v4229
    %v4482 = vpack.c.b16 %v4234, %v4230
    %v4483 = vpack.c.b16 %v4235, %v4231
    %v4484 = vpack.c.b16 %v4236, %v4232
    %v4485 = vpack.c.b16 %v4241, %v4237
    %v4486 = vpack.c.b16 %v4242, %v4238
    %v4487 = vpack.c.b16 %v4243, %v4239
    %v4488 = vpack.c.b16 %v4244, %v4240
    %v4489 = vpack.c.b16 %v4249, %v4245
    %v4490 = vpack.c.b16 %v4250, %v4246
    %v4491 = vpack.c.b16 %v4251, %v4247
    %v4492 = vpack.c.b16 %v4252, %v4248
    %v4493 = vpack.c.b16 %v4257, %v4253
    %v4494 = vpack.c.b16 %v4258, %v4254
    %v4495 = vpack.c.b16 %v4259, %v4255
    %v4496 = vpack.c.b16 %v4260, %v4256
    %v4497 = vpack.c.b16 %v4265, %v4261
    %v4498 = vpack.c.b16 %v4266, %v4262
    %v4499 = vpack.c.b16 %v4267, %v4263
    %v4500 = vpack.c.b16 %v4268, %v4264
    %v4501 = vpack.c.b16 %v4273, %v4269
    %v4502 = vpack.c.b16 %v4274, %v4270
    %v4503 = vpack.c.b16 %v4275, %v4271
    %v4504 = vpack.c.b16 %v4276, %v4272
    %v4505 = vpack.c.b16 %v4281, %v4277
    %v4506 = vpack.c.b16 %v4282, %v4278
    %v4507 = vpack.c.b16 %v4283, %v4279
    %v4508 = vpack.c.b16 %v4284, %v4280
    %v4509 = vpack.c.b16 %v4289, %v4285
    %v4510 = vpack.c.b16 %v4290, %v4286
    %v4511 = vpack.c.b16 %v4291, %v4287
    %v4512 = vpack.c.b16 %v4292, %v4288
    %v4513 = vpack.c.b16 %v4297, %v4293
    %v4514 = vpack.c.b16 %v4298, %v4294
    %v4515 = vpack.c.b16 %v4299, %v4295
    %v4516 = vpack.c.b16 %v4300, %v4296
    %v4517 = vpack.c.b16 %v4305, %v4301
    %v4518 = vpack.c.b16 %v4306, %v4302
    %v4519 = vpack.c.b16 %v4307, %v4303
    %v4520 = vpack.c.b16 %v4308, %v4304
    %v4521 = vpack.c.b16 %v4313, %v4309
    %v4522 = vpack.c.b16 %v4314, %v4310
    %v4523 = vpack.c.b16 %v4315, %v4311
    %v4524 = vpack.c.b16 %v4316, %v4312
    %v4525 = vpack.c.b16 %v4321, %v4317
    %v4526 = vpack.c.b16 %v4322, %v4318
    %v4527 = vpack.c.b16 %v4323, %v4319
    %v4528 = vpack.c.b16 %v4324, %v4320
    %v4529 = vpack.c.b16 %v4329, %v4325
    %v4530 = vpack.c.b16 %v4330, %v4326
    %v4531 = vpack.c.b16 %v4331, %v4327
    %v4532 = vpack.c.b16 %v4332, %v4328
    %v4533 = vpack.c.b16 %v4337, %v4333
    %v4534 = vpack.c.b16 %v4338, %v4334
    %v4535 = vpack.c.b16 %v4339, %v4335
    %v4536 = vpack.c.b16 %v4340, %v4336
    %v4537 = vpack.c.b16 %v4345, %v4341
    %v4538 = vpack.c.b16 %v4346, %v4342
    %v4539 = vpack.c.b16 %v4347, %v4343
    %v4540 = vpack.c.b16 %v4348, %v4344
    %v4541 = vpack.c.b16 %v4353, %v4349
    %v4542 = vpack.c.b16 %v4354, %v4350
    %v4543 = vpack.c.b16 %v4355, %v4351
    %v4544 = vpack.c.b16 %v4356, %v4352
    %v4545 = vpack.c.b16 %v4361, %v4357
    %v4546 = vpack.c.b16 %v4362, %v4358
    %v4547 = vpack.c.b16 %v4363, %v4359
    %v4548 = vpack.c.b16 %v4364, %v4360
    %v4549 = vpack.c.b16 %v4369, %v4365
    %v4550 = vpack.c.b16 %v4370, %v4366
    %v4551 = vpack.c.b16 %v4371, %v4367
    %v4552 = vpack.c.b16 %v4372, %v4368
    %v4553 = vpack.c.b16 %v4377, %v4373
    %v4554 = vpack.c.b16 %v4378, %v4374
    %v4555 = vpack.c.b16 %v4379, %v4375
    %v4556 = vpack.c.b16 %v4380, %v4376
    %v4557 = vpack.c.b16 %v4385, %v4381
    %v4558 = vpack.c.b16 %v4386, %v4382
    %v4559 = vpack.c.b16 %v4387, %v4383
    %v4560 = vpack.c.b16 %v4388, %v4384
    %v4561 = vpack.c.b16 %v4393, %v4389
    %v4562 = vpack.c.b16 %v4394, %v4390
    %v4563 = vpack.c.b16 %v4395, %v4391
    %v4564 = vpack.c.b16 %v4396, %v4392
    %v4565 = vpack.c.b16 %v4401, %v4397
    %v4566 = vpack.c.b16 %v4402, %v4398
    %v4567 = vpack.c.b16 %v4403, %v4399
    %v4568 = vpack.c.b16 %v4404, %v4400
    %v4569 = vpack.c.b16 %v4409, %v4405
    %v4570 = vpack.c.b16 %v4410, %v4406
    %v4571 = vpack.c.b16 %v4411, %v4407
    %v4572 = vpack.c.b16 %v4412, %v4408
    %v4573 = vpack.c.b16 %v4417, %v4413
    %v4574 = vpack.c.b16 %v4418, %v4414
    %v4575 = vpack.c.b16 %v4419, %v4415
    %v4576 = vpack.c.b16 %v4420, %v4416
    %v4577 = vpack.c.b16 %v4425, %v4421
    %v4578 = vpack.c.b16 %v4426, %v4422
    %v4579 = vpack.c.b16 %v4427, %v4423
    %v4580 = vpack.c.b16 %v4428, %v4424
    %v4581 = vpack.c.b16 %v4433, %v4429
    %v4582 = vpack.c.b16 %v4434, %v4430
    %v4583 = vpack.c.b16 %v4435, %v4431
    %v4584 = vpack.c.b16 %v4436, %v4432
    %v4585 = vpack.c.b16 %v4441, %v4437
    %v4586 = vpack.c.b16 %v4442, %v4438
    %v4587 = vpack.c.b16 %v4443, %v4439
    %v4588 = vpack.c.b16 %v4444, %v4440
    %v4589 = vpack.c.b16 %v4449, %v4445
    %v4590 = vpack.c.b16 %v4450, %v4446
    %v4591 = vpack.c.b16 %v4451, %v4447
    %v4592 = vpack.c.b16 %v4452, %v4448
    %v4593 = vpack.c.b16 %v4457, %v4453
    %v4594 = vpack.c.b16 %v4458, %v4454
    %v4595 = vpack.c.b16 %v4459, %v4455
    %v4596 = vpack.c.b16 %v4460, %v4456
    %v4597 = vpack.c.b16 %v4465, %v4461
    %v4598 = vpack.c.b16 %v4466, %v4462
    %v4599 = vpack.c.b16 %v4467, %v4463
    %v4600 = vpack.c.b16 %v4468, %v4464
    %v4601 = vpack.c.b16 %v4473, %v4469
    %v4602 = vpack.c.b16 %v4474, %v4470
    %v4603 = vpack.c.b16 %v4475, %v4471
    %v4604 = vpack.c.b16 %v4476, %v4472
    %4733 = vmatprep.subr.bf16.mxu0 %v4506
    %4734 = vmatpush1.bf16.msra.mxu0 %v4505
    %4735 = vmatprep.subr.bf16.mxu0 %v4502
    %4736 = vmatpush1.bf16.msra.mxu0 %v4501
    %4737 = vmatprep.subr.bf16.mxu0 %v4498
    %4738 = vmatpush1.bf16.msra.mxu0 %v4497
    %4739 = vmatprep.subr.bf16.mxu0 %v4494
    %4740 = vmatpush1.bf16.msra.mxu0 %v4493
    %4741 = vmatprep.subr.bf16.mxu0 %v4490
    %4742 = vmatpush1.bf16.msra.mxu0 %v4489
    %4743 = vmatprep.subr.bf16.mxu0 %v4486
    %4744 = vmatpush1.bf16.msra.mxu0 %v4485
    %4745 = vmatprep.subr.bf16.mxu0 %v4482
    %4746 = vmatpush1.bf16.msra.mxu0 %v4481
    %4747 = vmatprep.subr.bf16.mxu0 %v4478
    %4748 = vmatpush1.bf16.msra.mxu0 %v4477
    %4749 = vmatprep.subr.bf16.mxu0 %v4538
    %4750 = vmatpush2.bf16.msra.mxu0 %v4537
    %4751 = vmatprep.subr.bf16.mxu0 %v4534
    %4752 = vmatpush2.bf16.msra.mxu0 %v4533
    %4753 = vmatprep.subr.bf16.mxu0 %v4530
    %4754 = vmatpush2.bf16.msra.mxu0 %v4529
    %4755 = vmatprep.subr.bf16.mxu0 %v4526
    %4756 = vmatpush2.bf16.msra.mxu0 %v4525
    %4757 = vmatprep.subr.bf16.mxu0 %v4522
    %4758 = vmatpush2.bf16.msra.mxu0 %v4521
    %4759 = vmatprep.subr.bf16.mxu0 %v4518
    %4760 = vmatpush2.bf16.msra.mxu0 %v4517
    %4761 = vmatprep.subr.bf16.mxu0 %v4514
    %4762 = vmatpush2.bf16.msra.mxu0 %v4513
    %4763 = vmatprep.subr.bf16.mxu0 %v4510
    %4764 = vmatpush2.bf16.msra.mxu0 %v4509
    %4765 = vmatprep.mubr.bf16.mxu0 %v3940
    %4766 = vmatmul.mubr.bf16.gmra.mxu0 %v3939
    %v4767 = vpop.f32.mrf.mxu0
    %v4768 = vadd.f32 %v4076, %v4767
    %v4769 = vpop.f32.mrf.mxu0
    %v4770 = vadd.f32 %v4080, %v4769
    %v4771 = vpop.f32.mrf.mxu0
    %v4772 = vpop.f32.mrf.mxu0
    %4773 = vdwg.mxu0
    %4774 = vmatprep.subr.bf16.mxu0 %v4570
    %4775 = vmatpush1.bf16.msra.mxu0 %v4569
    %4776 = vmatprep.subr.bf16.mxu0 %v4566
    %4777 = vmatpush1.bf16.msra.mxu0 %v4565
    %4778 = vmatprep.subr.bf16.mxu0 %v4562
    %4779 = vmatpush1.bf16.msra.mxu0 %v4561
    %4780 = vmatprep.subr.bf16.mxu0 %v4558
    %4781 = vmatpush1.bf16.msra.mxu0 %v4557
    %4782 = vmatprep.subr.bf16.mxu0 %v4554
    %4783 = vmatpush1.bf16.msra.mxu0 %v4553
    %4784 = vmatprep.subr.bf16.mxu0 %v4550
    %4785 = vmatpush1.bf16.msra.mxu0 %v4549
    %4786 = vmatprep.subr.bf16.mxu0 %v4546
    %4787 = vmatpush1.bf16.msra.mxu0 %v4545
    %4788 = vmatprep.subr.bf16.mxu0 %v4542
    %4789 = vmatpush1.bf16.msra.mxu0 %v4541
    %4790 = vmatprep.subr.bf16.mxu0 %v4602
    %4791 = vmatpush2.bf16.msra.mxu0 %v4601
    %4792 = vmatprep.subr.bf16.mxu0 %v4598
    %4793 = vmatpush2.bf16.msra.mxu0 %v4597
    %4794 = vmatprep.subr.bf16.mxu0 %v4594
    %4795 = vmatpush2.bf16.msra.mxu0 %v4593
    %4796 = vmatprep.subr.bf16.mxu0 %v4590
    %4797 = vmatpush2.bf16.msra.mxu0 %v4589
    %4798 = vmatprep.subr.bf16.mxu0 %v4586
    %4799 = vmatpush2.bf16.msra.mxu0 %v4585
    %4800 = vmatprep.subr.bf16.mxu0 %v4582
    %4801 = vmatpush2.bf16.msra.mxu0 %v4581
    %4802 = vmatprep.subr.bf16.mxu0 %v4578
    %4803 = vmatpush2.bf16.msra.mxu0 %v4577
    %4804 = vmatprep.subr.bf16.mxu0 %v4574
    %4805 = vmatpush2.bf16.msra.mxu0 %v4573
    %4806 = vmatprep.mubr.bf16.mxu0 %v3942
    %4807 = vmatmul.mubr.bf16.gmra.mxu0 %v3941
    %v4808 = vpop.f32.mrf.mxu0
    %v4809 = vadd.f32 %v4768, %v4808
    %v4810 = vpop.f32.mrf.mxu0
    %v4811 = vadd.f32 %v4770, %v4810
    %v4812 = vpop.f32.mrf.mxu0
    %v4813 = vpop.f32.mrf.mxu0
    %4814 = vdwg.mxu0
    %4815 = vmatprep.subr.bf16.mxu0 %v4508
    %4816 = vmatpush1.bf16.msra.mxu0 %v4507
    %4817 = vmatprep.subr.bf16.mxu0 %v4504
    %4818 = vmatpush1.bf16.msra.mxu0 %v4503
    %4819 = vmatprep.subr.bf16.mxu0 %v4500
    %4820 = vmatpush1.bf16.msra.mxu0 %v4499
    %4821 = vmatprep.subr.bf16.mxu0 %v4496
    %4822 = vmatpush1.bf16.msra.mxu0 %v4495
    %4823 = vmatprep.subr.bf16.mxu0 %v4492
    %4824 = vmatpush1.bf16.msra.mxu0 %v4491
    %4825 = vmatprep.subr.bf16.mxu0 %v4488
    %4826 = vmatpush1.bf16.msra.mxu0 %v4487
    %4827 = vmatprep.subr.bf16.mxu0 %v4484
    %4828 = vmatpush1.bf16.msra.mxu0 %v4483
    %4829 = vmatprep.subr.bf16.mxu0 %v4480
    %4830 = vmatpush1.bf16.msra.mxu0 %v4479
    %4831 = vmatprep.subr.bf16.mxu0 %v4540
    %4832 = vmatpush2.bf16.msra.mxu0 %v4539
    %4833 = vmatprep.subr.bf16.mxu0 %v4536
    %4834 = vmatpush2.bf16.msra.mxu0 %v4535
    %4835 = vmatprep.subr.bf16.mxu0 %v4532
    %4836 = vmatpush2.bf16.msra.mxu0 %v4531
    %4837 = vmatprep.subr.bf16.mxu0 %v4528
    %4838 = vmatpush2.bf16.msra.mxu0 %v4527
    %4839 = vmatprep.subr.bf16.mxu0 %v4524
    %4840 = vmatpush2.bf16.msra.mxu0 %v4523
    %4841 = vmatprep.subr.bf16.mxu0 %v4520
    %4842 = vmatpush2.bf16.msra.mxu0 %v4519
    %4843 = vmatprep.subr.bf16.mxu0 %v4516
    %4844 = vmatpush2.bf16.msra.mxu0 %v4515
    %4845 = vmatprep.subr.bf16.mxu0 %v4512
    %4846 = vmatpush2.bf16.msra.mxu0 %v4511
    %4847 = vmatprep.mubr.bf16.mxu0 %v3940
    %4848 = vmatmul.mubr.bf16.gmra.mxu0 %v3939
    %v4849 = vpop.f32.mrf.mxu0
    %v4850 = vadd.f32 %v4084, %v4849
    %v4851 = vpop.f32.mrf.mxu0
    %v4852 = vadd.f32 %v4088, %v4851
    %v4853 = vpop.f32.mrf.mxu0
    %v4854 = vpop.f32.mrf.mxu0
    %4855 = vdwg.mxu0
    %4856 = vmatprep.subr.bf16.mxu0 %v4572
    %4857 = vmatpush1.bf16.msra.mxu0 %v4571
    %4858 = vmatprep.subr.bf16.mxu0 %v4568
    %4859 = vmatpush1.bf16.msra.mxu0 %v4567
    %4860 = vmatprep.subr.bf16.mxu0 %v4564
    %4861 = vmatpush1.bf16.msra.mxu0 %v4563
    %4862 = vmatprep.subr.bf16.mxu0 %v4560
    %4863 = vmatpush1.bf16.msra.mxu0 %v4559
    %4864 = vmatprep.subr.bf16.mxu0 %v4556
    %4865 = vmatpush1.bf16.msra.mxu0 %v4555
    %4866 = vmatprep.subr.bf16.mxu0 %v4552
    %4867 = vmatpush1.bf16.msra.mxu0 %v4551
    %4868 = vmatprep.subr.bf16.mxu0 %v4548
    %4869 = vmatpush1.bf16.msra.mxu0 %v4547
    %4870 = vmatprep.subr.bf16.mxu0 %v4544
    %4871 = vmatpush1.bf16.msra.mxu0 %v4543
    %4872 = vmatprep.subr.bf16.mxu0 %v4604
    %4873 = vmatpush2.bf16.msra.mxu0 %v4603
    %4874 = vmatprep.subr.bf16.mxu0 %v4600
    %4875 = vmatpush2.bf16.msra.mxu0 %v4599
    %4876 = vmatprep.subr.bf16.mxu0 %v4596
    %4877 = vmatpush2.bf16.msra.mxu0 %v4595
    %4878 = vmatprep.subr.bf16.mxu0 %v4592
    %4879 = vmatpush2.bf16.msra.mxu0 %v4591
    %4880 = vmatprep.subr.bf16.mxu0 %v4588
    %4881 = vmatpush2.bf16.msra.mxu0 %v4587
    %4882 = vmatprep.subr.bf16.mxu0 %v4584
    %4883 = vmatpush2.bf16.msra.mxu0 %v4583
    %4884 = vmatprep.subr.bf16.mxu0 %v4580
    %4885 = vmatpush2.bf16.msra.mxu0 %v4579
    %4886 = vmatprep.subr.bf16.mxu0 %v4576
    %4887 = vmatpush2.bf16.msra.mxu0 %v4575
    %4888 = vmatprep.mubr.bf16.mxu0 %v3942
    %4889 = vmatmul.mubr.bf16.gmra.mxu0 %v3941
    %v4890 = vpop.f32.mrf.mxu0
    %v4891 = vadd.f32 %v4850, %v4890
    %v4892 = vpop.f32.mrf.mxu0
    %v4893 = vadd.f32 %v4852, %v4892
    %v4894 = vpop.f32.mrf.mxu0
    %v4895 = vpop.f32.mrf.mxu0
    %4896 = vdwg.mxu0
    %v4897 = vmax.f32 %v4809, 0.0
    %v4898 = vmax.f32 %v4811, 0.0
    %v4899 = vmax.f32 %v4891, 0.0
    %v4900 = vmax.f32 %v4893, 0.0
    %v4901 = vpack.c.bf16 %v4897, %v4897
    %v4902 = vpack.c.bf16 %v4898, %v4898
    %v4903 = vpack.c.bf16 %v4899, %v4899
    %v4904 = vpack.c.bf16 %v4900, %v4900
    %v4905 = vld [vmem:[#allocation9] sm:$0xff]
    %v4906 = vld [vmem:[#allocation9 + $0x8] sm:$0xff]
    %v4907 = vld [vmem:[#allocation9 + $0x10] sm:$0xff]
    %v4908 = vld [vmem:[#allocation9 + $0x18] sm:$0xff]
    %v4909 = vld [vmem:[#allocation9 + $0x20] sm:$0xff]
    %v4910 = vld [vmem:[#allocation9 + $0x28] sm:$0xff]
    %v4911 = vld [vmem:[#allocation9 + $0x30] sm:$0xff]
    %v4912 = vld [vmem:[#allocation9 + $0x38] sm:$0xff]
    %v4913 = vld [vmem:[#allocation9 + $0x40] sm:$0xff]
    %v4914 = vld [vmem:[#allocation9 + $0x48] sm:$0xff]
    %v4915 = vld [vmem:[#allocation9 + $0x50] sm:$0xff]
    %v4916 = vld [vmem:[#allocation9 + $0x58] sm:$0xff]
    %v4917 = vld [vmem:[#allocation9 + $0x60] sm:$0xff]
    %v4918 = vld [vmem:[#allocation9 + $0x68] sm:$0xff]
    %v4919 = vld [vmem:[#allocation9 + $0x70] sm:$0xff]
    %v4920 = vld [vmem:[#allocation9 + $0x78] sm:$0xff]
    %v4921 = vld [vmem:[#allocation9 + $0x80] sm:$0xff]
    %v4922 = vld [vmem:[#allocation9 + $0x88] sm:$0xff]
    %v4923 = vld [vmem:[#allocation9 + $0x90] sm:$0xff]
    %v4924 = vld [vmem:[#allocation9 + $0x98] sm:$0xff]
    %v4925 = vld [vmem:[#allocation9 + $0xa0] sm:$0xff]
    %v4926 = vld [vmem:[#allocation9 + $0xa8] sm:$0xff]
    %v4927 = vld [vmem:[#allocation9 + $0xb0] sm:$0xff]
    %v4928 = vld [vmem:[#allocation9 + $0xb8] sm:$0xff]
    %v4929 = vld [vmem:[#allocation9 + $0xc0] sm:$0xff]
    %v4930 = vld [vmem:[#allocation9 + $0xc8] sm:$0xff]
    %v4931 = vld [vmem:[#allocation9 + $0xd0] sm:$0xff]
    %v4932 = vld [vmem:[#allocation9 + $0xd8] sm:$0xff]
    %v4933 = vld [vmem:[#allocation9 + $0xe0] sm:$0xff]
    %v4934 = vld [vmem:[#allocation9 + $0xe8] sm:$0xff]
    %v4935 = vld [vmem:[#allocation9 + $0xf0] sm:$0xff]
    %v4936 = vld [vmem:[#allocation9 + $0xf8] sm:$0xff]
    %v4937 = vld [vmem:[#allocation9 + $0x100] sm:$0xff]
    %v4938 = vld [vmem:[#allocation9 + $0x108] sm:$0xff]
    %v4939 = vld [vmem:[#allocation9 + $0x110] sm:$0xff]
    %v4940 = vld [vmem:[#allocation9 + $0x118] sm:$0xff]
    %v4941 = vld [vmem:[#allocation9 + $0x120] sm:$0xff]
    %v4942 = vld [vmem:[#allocation9 + $0x128] sm:$0xff]
    %v4943 = vld [vmem:[#allocation9 + $0x130] sm:$0xff]
    %v4944 = vld [vmem:[#allocation9 + $0x138] sm:$0xff]
    %v4945 = vld [vmem:[#allocation9 + $0x140] sm:$0xff]
    %v4946 = vld [vmem:[#allocation9 + $0x148] sm:$0xff]
    %v4947 = vld [vmem:[#allocation9 + $0x150] sm:$0xff]
    %v4948 = vld [vmem:[#allocation9 + $0x158] sm:$0xff]
    %v4949 = vld [vmem:[#allocation9 + $0x160] sm:$0xff]
    %v4950 = vld [vmem:[#allocation9 + $0x168] sm:$0xff]
    %v4951 = vld [vmem:[#allocation9 + $0x170] sm:$0xff]
    %v4952 = vld [vmem:[#allocation9 + $0x178] sm:$0xff]
    %v4953 = vld [vmem:[#allocation9 + $0x180] sm:$0xff]
    %v4954 = vld [vmem:[#allocation9 + $0x188] sm:$0xff]
    %v4955 = vld [vmem:[#allocation9 + $0x190] sm:$0xff]
    %v4956 = vld [vmem:[#allocation9 + $0x198] sm:$0xff]
    %v4957 = vld [vmem:[#allocation9 + $0x1a0] sm:$0xff]
    %v4958 = vld [vmem:[#allocation9 + $0x1a8] sm:$0xff]
    %v4959 = vld [vmem:[#allocation9 + $0x1b0] sm:$0xff]
    %v4960 = vld [vmem:[#allocation9 + $0x1b8] sm:$0xff]
    %v4961 = vld [vmem:[#allocation9 + $0x1c0] sm:$0xff]
    %v4962 = vld [vmem:[#allocation9 + $0x1c8] sm:$0xff]
    %v4963 = vld [vmem:[#allocation9 + $0x1d0] sm:$0xff]
    %v4964 = vld [vmem:[#allocation9 + $0x1d8] sm:$0xff]
    %v4965 = vld [vmem:[#allocation9 + $0x1e0] sm:$0xff]
    %v4966 = vld [vmem:[#allocation9 + $0x1e8] sm:$0xff]
    %v4967 = vld [vmem:[#allocation9 + $0x1f0] sm:$0xff]
    %v4968 = vld [vmem:[#allocation9 + $0x1f8] sm:$0xff]
    %v4969 = vld [vmem:[%s12] sm:$0x3]
    %v4971 = vlaneseq
    %v4972 = vshrl.u32 %v4971, 7
    %v4973 = vsub.s32 0, %v4972
    %v4974 = vrot.slane %v4969, %v4973
    %v4975 = vlaneseq
    %v4976 = vshrl.u32 %v4975, 7
    %v4977 = vsub.s32 1, %v4976
    %v4978 = vrot.slane %v4969, %v4977
    %v5045 = vunpack.c.l.b16 %v4905
    %v5046 = vunpack.c.h.b16 %v4905
    %v5047 = vunpack.c.l.b16 %v4906
    %v5048 = vunpack.c.h.b16 %v4906
    %v5049 = vunpack.c.l.b16 %v4907
    %v5050 = vunpack.c.h.b16 %v4907
    %v5051 = vunpack.c.l.b16 %v4908
    %v5052 = vunpack.c.h.b16 %v4908
    %v5053 = vunpack.c.l.b16 %v4909
    %v5054 = vunpack.c.h.b16 %v4909
    %v5055 = vunpack.c.l.b16 %v4910
    %v5056 = vunpack.c.h.b16 %v4910
    %v5057 = vunpack.c.l.b16 %v4911
    %v5058 = vunpack.c.h.b16 %v4911
    %v5059 = vunpack.c.l.b16 %v4912
    %v5060 = vunpack.c.h.b16 %v4912
    %v5061 = vunpack.c.l.b16 %v4913
    %v5062 = vunpack.c.h.b16 %v4913
    %v5063 = vunpack.c.l.b16 %v4914
    %v5064 = vunpack.c.h.b16 %v4914
    %v5065 = vunpack.c.l.b16 %v4915
    %v5066 = vunpack.c.h.b16 %v4915
    %v5067 = vunpack.c.l.b16 %v4916
    %v5068 = vunpack.c.h.b16 %v4916
    %v5069 = vunpack.c.l.b16 %v4917
    %v5070 = vunpack.c.h.b16 %v4917
    %v5071 = vunpack.c.l.b16 %v4918
    %v5072 = vunpack.c.h.b16 %v4918
    %v5073 = vunpack.c.l.b16 %v4919
    %v5074 = vunpack.c.h.b16 %v4919
    %v5075 = vunpack.c.l.b16 %v4920
    %v5076 = vunpack.c.h.b16 %v4920
    %v5077 = vunpack.c.l.b16 %v4921
    %v5078 = vunpack.c.h.b16 %v4921
    %v5079 = vunpack.c.l.b16 %v4922
    %v5080 = vunpack.c.h.b16 %v4922
    %v5081 = vunpack.c.l.b16 %v4923
    %v5082 = vunpack.c.h.b16 %v4923
    %v5083 = vunpack.c.l.b16 %v4924
    %v5084 = vunpack.c.h.b16 %v4924
    %v5085 = vunpack.c.l.b16 %v4925
    %v5086 = vunpack.c.h.b16 %v4925
    %v5087 = vunpack.c.l.b16 %v4926
    %v5088 = vunpack.c.h.b16 %v4926
    %v5089 = vunpack.c.l.b16 %v4927
    %v5090 = vunpack.c.h.b16 %v4927
    %v5091 = vunpack.c.l.b16 %v4928
    %v5092 = vunpack.c.h.b16 %v4928
    %v5093 = vunpack.c.l.b16 %v4929
    %v5094 = vunpack.c.h.b16 %v4929
    %v5095 = vunpack.c.l.b16 %v4930
    %v5096 = vunpack.c.h.b16 %v4930
    %v5097 = vunpack.c.l.b16 %v4931
    %v5098 = vunpack.c.h.b16 %v4931
    %v5099 = vunpack.c.l.b16 %v4932
    %v5100 = vunpack.c.h.b16 %v4932
    %v5101 = vunpack.c.l.b16 %v4933
    %v5102 = vunpack.c.h.b16 %v4933
    %v5103 = vunpack.c.l.b16 %v4934
    %v5104 = vunpack.c.h.b16 %v4934
    %v5105 = vunpack.c.l.b16 %v4935
    %v5106 = vunpack.c.h.b16 %v4935
    %v5107 = vunpack.c.l.b16 %v4936
    %v5108 = vunpack.c.h.b16 %v4936
    %v5109 = vunpack.c.l.b16 %v4937
    %v5110 = vunpack.c.h.b16 %v4937
    %v5111 = vunpack.c.l.b16 %v4938
    %v5112 = vunpack.c.h.b16 %v4938
    %v5113 = vunpack.c.l.b16 %v4939
    %v5114 = vunpack.c.h.b16 %v4939
    %v5115 = vunpack.c.l.b16 %v4940
    %v5116 = vunpack.c.h.b16 %v4940
    %v5117 = vunpack.c.l.b16 %v4941
    %v5118 = vunpack.c.h.b16 %v4941
    %v5119 = vunpack.c.l.b16 %v4942
    %v5120 = vunpack.c.h.b16 %v4942
    %v5121 = vunpack.c.l.b16 %v4943
    %v5122 = vunpack.c.h.b16 %v4943
    %v5123 = vunpack.c.l.b16 %v4944
    %v5124 = vunpack.c.h.b16 %v4944
    %v5125 = vunpack.c.l.b16 %v4945
    %v5126 = vunpack.c.h.b16 %v4945
    %v5127 = vunpack.c.l.b16 %v4946
    %v5128 = vunpack.c.h.b16 %v4946
    %v5129 = vunpack.c.l.b16 %v4947
    %v5130 = vunpack.c.h.b16 %v4947
    %v5131 = vunpack.c.l.b16 %v4948
    %v5132 = vunpack.c.h.b16 %v4948
    %v5133 = vunpack.c.l.b16 %v4949
    %v5134 = vunpack.c.h.b16 %v4949
    %v5135 = vunpack.c.l.b16 %v4950
    %v5136 = vunpack.c.h.b16 %v4950
    %v5137 = vunpack.c.l.b16 %v4951
    %v5138 = vunpack.c.h.b16 %v4951
    %v5139 = vunpack.c.l.b16 %v4952
    %v5140 = vunpack.c.h.b16 %v4952
    %v5141 = vunpack.c.l.b16 %v4953
    %v5142 = vunpack.c.h.b16 %v4953
    %v5143 = vunpack.c.l.b16 %v4954
    %v5144 = vunpack.c.h.b16 %v4954
    %v5145 = vunpack.c.l.b16 %v4955
    %v5146 = vunpack.c.h.b16 %v4955
    %v5147 = vunpack.c.l.b16 %v4956
    %v5148 = vunpack.c.h.b16 %v4956
    %v5149 = vunpack.c.l.b16 %v4957
    %v5150 = vunpack.c.h.b16 %v4957
    %v5151 = vunpack.c.l.b16 %v4958
    %v5152 = vunpack.c.h.b16 %v4958
    %v5153 = vunpack.c.l.b16 %v4959
    %v5154 = vunpack.c.h.b16 %v4959
    %v5155 = vunpack.c.l.b16 %v4960
    %v5156 = vunpack.c.h.b16 %v4960
    %v5157 = vunpack.c.l.b16 %v4961
    %v5158 = vunpack.c.h.b16 %v4961
    %v5159 = vunpack.c.l.b16 %v4962
    %v5160 = vunpack.c.h.b16 %v4962
    %v5161 = vunpack.c.l.b16 %v4963
    %v5162 = vunpack.c.h.b16 %v4963
    %v5163 = vunpack.c.l.b16 %v4964
    %v5164 = vunpack.c.h.b16 %v4964
    %v5165 = vunpack.c.l.b16 %v4965
    %v5166 = vunpack.c.h.b16 %v4965
    %v5167 = vunpack.c.l.b16 %v4966
    %v5168 = vunpack.c.h.b16 %v4966
    %v5169 = vunpack.c.l.b16 %v4967
    %v5170 = vunpack.c.h.b16 %v4967
    %v5171 = vunpack.c.l.b16 %v4968
    %v5172 = vunpack.c.h.b16 %v4968
    %v5173 = vpack.c.b16 %v5047, %v5045
    %v5174 = vpack.c.b16 %v5048, %v5046
    %v5175 = vpack.c.b16 %v5051, %v5049
    %v5176 = vpack.c.b16 %v5052, %v5050
    %v5177 = vpack.c.b16 %v5055, %v5053
    %v5178 = vpack.c.b16 %v5056, %v5054
    %v5179 = vpack.c.b16 %v5059, %v5057
    %v5180 = vpack.c.b16 %v5060, %v5058
    %v5181 = vpack.c.b16 %v5063, %v5061
    %v5182 = vpack.c.b16 %v5064, %v5062
    %v5183 = vpack.c.b16 %v5067, %v5065
    %v5184 = vpack.c.b16 %v5068, %v5066
    %v5185 = vpack.c.b16 %v5071, %v5069
    %v5186 = vpack.c.b16 %v5072, %v5070
    %v5187 = vpack.c.b16 %v5075, %v5073
    %v5188 = vpack.c.b16 %v5076, %v5074
    %v5189 = vpack.c.b16 %v5079, %v5077
    %v5190 = vpack.c.b16 %v5080, %v5078
    %v5191 = vpack.c.b16 %v5083, %v5081
    %v5192 = vpack.c.b16 %v5084, %v5082
    %v5193 = vpack.c.b16 %v5087, %v5085
    %v5194 = vpack.c.b16 %v5088, %v5086
    %v5195 = vpack.c.b16 %v5091, %v5089
    %v5196 = vpack.c.b16 %v5092, %v5090
    %v5197 = vpack.c.b16 %v5095, %v5093
    %v5198 = vpack.c.b16 %v5096, %v5094
    %v5199 = vpack.c.b16 %v5099, %v5097
    %v5200 = vpack.c.b16 %v5100, %v5098
    %v5201 = vpack.c.b16 %v5103, %v5101
    %v5202 = vpack.c.b16 %v5104, %v5102
    %v5203 = vpack.c.b16 %v5107, %v5105
    %v5204 = vpack.c.b16 %v5108, %v5106
    %v5205 = vpack.c.b16 %v5111, %v5109
    %v5206 = vpack.c.b16 %v5112, %v5110
    %v5207 = vpack.c.b16 %v5115, %v5113
    %v5208 = vpack.c.b16 %v5116, %v5114
    %v5209 = vpack.c.b16 %v5119, %v5117
    %v5210 = vpack.c.b16 %v5120, %v5118
    %v5211 = vpack.c.b16 %v5123, %v5121
    %v5212 = vpack.c.b16 %v5124, %v5122
    %v5213 = vpack.c.b16 %v5127, %v5125
    %v5214 = vpack.c.b16 %v5128, %v5126
    %v5215 = vpack.c.b16 %v5131, %v5129
    %v5216 = vpack.c.b16 %v5132, %v5130
    %v5217 = vpack.c.b16 %v5135, %v5133
    %v5218 = vpack.c.b16 %v5136, %v5134
    %v5219 = vpack.c.b16 %v5139, %v5137
    %v5220 = vpack.c.b16 %v5140, %v5138
    %v5221 = vpack.c.b16 %v5143, %v5141
    %v5222 = vpack.c.b16 %v5144, %v5142
    %v5223 = vpack.c.b16 %v5147, %v5145
    %v5224 = vpack.c.b16 %v5148, %v5146
    %v5225 = vpack.c.b16 %v5151, %v5149
    %v5226 = vpack.c.b16 %v5152, %v5150
    %v5227 = vpack.c.b16 %v5155, %v5153
    %v5228 = vpack.c.b16 %v5156, %v5154
    %v5229 = vpack.c.b16 %v5159, %v5157
    %v5230 = vpack.c.b16 %v5160, %v5158
    %v5231 = vpack.c.b16 %v5163, %v5161
    %v5232 = vpack.c.b16 %v5164, %v5162
    %v5233 = vpack.c.b16 %v5167, %v5165
    %v5234 = vpack.c.b16 %v5168, %v5166
    %v5235 = vpack.c.b16 %v5171, %v5169
    %v5236 = vpack.c.b16 %v5172, %v5170
    %5301 = vmatprep.subr.bf16.mxu0 %v5188
    %5302 = vmatpush1.bf16.msra.mxu0 %v5187
    %5303 = vmatprep.subr.bf16.mxu0 %v5186
    %5304 = vmatpush1.bf16.msra.mxu0 %v5185
    %5305 = vmatprep.subr.bf16.mxu0 %v5184
    %5306 = vmatpush1.bf16.msra.mxu0 %v5183
    %5307 = vmatprep.subr.bf16.mxu0 %v5182
    %5308 = vmatpush1.bf16.msra.mxu0 %v5181
    %5309 = vmatprep.subr.bf16.mxu0 %v5180
    %5310 = vmatpush1.bf16.msra.mxu0 %v5179
    %5311 = vmatprep.subr.bf16.mxu0 %v5178
    %5312 = vmatpush1.bf16.msra.mxu0 %v5177
    %5313 = vmatprep.subr.bf16.mxu0 %v5176
    %5314 = vmatpush1.bf16.msra.mxu0 %v5175
    %5315 = vmatprep.subr.bf16.mxu0 %v5174
    %5316 = vmatpush1.bf16.msra.mxu0 %v5173
    %5317 = vmatprep.subr.bf16.mxu0 %v5204
    %5318 = vmatpush2.bf16.msra.mxu0 %v5203
    %5319 = vmatprep.subr.bf16.mxu0 %v5202
    %5320 = vmatpush2.bf16.msra.mxu0 %v5201
    %5321 = vmatprep.subr.bf16.mxu0 %v5200
    %5322 = vmatpush2.bf16.msra.mxu0 %v5199
    %5323 = vmatprep.subr.bf16.mxu0 %v5198
    %5324 = vmatpush2.bf16.msra.mxu0 %v5197
    %5325 = vmatprep.subr.bf16.mxu0 %v5196
    %5326 = vmatpush2.bf16.msra.mxu0 %v5195
    %5327 = vmatprep.subr.bf16.mxu0 %v5194
    %5328 = vmatpush2.bf16.msra.mxu0 %v5193
    %5329 = vmatprep.subr.bf16.mxu0 %v5192
    %5330 = vmatpush2.bf16.msra.mxu0 %v5191
    %5331 = vmatprep.subr.bf16.mxu0 %v5190
    %5332 = vmatpush2.bf16.msra.mxu0 %v5189
    %5333 = vmatprep.mubr.bf16.mxu0 %v4902
    %5334 = vmatmul.mubr.bf16.gmra.mxu0 %v4901
    %v5335 = vpop.f32.mrf.mxu0
    %v5336 = vadd.f32 %v4974, %v5335
    %v5337 = vpop.f32.mrf.mxu0
    %v5338 = vadd.f32 %v4978, %v5337
    %v5339 = vpop.f32.mrf.mxu0
    %v5340 = vpop.f32.mrf.mxu0
    %5341 = vdwg.mxu0
    %5342 = vmatprep.subr.bf16.mxu0 %v5220
    %5343 = vmatpush1.bf16.msra.mxu0 %v5219
    %5344 = vmatprep.subr.bf16.mxu0 %v5218
    %5345 = vmatpush1.bf16.msra.mxu0 %v5217
    %5346 = vmatprep.subr.bf16.mxu0 %v5216
    %5347 = vmatpush1.bf16.msra.mxu0 %v5215
    %5348 = vmatprep.subr.bf16.mxu0 %v5214
    %5349 = vmatpush1.bf16.msra.mxu0 %v5213
    %5350 = vmatprep.subr.bf16.mxu0 %v5212
    %5351 = vmatpush1.bf16.msra.mxu0 %v5211
    %5352 = vmatprep.subr.bf16.mxu0 %v5210
    %5353 = vmatpush1.bf16.msra.mxu0 %v5209
    %5354 = vmatprep.subr.bf16.mxu0 %v5208
    %5355 = vmatpush1.bf16.msra.mxu0 %v5207
    %5356 = vmatprep.subr.bf16.mxu0 %v5206
    %5357 = vmatpush1.bf16.msra.mxu0 %v5205
    %5358 = vmatprep.subr.bf16.mxu0 %v5236
    %5359 = vmatpush2.bf16.msra.mxu0 %v5235
    %5360 = vmatprep.subr.bf16.mxu0 %v5234
    %5361 = vmatpush2.bf16.msra.mxu0 %v5233
    %5362 = vmatprep.subr.bf16.mxu0 %v5232
    %5363 = vmatpush2.bf16.msra.mxu0 %v5231
    %5364 = vmatprep.subr.bf16.mxu0 %v5230
    %5365 = vmatpush2.bf16.msra.mxu0 %v5229
    %5366 = vmatprep.subr.bf16.mxu0 %v5228
    %5367 = vmatpush2.bf16.msra.mxu0 %v5227
    %5368 = vmatprep.subr.bf16.mxu0 %v5226
    %5369 = vmatpush2.bf16.msra.mxu0 %v5225
    %5370 = vmatprep.subr.bf16.mxu0 %v5224
    %5371 = vmatpush2.bf16.msra.mxu0 %v5223
    %5372 = vmatprep.subr.bf16.mxu0 %v5222
    %5373 = vmatpush2.bf16.msra.mxu0 %v5221
    %5374 = vmatprep.mubr.bf16.mxu0 %v4904
    %5375 = vmatmul.mubr.bf16.gmra.mxu0 %v4903
    %v5376 = vpop.f32.mrf.mxu0
    %v5377 = vadd.f32 %v5336, %v5376
    %v5378 = vpop.f32.mrf.mxu0
    %v5379 = vadd.f32 %v5338, %v5378
    %v5380 = vpop.f32.mrf.mxu0
    %v5381 = vpop.f32.mrf.mxu0
    %5382 = vdwg.mxu0
    %v5383 = vmax.f32 %v5377, 0.0
    %v5384 = vmax.f32 %v5379, 0.0
    %v5385 = vld [vmem:[%s13] sm:$0x3]
    %v5387 = vlaneseq
    %v5388 = vshrl.u32 %v5387, 7
    %v5389 = vsub.s32 0, %v5388
    %v5390 = vrot.slane %v5385, %v5389
    %v5391 = vlaneseq
    %v5392 = vshrl.u32 %v5391, 7
    %v5393 = vsub.s32 1, %v5392
    %v5394 = vrot.slane %v5385, %v5393
    %v5397 = vmul.f32 %v5383, %v5390
    %v5398 = vmul.f32 %v5384, %v5394
    %v5399 = vld [vmem:[%s14] sm:$0x3]
    %v5401 = vlaneseq
    %v5402 = vshrl.u32 %v5401, 7
    %v5403 = vsub.s32 0, %v5402
    %v5404 = vrot.slane %v5399, %v5403
    %v5405 = vlaneseq
    %v5406 = vshrl.u32 %v5405, 7
    %v5407 = vsub.s32 1, %v5406
    %v5408 = vrot.slane %v5399, %v5407
    %v5411 = vadd.f32 %v5397, %v5404
    %v5412 = vadd.f32 %v5398, %v5408
    %5413 = vst [vmem:[%s15] sm:$0xff] %v5411
    %5414 = vst [vmem:[%s15 + $0x8] sm:$0xff] %v5412
    // Predicated region
    $region82: #{siamese_forward.1} parent=1 // pred_check
      _
    $region83: #{siamese_forward.1} parent=1 // pred_check_branch
      %5416 = sbr.rel (0) target = $region85
    $region84: #{siamese_forward.1} parent=1 // pred_region
      _
    $region85: #{siamese_forward.1} parent=1 // pred_fallthru
      _
    // Predicated region
    $region86: #{siamese_forward.1} parent=1 // pred_check
      _
    $region87: #{siamese_forward.1} parent=1 // pred_check_branch
      %5418 = sbr.rel (0) target = $region89
    $region88: #{siamese_forward.1} parent=1 // pred_region
      _
    $region89: #{siamese_forward.1} parent=1 // pred_fallthru
      _
    %5419 = vsyncpa [#allocation3], 1
    %5420 = vsyncpa [#allocation5], 1
    %5421 = vsyncpa [#allocation8], 1

</llo_original>
